<compile_context>
chip_gen: v5e
topology: v5e:2x2
jax: 0.10.0
libtpu: 0.0.40
codegen_flags: <defaults>
</compile_context>

<pallas_src>
import jax
import jax.numpy as jnp
from jax import lax
from jax.experimental import pallas as pl
from jax.experimental.pallas import tpu as pltpu

OUT_PAD = 128  # lane-dense output slab; real probability lives in column 0


def _round_up(x, m):
    return ((x + m - 1) // m) * m


def _gru_encoder_kernel(ev_ref, embp_ref, wi_ref, wh_ref, bi_ref, bhn_ref,
                        attn_ref, fcw_ref, fcb_ref, out_ref, seq_sc):
    """Multi-layer GRU with in-kernel embedding gather, fused attention pooling.

    ev_ref   : (1, Bt, S)   int32 event ids for this batch tile
    embp_ref : (Ep, 3Hp)    bf16  embedding pre-projected through layer-0 Wi ([r|z|n])
    wi_ref   : (L-1, Hp,3Hp) bf16 input->hidden weights for layers 1..L-1
    wh_ref   : (L, Hp, 3Hp) bf16  hidden->hidden weights, gates packed [r|z|n]
    bi_ref   : (L, 1, 3Hp)  f32   [b_ir+b_hr | b_iz+b_hz | b_in]
    bhn_ref  : (L, 1, Hp)   f32   b_hn (applied inside r * (...))
    attn_ref : (1, Hp)      f32   attention vector (padded lanes 0)
    fcw_ref  : (1, Hp)      f32   output_fc weight row (padded lanes 0)
    fcb_ref  : (1, 1)       f32   output_fc bias
    out_ref  : (Bt, 128)    f32   sigmoid probabilities (column 0)
    seq_sc   : (S, Bt, Hp)  bf16  inter-layer sequence buffer
    """
    B = out_ref.shape[0]
    Hp = attn_ref.shape[1]
    THp = 3 * Hp
    S = seq_sc.shape[0]
    L = wh_ref.shape[0]
    Ep = embp_ref.shape[0]
    f32 = jnp.float32
    bf16 = jnp.bfloat16

    # Hoisted broadcasts / constants (JAX does not CSE broadcast_in_dim in loops).
    attn_b = jnp.broadcast_to(attn_ref[...], (B, Hp))
    iota_e = lax.broadcasted_iota(jnp.int32, (B, Ep), 1)

    def gru_gates(xp, hp, h, bhn_b):
        r = jax.nn.sigmoid(xp[:, :Hp] + hp[:, :Hp])
        z = jax.nn.sigmoid(xp[:, Hp:2 * Hp] + hp[:, Hp:2 * Hp])
        n = jnp.tanh(xp[:, 2 * Hp:] + r * (hp[:, 2 * Hp:] + bhn_b))
        return (1.0 - z) * n + z * h

    # ---------------- layer 0: in-kernel gather fused with the recurrence --------
    embp = embp_ref[...]                              # (Ep, 3Hp) bf16
    w_h0 = wh_ref[0]                                  # (Hp, 3Hp) bf16
    bi0_b = jnp.broadcast_to(bi_ref[0], (B, THp))
    bhn0_b = jnp.broadcast_to(bhn_ref[0], (B, Hp))
    only_layer = (L == 1)

    h = jnp.zeros((B, Hp), f32)                       # hidden=None -> zero init
    acc = jnp.zeros((B, Hp), f32)                     # attention-pooling accumulator
    # TODO(synk): layer 0 is statically unrolled (event-id lane slice needs a static
    #             index); very long S would want a chunked fori variant.
    for t in range(S):
        ev_col = ev_ref[0, :, t:t + 1]                            # (B, 1) int32
        oh_t = (ev_col == iota_e).astype(f32).astype(bf16)        # (B, Ep) exact one-hot
        # gather + layer-0 input projection in one MXU matmul
        xp = jnp.dot(oh_t, embp, preferred_element_type=f32) + bi0_b
        hp = jnp.dot(h.astype(bf16), w_h0, preferred_element_type=f32)
        h = gru_gates(xp, hp, h, bhn0_b)
        if only_layer:
            w_attn = jnp.sum(h * attn_b, axis=-1, keepdims=True)
            acc = acc + h * w_attn
        else:
            seq_sc[t] = h.astype(bf16)

    # ---------------- layers 1..L-1: fori over time, per-step projections --------
    for layer in range(1, L):
        w_i = wi_ref[layer - 1]                       # (Hp, 3Hp) bf16
        w_h = wh_ref[layer]                           # (Hp, 3Hp) bf16
        bi_b = jnp.broadcast_to(bi_ref[layer], (B, THp))
        bhn_b = jnp.broadcast_to(bhn_ref[layer], (B, Hp))
        is_last = layer == L - 1
        h0 = jnp.zeros((B, Hp), f32)

        if is_last:
            def step(t, carry):
                h, acc = carry
                x_t = seq_sc[t]                                           # (B, Hp) bf16
                xp = jnp.dot(x_t, w_i, preferred_element_type=f32) + bi_b
                hp = jnp.dot(h.astype(bf16), w_h, preferred_element_type=f32)
                h = gru_gates(xp, hp, h, bhn_b)
                w_attn = jnp.sum(h * attn_b, axis=-1, keepdims=True)      # (B, 1)
                return h, acc + h * w_attn                                # fused pooling
            _, acc = lax.fori_loop(0, S, step, (h0, jnp.zeros((B, Hp), f32)),
                                   unroll=min(S, 8))
        else:
            def step(t, h):
                x_t = seq_sc[t]
                xp = jnp.dot(x_t, w_i, preferred_element_type=f32) + bi_b
                hp = jnp.dot(h.astype(bf16), w_h, preferred_element_type=f32)
                h = gru_gates(xp, hp, h, bhn_b)
                seq_sc[t] = h.astype(bf16)                                # next layer input
                return h
            lax.fori_loop(0, S, step, h0, unroll=min(S, 8))

    # ---------------- output head: VPU multiply + lane reduce (no 128-wide matmul) --
    pooled = acc * (1.0 / S)                                              # mean over time
    fcw_b = jnp.broadcast_to(fcw_ref[...], (B, Hp))
    logit = jnp.sum(pooled * fcw_b, axis=-1, keepdims=True) + fcb_ref[...]  # (B, 1)
    out_ref[...] = jnp.broadcast_to(jax.nn.sigmoid(logit), (B, OUT_PAD))


def pack_params(params):
    """One-time packing/padding of module parameters (outside the per-call path)."""
    emb = params["embedding"].astype(jnp.float32)
    E, H = emb.shape
    Hp = _round_up(H, 128)
    Ep = _round_up(E, 128)
    L = len(params["wih"])

    def pad_mat(w):   # (H, H) -> (Hp, Hp), zero pad
        return jnp.pad(w, ((0, Hp - H), (0, Hp - H)))

    def pad_vec(b):   # (H,) -> (1, Hp)
        return jnp.pad(b, (0, Hp - H)).reshape(1, Hp)

    wi_l, wh_l, bi_l, bhn_l = [], [], [], []
    embp = None
    for l in range(L):
        Wih = params["wih"][l].astype(jnp.float32)
        Whh = params["whh"][l].astype(jnp.float32)
        bih = params["bih"][l].astype(jnp.float32)
        bhh = params["bhh"][l].astype(jnp.float32)
        W_ir, W_iz, W_in = Wih[:H], Wih[H:2 * H], Wih[2 * H:]
        W_hr, W_hz, W_hn = Whh[:H], Whh[H:2 * H], Whh[2 * H:]
        b_ir, b_iz, b_in = bih[:H], bih[H:2 * H], bih[2 * H:]
        b_hr, b_hz, b_hn = bhh[:H], bhh[H:2 * H], bhh[2 * H:]
        wh_l.append(jnp.concatenate(
            [pad_mat(W_hr.T), pad_mat(W_hz.T), pad_mat(W_hn.T)], axis=1))
        bi_l.append(jnp.concatenate(
            [pad_vec(b_ir + b_hr), pad_vec(b_iz + b_hz), pad_vec(b_in)], axis=1))
        bhn_l.append(pad_vec(b_hn))
        if l == 0:
            # Fold the embedding lookup and the layer-0 input projection into one
            # table: row e = emb[e] @ [W_ir|W_iz|W_in]^T (gathered in-kernel via
            # an exact one-hot MXU matmul).
            def proj(Wg):
                return jnp.pad(emb @ Wg.T, ((0, Ep - E), (0, Hp - H)))
            embp = jnp.concatenate([proj(W_ir), proj(W_iz), proj(W_in)], axis=1)
        else:
            wi_l.append(jnp.concatenate(
                [pad_mat(W_ir.T), pad_mat(W_iz.T), pad_mat(W_in.T)], axis=1))

    if not wi_l:  # single-layer GRU: placeholder, never read by the kernel
        wi_l.append(jnp.zeros((Hp, 3 * Hp), jnp.float32))

    return {
        "embp": embp.astype(jnp.bfloat16),                               # (Ep, 3Hp)
        "wi": jnp.stack(wi_l).astype(jnp.bfloat16),                      # (max(L-1,1), Hp, 3Hp)
        "wh": jnp.stack(wh_l).astype(jnp.bfloat16),                      # (L, Hp, 3Hp)
        "bi": jnp.stack(bi_l),                                           # (L, 1, 3Hp) f32
        "bhn": jnp.stack(bhn_l),                                         # (L, 1, Hp)  f32
        "attn": pad_vec(params["attn"].astype(jnp.float32)),             # (1, Hp)
        "fcw": pad_vec(params["fc_w"].astype(jnp.float32).reshape(H)),   # (1, Hp)
        "fcb": params["fc_b"].astype(jnp.float32).reshape(1, 1),         # (1, 1)
    }


def _pick_batch_tile(B_pad, S, Hp):
    """Largest sublane-multiple batch tile that fits the seq-scratch budget,
    capped at 256 rows, with >=2 grid programs when the batch allows it."""
    seq_budget = 16 * 1024 * 1024                       # bytes, conservative for v7x 64 MiB/TC
    cap = max(8, (seq_budget // max(1, S * Hp * 2)) // 8 * 8)
    cap = min(cap, 256, B_pad)
    if B_pad >= 16:
        cap = min(cap, B_pad // 2)                      # >=2 programs for megacore sharding
    bt = 8
    c = (cap // 8) * 8
    while c >= 8:
        if B_pad % c == 0:
            bt = c
            break
        c -= 8
    return bt


def _vmem_limit_bytes(S, B_tile, Hp, Ep, L, Lw):
    THp = 3 * Hp
    n = 0
    n += S * B_tile * Hp * 2                            # seq scratch (bf16)
    n += 2 * B_tile * S * 4                             # event-id block (double-buffered)
    n += 2 * B_tile * OUT_PAD * 4                       # output block
    n += 2 * Ep * THp * 2                               # pre-projected embedding (bf16)
    n += 2 * (Lw + L) * Hp * THp * 2                    # wi + wh (bf16, double-buffered)
    n += 2 * (L * THp + L * Hp + 2 * Hp + 1) * 4        # biases / attn / fc (f32)
    n = int(n * 1.25) + 4 * 1024 * 1024
    return max(16 * 1024 * 1024, min(n, 100 * 1024 * 1024))


def event_sequence_encoder(events, packed):
    """events: (S, B) int32 -> (B,) f32 probabilities (output_logits=False path)."""
    S, B = events.shape
    Hp = packed["attn"].shape[1]
    THp = 3 * Hp
    Ep = packed["embp"].shape[0]
    L = packed["wh"].shape[0]
    Lw = packed["wi"].shape[0]

    B_pad = _round_up(B, 8)
    if B_pad >= 16:
        B_pad = _round_up(B_pad, 16)                    # keep B_pad//2 a sublane multiple
    B_tile = _pick_batch_tile(B_pad, S, Hp)
    nb = B_pad // B_tile

    ev = events.astype(jnp.int32)
    if B_pad != B:
        ev = jnp.pad(ev, ((0, 0), (0, B_pad - B)))      # padded rows use event id 0
    # (nb, B_tile, S): batch on sublanes, time on lanes -> per-step one-hot build in the
    # kernel needs no relayout, and the last block dim equals the full array dim so any
    # sublane-multiple B_tile is a legal BlockSpec.
    ev_k = ev.T.reshape(nb, B_tile, S)

    vmem_limit = _vmem_limit_bytes(S, B_tile, Hp, Ep, L, Lw)

    out = pl.pallas_call(
        _gru_encoder_kernel,
        out_shape=jax.ShapeDtypeStruct((B_pad, OUT_PAD), jnp.float32),
        grid=(nb,),
        in_specs=[
            pl.BlockSpec((1, B_tile, S), lambda b: (b, 0, 0)),   # event ids (batch-tiled)
            pl.BlockSpec((Ep, THp), lambda b: (0, 0)),           # pre-projected embedding
            pl.BlockSpec((Lw, Hp, THp), lambda b: (0, 0, 0)),    # wi (layers 1..L-1)
            pl.BlockSpec((L, Hp, THp), lambda b: (0, 0, 0)),     # wh
            pl.BlockSpec((L, 1, THp), lambda b: (0, 0, 0)),      # bi
            pl.BlockSpec((L, 1, Hp), lambda b: (0, 0, 0)),       # bhn
            pl.BlockSpec((1, Hp), lambda b: (0, 0)),             # attn
            pl.BlockSpec((1, Hp), lambda b: (0, 0)),             # fc weight row
            pl.BlockSpec((1, 1), lambda b: (0, 0)),              # fc bias
        ],
        out_specs=pl.BlockSpec((B_tile, OUT_PAD), lambda b: (b, 0)),
        scratch_shapes=[pltpu.VMEM((S, B_tile, Hp), jnp.bfloat16)],   # inter-layer sequence
        compiler_params=pltpu.CompilerParams(
            dimension_semantics=("parallel",),
            vmem_limit_bytes=vmem_limit,
        ),
    )(ev_k, packed["embp"], packed["wi"], packed["wh"], packed["bi"],
      packed["bhn"], packed["attn"], packed["fcw"], packed["fcb"])

    return out[:B, 0]


def init_params(key, event_dim, hidden_dim, gru_layers):
    """Deterministic synthetic parameters matching the PyTorch module's shapes."""
    keys = jax.random.split(key, 4 + 4 * gru_layers)
    s = 0.1
    params = {
        "embedding": s * jax.random.normal(keys[0], (event_dim, hidden_dim), jnp.float32),
        "attn": jax.random.normal(keys[1], (hidden_dim,), jnp.float32),
        "fc_w": s * jax.random.normal(keys[2], (1, hidden_dim), jnp.float32),
        "fc_b": s * jax.random.normal(keys[3], (1,), jnp.float32),
        "wih": [], "whh": [], "bih": [], "bhh": [],
    }
    for l in range(gru_layers):
        k = keys[4 + 4 * l: 4 + 4 * (l + 1)]
        params["wih"].append(s * jax.random.normal(k[0], (3 * hidden_dim, hidden_dim), jnp.float32))
        params["whh"].append(s * jax.random.normal(k[1], (3 * hidden_dim, hidden_dim), jnp.float32))
        params["bih"].append(s * jax.random.normal(k[2], (3 * hidden_dim,), jnp.float32))
        params["bhh"].append(s * jax.random.normal(k[3], (3 * hidden_dim,), jnp.float32))
    return params


def reference_forward(events, params):
    """Pure-JAX reference reproducing the PyTorch forward (eval mode)."""
    emb = params["embedding"][events]                 # (S, B, H)
    S, B, H = emb.shape
    x = emb
    for l in range(len(params["wih"])):
        Wih, Whh = params["wih"][l], params["whh"][l]
        bih, bhh = params["bih"][l], params["bhh"][l]
        W_ir, W_iz, W_in = Wih[:H], Wih[H:2 * H], Wih[2 * H:]
        W_hr, W_hz, W_hn = Whh[:H], Whh[H:2 * H], Whh[2 * H:]
        b_ir, b_iz, b_in = bih[:H], bih[H:2 * H], bih[2 * H:]
        b_hr, b_hz, b_hn = bhh[:H], bhh[H:2 * H], bhh[2 * H:]
        h = jnp.zeros((B, H), jnp.float32)
        outs = []
        for t in range(S):
            xt = x[t]
            r = jax.nn.sigmoid(xt @ W_ir.T + b_ir + h @ W_hr.T + b_hr)
            z = jax.nn.sigmoid(xt @ W_iz.T + b_iz + h @ W_hz.T + b_hz)
            n = jnp.tanh(xt @ W_in.T + b_in + r * (h @ W_hn.T + b_hn))
            h = (1.0 - z) * n + z * h
            outs.append(h)
        x = jnp.stack(outs, axis=0)
    weights = jnp.sum(x * params["attn"], axis=-1, keepdims=True)   # (S, B, 1)
    pooled = jnp.mean(x * weights, axis=0)                          # (B, H)
    logits = pooled @ params["fc_w"].T + params["fc_b"]             # (B, 1)
    return jax.nn.sigmoid(logits[:, 0])


if __name__ == "__main__":
    EVENT_DIM, HIDDEN, LAYERS, SEQ, BATCH = 16, 32, 3, 8, 4
    key = jax.random.PRNGKey(0)
    k_ev, k_par = jax.random.split(key)
    events = jax.random.randint(k_ev, (SEQ, BATCH), 0, EVENT_DIM, dtype=jnp.int32)
    params = init_params(k_par, EVENT_DIM, HIDDEN, LAYERS)

    packed = jax.tree_util.tree_map(jax.block_until_ready, pack_params(params))  # pack once
    encoder = jax.jit(event_sequence_encoder)

    out = jax.block_until_ready(encoder(events, packed))
    ref = jax.block_until_ready(reference_forward(events, params))

    assert out.shape == (BATCH,), out.shape
    assert bool(jnp.allclose(out, ref, atol=2e-2, rtol=2e-2)), (out, ref)
    print("KERNEL_OK")
</pallas_src>

<mosaic_0001>
module attributes {stable_mosaic.version = 11 : i64} {
  func.func @_gru_encoder_kernel(%arg0: i32, %arg1: memref<1x8x8xi32, #tpu.memory_space<vmem>>, %arg2: memref<128x384xbf16, #tpu.memory_space<vmem>>, %arg3: memref<2x128x384xbf16, #tpu.memory_space<vmem>>, %arg4: memref<3x128x384xbf16, #tpu.memory_space<vmem>>, %arg5: memref<3x1x384xf32, #tpu.memory_space<vmem>>, %arg6: memref<3x1x128xf32, #tpu.memory_space<vmem>>, %arg7: memref<1x128xf32, #tpu.memory_space<vmem>>, %arg8: memref<1x128xf32, #tpu.memory_space<vmem>>, %arg9: memref<1x1xf32, #tpu.memory_space<vmem>>, %arg10: memref<8x128xf32, #tpu.memory_space<vmem>>, %arg11: memref<8x8x128xbf16, #tpu.memory_space<vmem>>) attributes {dimension_semantics = [#tpu.dimension_semantics<parallel>], iteration_bounds = array<i64: 1>, scalar_prefetch = 0 : i64, scratch_operands = 1 : i64, tpu.core_type = #tpu.core_type<tc>, window_params = [{transform_indices = @transform_0, window_bounds = array<i64: 1, 8, 8>}, {pipeline_mode = #tpu.pipeline_mode<synchronous>, transform_indices = @transform_1, window_bounds = array<i64: 128, 384>}, {pipeline_mode = #tpu.pipeline_mode<synchronous>, transform_indices = @transform_2, window_bounds = array<i64: 2, 128, 384>}, {pipeline_mode = #tpu.pipeline_mode<synchronous>, transform_indices = @transform_3, window_bounds = array<i64: 3, 128, 384>}, {pipeline_mode = #tpu.pipeline_mode<synchronous>, transform_indices = @transform_4, window_bounds = array<i64: 3, 1, 384>}, {pipeline_mode = #tpu.pipeline_mode<synchronous>, transform_indices = @transform_5, window_bounds = array<i64: 3, 1, 128>}, {pipeline_mode = #tpu.pipeline_mode<synchronous>, transform_indices = @transform_6, window_bounds = array<i64: 1, 128>}, {pipeline_mode = #tpu.pipeline_mode<synchronous>, transform_indices = @transform_7, window_bounds = array<i64: 1, 128>}, {pipeline_mode = #tpu.pipeline_mode<synchronous>, transform_indices = @transform_8, window_bounds = array<i64: 1, 1>}, {transform_indices = @transform_9, window_bounds = array<i64: 8, 128>}]} {
    %c0 = arith.constant 0 : index
    %c0_0 = arith.constant 0 : index
    %0 = vector.load %arg7[%c0, %c0_0] : memref<1x128xf32, #tpu.memory_space<vmem>>, vector<1x128xf32>
    %1 = vector.shape_cast %0 : vector<1x128xf32> to vector<1x128xf32>
    %2 = vector.broadcast %1 : vector<1x128xf32> to vector<8x128xf32>
    %3 = tpu.iota {dimensions = array<i32: 1>} : vector<8x128xi32>
    %c0_1 = arith.constant 0 : index
    %c0_2 = arith.constant 0 : index
    %4 = vector.load %arg2[%c0_1, %c0_2] : memref<128x384xbf16, #tpu.memory_space<vmem>>, vector<128x384xbf16>
    %c0_3 = arith.constant 0 : index
    %c0_4 = arith.constant 0 : index
    %c0_5 = arith.constant 0 : index
    %5 = vector.load %arg4[%c0_3, %c0_4, %c0_5] : memref<3x128x384xbf16, #tpu.memory_space<vmem>>, vector<1x128x384xbf16>
    %6 = vector.shape_cast %5 : vector<1x128x384xbf16> to vector<128x384xbf16>
    %c0_6 = arith.constant 0 : index
    %c0_7 = arith.constant 0 : index
    %c0_8 = arith.constant 0 : index
    %7 = vector.load %arg5[%c0_6, %c0_7, %c0_8] : memref<3x1x384xf32, #tpu.memory_space<vmem>>, vector<1x1x384xf32>
    %8 = vector.shape_cast %7 : vector<1x1x384xf32> to vector<1x384xf32>
    %9 = vector.shape_cast %8 : vector<1x384xf32> to vector<1x384xf32>
    %10 = vector.broadcast %9 : vector<1x384xf32> to vector<8x384xf32>
    %c0_9 = arith.constant 0 : index
    %c0_10 = arith.constant 0 : index
    %c0_11 = arith.constant 0 : index
    %11 = vector.load %arg6[%c0_9, %c0_10, %c0_11] : memref<3x1x128xf32, #tpu.memory_space<vmem>>, vector<1x1x128xf32>
    %12 = vector.shape_cast %11 : vector<1x1x128xf32> to vector<1x128xf32>
    %13 = vector.shape_cast %12 : vector<1x128xf32> to vector<1x128xf32>
    %14 = vector.broadcast %13 : vector<1x128xf32> to vector<8x128xf32>
    %cst = arith.constant 0.000000e+00 : f32
    %15 = vector.broadcast %cst : f32 to vector<8x128xf32>
    %c0_12 = arith.constant 0 : index
    %c0_13 = arith.constant 0 : index
    %c0_14 = arith.constant 0 : index
    %16 = vector.load %arg1[%c0_12, %c0_13, %c0_14] : memref<1x8x8xi32, #tpu.memory_space<vmem>>, vector<1x8x1xi32>
    %17 = vector.shape_cast %16 : vector<1x8x1xi32> to vector<8x1xi32>
    %18 = vector.broadcast %17 : vector<8x1xi32> to vector<8x128xi32>
    %19 = arith.cmpi eq, %18, %3 : vector<8x128xi32>
    %20 = arith.extui %19 : vector<8x128xi1> to vector<8x128xi32>
    %21 = arith.sitofp %20 : vector<8x128xi32> to vector<8x128xf32>
    %22 = arith.truncf %21 : vector<8x128xf32> to vector<8x128xbf16>
    %cst_15 = arith.constant dense<0.000000e+00> : vector<8x384xf32>
    %23 = tpu.matmul %22, %4, %cst_15 {dimension_numbers = #tpu.dot_dimension_numbers<[1], [0], [0], [1], [0, 0, 1, 1], [], []>} : vector<8x128xbf16>, vector<128x384xbf16>, vector<8x384xf32> -> vector<8x384xf32>
    %24 = arith.addf %23, %10 : vector<8x384xf32>
    %25 = arith.truncf %15 : vector<8x128xf32> to vector<8x128xbf16>
    %cst_16 = arith.constant dense<0.000000e+00> : vector<8x384xf32>
    %26 = tpu.matmul %25, %6, %cst_16 {dimension_numbers = #tpu.dot_dimension_numbers<[1], [0], [0], [1], [0, 0, 1, 1], [], []>} : vector<8x128xbf16>, vector<128x384xbf16>, vector<8x384xf32> -> vector<8x384xf32>
    %27 = vector.extract_strided_slice %24 {offsets = [0, 0], sizes = [8, 128], strides = [1, 1]} : vector<8x384xf32> to vector<8x128xf32>
    %28 = vector.extract_strided_slice %26 {offsets = [0, 0], sizes = [8, 128], strides = [1, 1]} : vector<8x384xf32> to vector<8x128xf32>
    %29 = arith.addf %27, %28 : vector<8x128xf32>
    %30 = arith.negf %29 : vector<8x128xf32>
    %31 = math.exp %30 : vector<8x128xf32>
    %cst_17 = arith.constant 1.000000e+00 : f32
    %32 = vector.broadcast %cst_17 : f32 to vector<8x128xf32>
    %33 = arith.addf %32, %31 : vector<8x128xf32>
    %34 = arith.divf %32, %33 : vector<8x128xf32>
    %35 = vector.extract_strided_slice %24 {offsets = [0, 128], sizes = [8, 128], strides = [1, 1]} : vector<8x384xf32> to vector<8x128xf32>
    %36 = vector.extract_strided_slice %26 {offsets = [0, 128], sizes = [8, 128], strides = [1, 1]} : vector<8x384xf32> to vector<8x128xf32>
    %37 = arith.addf %35, %36 : vector<8x128xf32>
    %38 = arith.negf %37 : vector<8x128xf32>
    %39 = math.exp %38 : vector<8x128xf32>
    %cst_18 = arith.constant 1.000000e+00 : f32
    %40 = vector.broadcast %cst_18 : f32 to vector<8x128xf32>
    %41 = arith.addf %40, %39 : vector<8x128xf32>
    %42 = arith.divf %40, %41 : vector<8x128xf32>
    %43 = vector.extract_strided_slice %24 {offsets = [0, 256], sizes = [8, 128], strides = [1, 1]} : vector<8x384xf32> to vector<8x128xf32>
    %44 = vector.extract_strided_slice %26 {offsets = [0, 256], sizes = [8, 128], strides = [1, 1]} : vector<8x384xf32> to vector<8x128xf32>
    %45 = arith.addf %44, %14 : vector<8x128xf32>
    %46 = arith.mulf %34, %45 : vector<8x128xf32>
    %47 = arith.addf %43, %46 : vector<8x128xf32>
    %48 = math.tanh %47 : vector<8x128xf32>
    %cst_19 = arith.constant 1.000000e+00 : f32
    %49 = vector.broadcast %cst_19 : f32 to vector<8x128xf32>
    %50 = arith.subf %49, %42 : vector<8x128xf32>
    %51 = arith.mulf %50, %48 : vector<8x128xf32>
    %52 = arith.mulf %42, %15 : vector<8x128xf32>
    %53 = arith.addf %51, %52 : vector<8x128xf32>
    %54 = arith.truncf %53 : vector<8x128xf32> to vector<8x128xbf16>
    %c0_20 = arith.constant 0 : index
    %c0_21 = arith.constant 0 : index
    %c0_22 = arith.constant 0 : index
    %55 = vector.load %arg11[%c0_20, %c0_21, %c0_22] : memref<8x8x128xbf16, #tpu.memory_space<vmem>>, vector<1x8x128xbf16>
    %56 = vector.shape_cast %55 : vector<1x8x128xbf16> to vector<8x128xbf16>
    %57 = vector.shape_cast %54 : vector<8x128xbf16> to vector<1x8x128xbf16>
    tpu.vector_store %arg11[%c0_20, %c0_21, %c0_22], %57 {strides = array<i32>} : memref<8x8x128xbf16, #tpu.memory_space<vmem>>, vector<1x8x128xbf16>,
    %c0_23 = arith.constant 0 : index
    %c0_24 = arith.constant 0 : index
    %c1 = arith.constant 1 : index
    %58 = vector.load %arg1[%c0_23, %c0_24, %c1] : memref<1x8x8xi32, #tpu.memory_space<vmem>>, vector<1x8x1xi32>
    %59 = vector.shape_cast %58 : vector<1x8x1xi32> to vector<8x1xi32>
    %60 = vector.broadcast %59 : vector<8x1xi32> to vector<8x128xi32>
    %61 = arith.cmpi eq, %60, %3 : vector<8x128xi32>
    %62 = arith.extui %61 : vector<8x128xi1> to vector<8x128xi32>
    %63 = arith.sitofp %62 : vector<8x128xi32> to vector<8x128xf32>
    %64 = arith.truncf %63 : vector<8x128xf32> to vector<8x128xbf16>
    %cst_25 = arith.constant dense<0.000000e+00> : vector<8x384xf32>
    %65 = tpu.matmul %64, %4, %cst_25 {dimension_numbers = #tpu.dot_dimension_numbers<[1], [0], [0], [1], [0, 0, 1, 1], [], []>} : vector<8x128xbf16>, vector<128x384xbf16>, vector<8x384xf32> -> vector<8x384xf32>
    %66 = arith.addf %65, %10 : vector<8x384xf32>
    %67 = arith.truncf %53 : vector<8x128xf32> to vector<8x128xbf16>
    %cst_26 = arith.constant dense<0.000000e+00> : vector<8x384xf32>
    %68 = tpu.matmul %67, %6, %cst_26 {dimension_numbers = #tpu.dot_dimension_numbers<[1], [0], [0], [1], [0, 0, 1, 1], [], []>} : vector<8x128xbf16>, vector<128x384xbf16>, vector<8x384xf32> -> vector<8x384xf32>
    %69 = vector.extract_strided_slice %66 {offsets = [0, 0], sizes = [8, 128], strides = [1, 1]} : vector<8x384xf32> to vector<8x128xf32>
    %70 = vector.extract_strided_slice %68 {offsets = [0, 0], sizes = [8, 128], strides = [1, 1]} : vector<8x384xf32> to vector<8x128xf32>
    %71 = arith.addf %69, %70 : vector<8x128xf32>
    %72 = arith.negf %71 : vector<8x128xf32>
    %73 = math.exp %72 : vector<8x128xf32>
    %cst_27 = arith.constant 1.000000e+00 : f32
    %74 = vector.broadcast %cst_27 : f32 to vector<8x128xf32>
    %75 = arith.addf %74, %73 : vector<8x128xf32>
    %76 = arith.divf %74, %75 : vector<8x128xf32>
    %77 = vector.extract_strided_slice %66 {offsets = [0, 128], sizes = [8, 128], strides = [1, 1]} : vector<8x384xf32> to vector<8x128xf32>
    %78 = vector.extract_strided_slice %68 {offsets = [0, 128], sizes = [8, 128], strides = [1, 1]} : vector<8x384xf32> to vector<8x128xf32>
    %79 = arith.addf %77, %78 : vector<8x128xf32>
    %80 = arith.negf %79 : vector<8x128xf32>
    %81 = math.exp %80 : vector<8x128xf32>
    %cst_28 = arith.constant 1.000000e+00 : f32
    %82 = vector.broadcast %cst_28 : f32 to vector<8x128xf32>
    %83 = arith.addf %82, %81 : vector<8x128xf32>
    %84 = arith.divf %82, %83 : vector<8x128xf32>
    %85 = vector.extract_strided_slice %66 {offsets = [0, 256], sizes = [8, 128], strides = [1, 1]} : vector<8x384xf32> to vector<8x128xf32>
    %86 = vector.extract_strided_slice %68 {offsets = [0, 256], sizes = [8, 128], strides = [1, 1]} : vector<8x384xf32> to vector<8x128xf32>
    %87 = arith.addf %86, %14 : vector<8x128xf32>
    %88 = arith.mulf %76, %87 : vector<8x128xf32>
    %89 = arith.addf %85, %88 : vector<8x128xf32>
    %90 = math.tanh %89 : vector<8x128xf32>
    %cst_29 = arith.constant 1.000000e+00 : f32
    %91 = vector.broadcast %cst_29 : f32 to vector<8x128xf32>
    %92 = arith.subf %91, %84 : vector<8x128xf32>
    %93 = arith.mulf %92, %90 : vector<8x128xf32>
    %94 = arith.mulf %84, %53 : vector<8x128xf32>
    %95 = arith.addf %93, %94 : vector<8x128xf32>
    %96 = arith.truncf %95 : vector<8x128xf32> to vector<8x128xbf16>
    %c1_30 = arith.constant 1 : index
    %c0_31 = arith.constant 0 : index
    %c0_32 = arith.constant 0 : index
    %97 = vector.load %arg11[%c1_30, %c0_31, %c0_32] : memref<8x8x128xbf16, #tpu.memory_space<vmem>>, vector<1x8x128xbf16>
    %98 = vector.shape_cast %97 : vector<1x8x128xbf16> to vector<8x128xbf16>
    %99 = vector.shape_cast %96 : vector<8x128xbf16> to vector<1x8x128xbf16>
    tpu.vector_store %arg11[%c1_30, %c0_31, %c0_32], %99 {strides = array<i32>} : memref<8x8x128xbf16, #tpu.memory_space<vmem>>, vector<1x8x128xbf16>,
    %c0_33 = arith.constant 0 : index
    %c0_34 = arith.constant 0 : index
    %c2 = arith.constant 2 : index
    %100 = vector.load %arg1[%c0_33, %c0_34, %c2] : memref<1x8x8xi32, #tpu.memory_space<vmem>>, vector<1x8x1xi32>
    %101 = vector.shape_cast %100 : vector<1x8x1xi32> to vector<8x1xi32>
    %102 = vector.broadcast %101 : vector<8x1xi32> to vector<8x128xi32>
    %103 = arith.cmpi eq, %102, %3 : vector<8x128xi32>
    %104 = arith.extui %103 : vector<8x128xi1> to vector<8x128xi32>
    %105 = arith.sitofp %104 : vector<8x128xi32> to vector<8x128xf32>
    %106 = arith.truncf %105 : vector<8x128xf32> to vector<8x128xbf16>
    %cst_35 = arith.constant dense<0.000000e+00> : vector<8x384xf32>
    %107 = tpu.matmul %106, %4, %cst_35 {dimension_numbers = #tpu.dot_dimension_numbers<[1], [0], [0], [1], [0, 0, 1, 1], [], []>} : vector<8x128xbf16>, vector<128x384xbf16>, vector<8x384xf32> -> vector<8x384xf32>
    %108 = arith.addf %107, %10 : vector<8x384xf32>
    %109 = arith.truncf %95 : vector<8x128xf32> to vector<8x128xbf16>
    %cst_36 = arith.constant dense<0.000000e+00> : vector<8x384xf32>
    %110 = tpu.matmul %109, %6, %cst_36 {dimension_numbers = #tpu.dot_dimension_numbers<[1], [0], [0], [1], [0, 0, 1, 1], [], []>} : vector<8x128xbf16>, vector<128x384xbf16>, vector<8x384xf32> -> vector<8x384xf32>
    %111 = vector.extract_strided_slice %108 {offsets = [0, 0], sizes = [8, 128], strides = [1, 1]} : vector<8x384xf32> to vector<8x128xf32>
    %112 = vector.extract_strided_slice %110 {offsets = [0, 0], sizes = [8, 128], strides = [1, 1]} : vector<8x384xf32> to vector<8x128xf32>
    %113 = arith.addf %111, %112 : vector<8x128xf32>
    %114 = arith.negf %113 : vector<8x128xf32>
    %115 = math.exp %114 : vector<8x128xf32>
    %cst_37 = arith.constant 1.000000e+00 : f32
    %116 = vector.broadcast %cst_37 : f32 to vector<8x128xf32>
    %117 = arith.addf %116, %115 : vector<8x128xf32>
    %118 = arith.divf %116, %117 : vector<8x128xf32>
    %119 = vector.extract_strided_slice %108 {offsets = [0, 128], sizes = [8, 128], strides = [1, 1]} : vector<8x384xf32> to vector<8x128xf32>
    %120 = vector.extract_strided_slice %110 {offsets = [0, 128], sizes = [8, 128], strides = [1, 1]} : vector<8x384xf32> to vector<8x128xf32>
    %121 = arith.addf %119, %120 : vector<8x128xf32>
    %122 = arith.negf %121 : vector<8x128xf32>
    %123 = math.exp %122 : vector<8x128xf32>
    %cst_38 = arith.constant 1.000000e+00 : f32
    %124 = vector.broadcast %cst_38 : f32 to vector<8x128xf32>
    %125 = arith.addf %124, %123 : vector<8x128xf32>
    %126 = arith.divf %124, %125 : vector<8x128xf32>
    %127 = vector.extract_strided_slice %108 {offsets = [0, 256], sizes = [8, 128], strides = [1, 1]} : vector<8x384xf32> to vector<8x128xf32>
    %128 = vector.extract_strided_slice %110 {offsets = [0, 256], sizes = [8, 128], strides = [1, 1]} : vector<8x384xf32> to vector<8x128xf32>
    %129 = arith.addf %128, %14 : vector<8x128xf32>
    %130 = arith.mulf %118, %129 : vector<8x128xf32>
    %131 = arith.addf %127, %130 : vector<8x128xf32>
    %132 = math.tanh %131 : vector<8x128xf32>
    %cst_39 = arith.constant 1.000000e+00 : f32
    %133 = vector.broadcast %cst_39 : f32 to vector<8x128xf32>
    %134 = arith.subf %133, %126 : vector<8x128xf32>
    %135 = arith.mulf %134, %132 : vector<8x128xf32>
    %136 = arith.mulf %126, %95 : vector<8x128xf32>
    %137 = arith.addf %135, %136 : vector<8x128xf32>
    %138 = arith.truncf %137 : vector<8x128xf32> to vector<8x128xbf16>
    %c2_40 = arith.constant 2 : index
    %c0_41 = arith.constant 0 : index
    %c0_42 = arith.constant 0 : index
    %139 = vector.load %arg11[%c2_40, %c0_41, %c0_42] : memref<8x8x128xbf16, #tpu.memory_space<vmem>>, vector<1x8x128xbf16>
    %140 = vector.shape_cast %139 : vector<1x8x128xbf16> to vector<8x128xbf16>
    %141 = vector.shape_cast %138 : vector<8x128xbf16> to vector<1x8x128xbf16>
    tpu.vector_store %arg11[%c2_40, %c0_41, %c0_42], %141 {strides = array<i32>} : memref<8x8x128xbf16, #tpu.memory_space<vmem>>, vector<1x8x128xbf16>,
    %c0_43 = arith.constant 0 : index
    %c0_44 = arith.constant 0 : index
    %c3 = arith.constant 3 : index
    %142 = vector.load %arg1[%c0_43, %c0_44, %c3] : memref<1x8x8xi32, #tpu.memory_space<vmem>>, vector<1x8x1xi32>
    %143 = vector.shape_cast %142 : vector<1x8x1xi32> to vector<8x1xi32>
    %144 = vector.broadcast %143 : vector<8x1xi32> to vector<8x128xi32>
    %145 = arith.cmpi eq, %144, %3 : vector<8x128xi32>
    %146 = arith.extui %145 : vector<8x128xi1> to vector<8x128xi32>
    %147 = arith.sitofp %146 : vector<8x128xi32> to vector<8x128xf32>
    %148 = arith.truncf %147 : vector<8x128xf32> to vector<8x128xbf16>
    %cst_45 = arith.constant dense<0.000000e+00> : vector<8x384xf32>
    %149 = tpu.matmul %148, %4, %cst_45 {dimension_numbers = #tpu.dot_dimension_numbers<[1], [0], [0], [1], [0, 0, 1, 1], [], []>} : vector<8x128xbf16>, vector<128x384xbf16>, vector<8x384xf32> -> vector<8x384xf32>
    %150 = arith.addf %149, %10 : vector<8x384xf32>
    %151 = arith.truncf %137 : vector<8x128xf32> to vector<8x128xbf16>
    %cst_46 = arith.constant dense<0.000000e+00> : vector<8x384xf32>
    %152 = tpu.matmul %151, %6, %cst_46 {dimension_numbers = #tpu.dot_dimension_numbers<[1], [0], [0], [1], [0, 0, 1, 1], [], []>} : vector<8x128xbf16>, vector<128x384xbf16>, vector<8x384xf32> -> vector<8x384xf32>
    %153 = vector.extract_strided_slice %150 {offsets = [0, 0], sizes = [8, 128], strides = [1, 1]} : vector<8x384xf32> to vector<8x128xf32>
    %154 = vector.extract_strided_slice %152 {offsets = [0, 0], sizes = [8, 128], strides = [1, 1]} : vector<8x384xf32> to vector<8x128xf32>
    %155 = arith.addf %153, %154 : vector<8x128xf32>
    %156 = arith.negf %155 : vector<8x128xf32>
    %157 = math.exp %156 : vector<8x128xf32>
    %cst_47 = arith.constant 1.000000e+00 : f32
    %158 = vector.broadcast %cst_47 : f32 to vector<8x128xf32>
    %159 = arith.addf %158, %157 : vector<8x128xf32>
    %160 = arith.divf %158, %159 : vector<8x128xf32>
    %161 = vector.extract_strided_slice %150 {offsets = [0, 128], sizes = [8, 128], strides = [1, 1]} : vector<8x384xf32> to vector<8x128xf32>
    %162 = vector.extract_strided_slice %152 {offsets = [0, 128], sizes = [8, 128], strides = [1, 1]} : vector<8x384xf32> to vector<8x128xf32>
    %163 = arith.addf %161, %162 : vector<8x128xf32>
    %164 = arith.negf %163 : vector<8x128xf32>
    %165 = math.exp %164 : vector<8x128xf32>
    %cst_48 = arith.constant 1.000000e+00 : f32
    %166 = vector.broadcast %cst_48 : f32 to vector<8x128xf32>
    %167 = arith.addf %166, %165 : vector<8x128xf32>
    %168 = arith.divf %166, %167 : vector<8x128xf32>
    %169 = vector.extract_strided_slice %150 {offsets = [0, 256], sizes = [8, 128], strides = [1, 1]} : vector<8x384xf32> to vector<8x128xf32>
    %170 = vector.extract_strided_slice %152 {offsets = [0, 256], sizes = [8, 128], strides = [1, 1]} : vector<8x384xf32> to vector<8x128xf32>
    %171 = arith.addf %170, %14 : vector<8x128xf32>
    %172 = arith.mulf %160, %171 : vector<8x128xf32>
    %173 = arith.addf %169, %172 : vector<8x128xf32>
    %174 = math.tanh %173 : vector<8x128xf32>
    %cst_49 = arith.constant 1.000000e+00 : f32
    %175 = vector.broadcast %cst_49 : f32 to vector<8x128xf32>
    %176 = arith.subf %175, %168 : vector<8x128xf32>
    %177 = arith.mulf %176, %174 : vector<8x128xf32>
    %178 = arith.mulf %168, %137 : vector<8x128xf32>
    %179 = arith.addf %177, %178 : vector<8x128xf32>
    %180 = arith.truncf %179 : vector<8x128xf32> to vector<8x128xbf16>
    %c3_50 = arith.constant 3 : index
    %c0_51 = arith.constant 0 : index
    %c0_52 = arith.constant 0 : index
    %181 = vector.load %arg11[%c3_50, %c0_51, %c0_52] : memref<8x8x128xbf16, #tpu.memory_space<vmem>>, vector<1x8x128xbf16>
    %182 = vector.shape_cast %181 : vector<1x8x128xbf16> to vector<8x128xbf16>
    %183 = vector.shape_cast %180 : vector<8x128xbf16> to vector<1x8x128xbf16>
    tpu.vector_store %arg11[%c3_50, %c0_51, %c0_52], %183 {strides = array<i32>} : memref<8x8x128xbf16, #tpu.memory_space<vmem>>, vector<1x8x128xbf16>,
    %c0_53 = arith.constant 0 : index
    %c0_54 = arith.constant 0 : index
    %c4 = arith.constant 4 : index
    %184 = vector.load %arg1[%c0_53, %c0_54, %c4] : memref<1x8x8xi32, #tpu.memory_space<vmem>>, vector<1x8x1xi32>
    %185 = vector.shape_cast %184 : vector<1x8x1xi32> to vector<8x1xi32>
    %186 = vector.broadcast %185 : vector<8x1xi32> to vector<8x128xi32>
    %187 = arith.cmpi eq, %186, %3 : vector<8x128xi32>
    %188 = arith.extui %187 : vector<8x128xi1> to vector<8x128xi32>
    %189 = arith.sitofp %188 : vector<8x128xi32> to vector<8x128xf32>
    %190 = arith.truncf %189 : vector<8x128xf32> to vector<8x128xbf16>
    %cst_55 = arith.constant dense<0.000000e+00> : vector<8x384xf32>
    %191 = tpu.matmul %190, %4, %cst_55 {dimension_numbers = #tpu.dot_dimension_numbers<[1], [0], [0], [1], [0, 0, 1, 1], [], []>} : vector<8x128xbf16>, vector<128x384xbf16>, vector<8x384xf32> -> vector<8x384xf32>
    %192 = arith.addf %191, %10 : vector<8x384xf32>
    %193 = arith.truncf %179 : vector<8x128xf32> to vector<8x128xbf16>
    %cst_56 = arith.constant dense<0.000000e+00> : vector<8x384xf32>
    %194 = tpu.matmul %193, %6, %cst_56 {dimension_numbers = #tpu.dot_dimension_numbers<[1], [0], [0], [1], [0, 0, 1, 1], [], []>} : vector<8x128xbf16>, vector<128x384xbf16>, vector<8x384xf32> -> vector<8x384xf32>
    %195 = vector.extract_strided_slice %192 {offsets = [0, 0], sizes = [8, 128], strides = [1, 1]} : vector<8x384xf32> to vector<8x128xf32>
    %196 = vector.extract_strided_slice %194 {offsets = [0, 0], sizes = [8, 128], strides = [1, 1]} : vector<8x384xf32> to vector<8x128xf32>
    %197 = arith.addf %195, %196 : vector<8x128xf32>
    %198 = arith.negf %197 : vector<8x128xf32>
    %199 = math.exp %198 : vector<8x128xf32>
    %cst_57 = arith.constant 1.000000e+00 : f32
    %200 = vector.broadcast %cst_57 : f32 to vector<8x128xf32>
    %201 = arith.addf %200, %199 : vector<8x128xf32>
    %202 = arith.divf %200, %201 : vector<8x128xf32>
    %203 = vector.extract_strided_slice %192 {offsets = [0, 128], sizes = [8, 128], strides = [1, 1]} : vector<8x384xf32> to vector<8x128xf32>
    %204 = vector.extract_strided_slice %194 {offsets = [0, 128], sizes = [8, 128], strides = [1, 1]} : vector<8x384xf32> to vector<8x128xf32>
    %205 = arith.addf %203, %204 : vector<8x128xf32>
    %206 = arith.negf %205 : vector<8x128xf32>
    %207 = math.exp %206 : vector<8x128xf32>
    %cst_58 = arith.constant 1.000000e+00 : f32
    %208 = vector.broadcast %cst_58 : f32 to vector<8x128xf32>
    %209 = arith.addf %208, %207 : vector<8x128xf32>
    %210 = arith.divf %208, %209 : vector<8x128xf32>
    %211 = vector.extract_strided_slice %192 {offsets = [0, 256], sizes = [8, 128], strides = [1, 1]} : vector<8x384xf32> to vector<8x128xf32>
    %212 = vector.extract_strided_slice %194 {offsets = [0, 256], sizes = [8, 128], strides = [1, 1]} : vector<8x384xf32> to vector<8x128xf32>
    %213 = arith.addf %212, %14 : vector<8x128xf32>
    %214 = arith.mulf %202, %213 : vector<8x128xf32>
    %215 = arith.addf %211, %214 : vector<8x128xf32>
    %216 = math.tanh %215 : vector<8x128xf32>
    %cst_59 = arith.constant 1.000000e+00 : f32
    %217 = vector.broadcast %cst_59 : f32 to vector<8x128xf32>
    %218 = arith.subf %217, %210 : vector<8x128xf32>
    %219 = arith.mulf %218, %216 : vector<8x128xf32>
    %220 = arith.mulf %210, %179 : vector<8x128xf32>
    %221 = arith.addf %219, %220 : vector<8x128xf32>
    %222 = arith.truncf %221 : vector<8x128xf32> to vector<8x128xbf16>
    %c4_60 = arith.constant 4 : index
    %c0_61 = arith.constant 0 : index
    %c0_62 = arith.constant 0 : index
    %223 = vector.load %arg11[%c4_60, %c0_61, %c0_62] : memref<8x8x128xbf16, #tpu.memory_space<vmem>>, vector<1x8x128xbf16>
    %224 = vector.shape_cast %223 : vector<1x8x128xbf16> to vector<8x128xbf16>
    %225 = vector.shape_cast %222 : vector<8x128xbf16> to vector<1x8x128xbf16>
    tpu.vector_store %arg11[%c4_60, %c0_61, %c0_62], %225 {strides = array<i32>} : memref<8x8x128xbf16, #tpu.memory_space<vmem>>, vector<1x8x128xbf16>,
    %c0_63 = arith.constant 0 : index
    %c0_64 = arith.constant 0 : index
    %c5 = arith.constant 5 : index
    %226 = vector.load %arg1[%c0_63, %c0_64, %c5] : memref<1x8x8xi32, #tpu.memory_space<vmem>>, vector<1x8x1xi32>
    %227 = vector.shape_cast %226 : vector<1x8x1xi32> to vector<8x1xi32>
    %228 = vector.broadcast %227 : vector<8x1xi32> to vector<8x128xi32>
    %229 = arith.cmpi eq, %228, %3 : vector<8x128xi32>
    %230 = arith.extui %229 : vector<8x128xi1> to vector<8x128xi32>
    %231 = arith.sitofp %230 : vector<8x128xi32> to vector<8x128xf32>
    %232 = arith.truncf %231 : vector<8x128xf32> to vector<8x128xbf16>
    %cst_65 = arith.constant dense<0.000000e+00> : vector<8x384xf32>
    %233 = tpu.matmul %232, %4, %cst_65 {dimension_numbers = #tpu.dot_dimension_numbers<[1], [0], [0], [1], [0, 0, 1, 1], [], []>} : vector<8x128xbf16>, vector<128x384xbf16>, vector<8x384xf32> -> vector<8x384xf32>
    %234 = arith.addf %233, %10 : vector<8x384xf32>
    %235 = arith.truncf %221 : vector<8x128xf32> to vector<8x128xbf16>
    %cst_66 = arith.constant dense<0.000000e+00> : vector<8x384xf32>
    %236 = tpu.matmul %235, %6, %cst_66 {dimension_numbers = #tpu.dot_dimension_numbers<[1], [0], [0], [1], [0, 0, 1, 1], [], []>} : vector<8x128xbf16>, vector<128x384xbf16>, vector<8x384xf32> -> vector<8x384xf32>
    %237 = vector.extract_strided_slice %234 {offsets = [0, 0], sizes = [8, 128], strides = [1, 1]} : vector<8x384xf32> to vector<8x128xf32>
    %238 = vector.extract_strided_slice %236 {offsets = [0, 0], sizes = [8, 128], strides = [1, 1]} : vector<8x384xf32> to vector<8x128xf32>
    %239 = arith.addf %237, %238 : vector<8x128xf32>
    %240 = arith.negf %239 : vector<8x128xf32>
    %241 = math.exp %240 : vector<8x128xf32>
    %cst_67 = arith.constant 1.000000e+00 : f32
    %242 = vector.broadcast %cst_67 : f32 to vector<8x128xf32>
    %243 = arith.addf %242, %241 : vector<8x128xf32>
    %244 = arith.divf %242, %243 : vector<8x128xf32>
    %245 = vector.extract_strided_slice %234 {offsets = [0, 128], sizes = [8, 128], strides = [1, 1]} : vector<8x384xf32> to vector<8x128xf32>
    %246 = vector.extract_strided_slice %236 {offsets = [0, 128], sizes = [8, 128], strides = [1, 1]} : vector<8x384xf32> to vector<8x128xf32>
    %247 = arith.addf %245, %246 : vector<8x128xf32>
    %248 = arith.negf %247 : vector<8x128xf32>
    %249 = math.exp %248 : vector<8x128xf32>
    %cst_68 = arith.constant 1.000000e+00 : f32
    %250 = vector.broadcast %cst_68 : f32 to vector<8x128xf32>
    %251 = arith.addf %250, %249 : vector<8x128xf32>
    %252 = arith.divf %250, %251 : vector<8x128xf32>
    %253 = vector.extract_strided_slice %234 {offsets = [0, 256], sizes = [8, 128], strides = [1, 1]} : vector<8x384xf32> to vector<8x128xf32>
    %254 = vector.extract_strided_slice %236 {offsets = [0, 256], sizes = [8, 128], strides = [1, 1]} : vector<8x384xf32> to vector<8x128xf32>
    %255 = arith.addf %254, %14 : vector<8x128xf32>
    %256 = arith.mulf %244, %255 : vector<8x128xf32>
    %257 = arith.addf %253, %256 : vector<8x128xf32>
    %258 = math.tanh %257 : vector<8x128xf32>
    %cst_69 = arith.constant 1.000000e+00 : f32
    %259 = vector.broadcast %cst_69 : f32 to vector<8x128xf32>
    %260 = arith.subf %259, %252 : vector<8x128xf32>
    %261 = arith.mulf %260, %258 : vector<8x128xf32>
    %262 = arith.mulf %252, %221 : vector<8x128xf32>
    %263 = arith.addf %261, %262 : vector<8x128xf32>
    %264 = arith.truncf %263 : vector<8x128xf32> to vector<8x128xbf16>
    %c5_70 = arith.constant 5 : index
    %c0_71 = arith.constant 0 : index
    %c0_72 = arith.constant 0 : index
    %265 = vector.load %arg11[%c5_70, %c0_71, %c0_72] : memref<8x8x128xbf16, #tpu.memory_space<vmem>>, vector<1x8x128xbf16>
    %266 = vector.shape_cast %265 : vector<1x8x128xbf16> to vector<8x128xbf16>
    %267 = vector.shape_cast %264 : vector<8x128xbf16> to vector<1x8x128xbf16>
    tpu.vector_store %arg11[%c5_70, %c0_71, %c0_72], %267 {strides = array<i32>} : memref<8x8x128xbf16, #tpu.memory_space<vmem>>, vector<1x8x128xbf16>,
    %c0_73 = arith.constant 0 : index
    %c0_74 = arith.constant 0 : index
    %c6 = arith.constant 6 : index
    %268 = vector.load %arg1[%c0_73, %c0_74, %c6] : memref<1x8x8xi32, #tpu.memory_space<vmem>>, vector<1x8x1xi32>
    %269 = vector.shape_cast %268 : vector<1x8x1xi32> to vector<8x1xi32>
    %270 = vector.broadcast %269 : vector<8x1xi32> to vector<8x128xi32>
    %271 = arith.cmpi eq, %270, %3 : vector<8x128xi32>
    %272 = arith.extui %271 : vector<8x128xi1> to vector<8x128xi32>
    %273 = arith.sitofp %272 : vector<8x128xi32> to vector<8x128xf32>
    %274 = arith.truncf %273 : vector<8x128xf32> to vector<8x128xbf16>
    %cst_75 = arith.constant dense<0.000000e+00> : vector<8x384xf32>
    %275 = tpu.matmul %274, %4, %cst_75 {dimension_numbers = #tpu.dot_dimension_numbers<[1], [0], [0], [1], [0, 0, 1, 1], [], []>} : vector<8x128xbf16>, vector<128x384xbf16>, vector<8x384xf32> -> vector<8x384xf32>
    %276 = arith.addf %275, %10 : vector<8x384xf32>
    %277 = arith.truncf %263 : vector<8x128xf32> to vector<8x128xbf16>
    %cst_76 = arith.constant dense<0.000000e+00> : vector<8x384xf32>
    %278 = tpu.matmul %277, %6, %cst_76 {dimension_numbers = #tpu.dot_dimension_numbers<[1], [0], [0], [1], [0, 0, 1, 1], [], []>} : vector<8x128xbf16>, vector<128x384xbf16>, vector<8x384xf32> -> vector<8x384xf32>
    %279 = vector.extract_strided_slice %276 {offsets = [0, 0], sizes = [8, 128], strides = [1, 1]} : vector<8x384xf32> to vector<8x128xf32>
    %280 = vector.extract_strided_slice %278 {offsets = [0, 0], sizes = [8, 128], strides = [1, 1]} : vector<8x384xf32> to vector<8x128xf32>
    %281 = arith.addf %279, %280 : vector<8x128xf32>
    %282 = arith.negf %281 : vector<8x128xf32>
    %283 = math.exp %282 : vector<8x128xf32>
    %cst_77 = arith.constant 1.000000e+00 : f32
    %284 = vector.broadcast %cst_77 : f32 to vector<8x128xf32>
    %285 = arith.addf %284, %283 : vector<8x128xf32>
    %286 = arith.divf %284, %285 : vector<8x128xf32>
    %287 = vector.extract_strided_slice %276 {offsets = [0, 128], sizes = [8, 128], strides = [1, 1]} : vector<8x384xf32> to vector<8x128xf32>
    %288 = vector.extract_strided_slice %278 {offsets = [0, 128], sizes = [8, 128], strides = [1, 1]} : vector<8x384xf32> to vector<8x128xf32>
    %289 = arith.addf %287, %288 : vector<8x128xf32>
    %290 = arith.negf %289 : vector<8x128xf32>
    %291 = math.exp %290 : vector<8x128xf32>
    %cst_78 = arith.constant 1.000000e+00 : f32
    %292 = vector.broadcast %cst_78 : f32 to vector<8x128xf32>
    %293 = arith.addf %292, %291 : vector<8x128xf32>
    %294 = arith.divf %292, %293 : vector<8x128xf32>
    %295 = vector.extract_strided_slice %276 {offsets = [0, 256], sizes = [8, 128], strides = [1, 1]} : vector<8x384xf32> to vector<8x128xf32>
    %296 = vector.extract_strided_slice %278 {offsets = [0, 256], sizes = [8, 128], strides = [1, 1]} : vector<8x384xf32> to vector<8x128xf32>
    %297 = arith.addf %296, %14 : vector<8x128xf32>
    %298 = arith.mulf %286, %297 : vector<8x128xf32>
    %299 = arith.addf %295, %298 : vector<8x128xf32>
    %300 = math.tanh %299 : vector<8x128xf32>
    %cst_79 = arith.constant 1.000000e+00 : f32
    %301 = vector.broadcast %cst_79 : f32 to vector<8x128xf32>
    %302 = arith.subf %301, %294 : vector<8x128xf32>
    %303 = arith.mulf %302, %300 : vector<8x128xf32>
    %304 = arith.mulf %294, %263 : vector<8x128xf32>
    %305 = arith.addf %303, %304 : vector<8x128xf32>
    %306 = arith.truncf %305 : vector<8x128xf32> to vector<8x128xbf16>
    %c6_80 = arith.constant 6 : index
    %c0_81 = arith.constant 0 : index
    %c0_82 = arith.constant 0 : index
    %307 = vector.load %arg11[%c6_80, %c0_81, %c0_82] : memref<8x8x128xbf16, #tpu.memory_space<vmem>>, vector<1x8x128xbf16>
    %308 = vector.shape_cast %307 : vector<1x8x128xbf16> to vector<8x128xbf16>
    %309 = vector.shape_cast %306 : vector<8x128xbf16> to vector<1x8x128xbf16>
    tpu.vector_store %arg11[%c6_80, %c0_81, %c0_82], %309 {strides = array<i32>} : memref<8x8x128xbf16, #tpu.memory_space<vmem>>, vector<1x8x128xbf16>,
    %c0_83 = arith.constant 0 : index
    %c0_84 = arith.constant 0 : index
    %c7 = arith.constant 7 : index
    %310 = vector.load %arg1[%c0_83, %c0_84, %c7] : memref<1x8x8xi32, #tpu.memory_space<vmem>>, vector<1x8x1xi32>
    %311 = vector.shape_cast %310 : vector<1x8x1xi32> to vector<8x1xi32>
    %312 = vector.broadcast %311 : vector<8x1xi32> to vector<8x128xi32>
    %313 = arith.cmpi eq, %312, %3 : vector<8x128xi32>
    %314 = arith.extui %313 : vector<8x128xi1> to vector<8x128xi32>
    %315 = arith.sitofp %314 : vector<8x128xi32> to vector<8x128xf32>
    %316 = arith.truncf %315 : vector<8x128xf32> to vector<8x128xbf16>
    %cst_85 = arith.constant dense<0.000000e+00> : vector<8x384xf32>
    %317 = tpu.matmul %316, %4, %cst_85 {dimension_numbers = #tpu.dot_dimension_numbers<[1], [0], [0], [1], [0, 0, 1, 1], [], []>} : vector<8x128xbf16>, vector<128x384xbf16>, vector<8x384xf32> -> vector<8x384xf32>
    %318 = arith.addf %317, %10 : vector<8x384xf32>
    %319 = arith.truncf %305 : vector<8x128xf32> to vector<8x128xbf16>
    %cst_86 = arith.constant dense<0.000000e+00> : vector<8x384xf32>
    %320 = tpu.matmul %319, %6, %cst_86 {dimension_numbers = #tpu.dot_dimension_numbers<[1], [0], [0], [1], [0, 0, 1, 1], [], []>} : vector<8x128xbf16>, vector<128x384xbf16>, vector<8x384xf32> -> vector<8x384xf32>
    %321 = vector.extract_strided_slice %318 {offsets = [0, 0], sizes = [8, 128], strides = [1, 1]} : vector<8x384xf32> to vector<8x128xf32>
    %322 = vector.extract_strided_slice %320 {offsets = [0, 0], sizes = [8, 128], strides = [1, 1]} : vector<8x384xf32> to vector<8x128xf32>
    %323 = arith.addf %321, %322 : vector<8x128xf32>
    %324 = arith.negf %323 : vector<8x128xf32>
    %325 = math.exp %324 : vector<8x128xf32>
    %cst_87 = arith.constant 1.000000e+00 : f32
    %326 = vector.broadcast %cst_87 : f32 to vector<8x128xf32>
    %327 = arith.addf %326, %325 : vector<8x128xf32>
    %328 = arith.divf %326, %327 : vector<8x128xf32>
    %329 = vector.extract_strided_slice %318 {offsets = [0, 128], sizes = [8, 128], strides = [1, 1]} : vector<8x384xf32> to vector<8x128xf32>
    %330 = vector.extract_strided_slice %320 {offsets = [0, 128], sizes = [8, 128], strides = [1, 1]} : vector<8x384xf32> to vector<8x128xf32>
    %331 = arith.addf %329, %330 : vector<8x128xf32>
    %332 = arith.negf %331 : vector<8x128xf32>
    %333 = math.exp %332 : vector<8x128xf32>
    %cst_88 = arith.constant 1.000000e+00 : f32
    %334 = vector.broadcast %cst_88 : f32 to vector<8x128xf32>
    %335 = arith.addf %334, %333 : vector<8x128xf32>
    %336 = arith.divf %334, %335 : vector<8x128xf32>
    %337 = vector.extract_strided_slice %318 {offsets = [0, 256], sizes = [8, 128], strides = [1, 1]} : vector<8x384xf32> to vector<8x128xf32>
    %338 = vector.extract_strided_slice %320 {offsets = [0, 256], sizes = [8, 128], strides = [1, 1]} : vector<8x384xf32> to vector<8x128xf32>
    %339 = arith.addf %338, %14 : vector<8x128xf32>
    %340 = arith.mulf %328, %339 : vector<8x128xf32>
    %341 = arith.addf %337, %340 : vector<8x128xf32>
    %342 = math.tanh %341 : vector<8x128xf32>
    %cst_89 = arith.constant 1.000000e+00 : f32
    %343 = vector.broadcast %cst_89 : f32 to vector<8x128xf32>
    %344 = arith.subf %343, %336 : vector<8x128xf32>
    %345 = arith.mulf %344, %342 : vector<8x128xf32>
    %346 = arith.mulf %336, %305 : vector<8x128xf32>
    %347 = arith.addf %345, %346 : vector<8x128xf32>
    %348 = arith.truncf %347 : vector<8x128xf32> to vector<8x128xbf16>
    %c7_90 = arith.constant 7 : index
    %c0_91 = arith.constant 0 : index
    %c0_92 = arith.constant 0 : index
    %349 = vector.load %arg11[%c7_90, %c0_91, %c0_92] : memref<8x8x128xbf16, #tpu.memory_space<vmem>>, vector<1x8x128xbf16>
    %350 = vector.shape_cast %349 : vector<1x8x128xbf16> to vector<8x128xbf16>
    %351 = vector.shape_cast %348 : vector<8x128xbf16> to vector<1x8x128xbf16>
    tpu.vector_store %arg11[%c7_90, %c0_91, %c0_92], %351 {strides = array<i32>} : memref<8x8x128xbf16, #tpu.memory_space<vmem>>, vector<1x8x128xbf16>,
    %c0_93 = arith.constant 0 : index
    %c0_94 = arith.constant 0 : index
    %c0_95 = arith.constant 0 : index
    %352 = vector.load %arg3[%c0_93, %c0_94, %c0_95] : memref<2x128x384xbf16, #tpu.memory_space<vmem>>, vector<1x128x384xbf16>
    %353 = vector.shape_cast %352 : vector<1x128x384xbf16> to vector<128x384xbf16>
    %c1_96 = arith.constant 1 : index
    %c0_97 = arith.constant 0 : index
    %c0_98 = arith.constant 0 : index
    %354 = vector.load %arg4[%c1_96, %c0_97, %c0_98] : memref<3x128x384xbf16, #tpu.memory_space<vmem>>, vector<1x128x384xbf16>
    %355 = vector.shape_cast %354 : vector<1x128x384xbf16> to vector<128x384xbf16>
    %c1_99 = arith.constant 1 : index
    %c0_100 = arith.constant 0 : index
    %c0_101 = arith.constant 0 : index
    %356 = vector.load %arg5[%c1_99, %c0_100, %c0_101] : memref<3x1x384xf32, #tpu.memory_space<vmem>>, vector<1x1x384xf32>
    %357 = vector.shape_cast %356 : vector<1x1x384xf32> to vector<1x384xf32>
    %358 = vector.shape_cast %357 : vector<1x384xf32> to vector<1x384xf32>
    %359 = vector.broadcast %358 : vector<1x384xf32> to vector<8x384xf32>
    %c1_102 = arith.constant 1 : index
    %c0_103 = arith.constant 0 : index
    %c0_104 = arith.constant 0 : index
    %360 = vector.load %arg6[%c1_102, %c0_103, %c0_104] : memref<3x1x128xf32, #tpu.memory_space<vmem>>, vector<1x1x128xf32>
    %361 = vector.shape_cast %360 : vector<1x1x128xf32> to vector<1x128xf32>
    %362 = vector.shape_cast %361 : vector<1x128xf32> to vector<1x128xf32>
    %363 = vector.broadcast %362 : vector<1x128xf32> to vector<8x128xf32>
    %cst_105 = arith.constant 0.000000e+00 : f32
    %364 = vector.broadcast %cst_105 : f32 to vector<8x128xf32>
    %c0_i32 = arith.constant 0 : i32
    %365 = arith.index_cast %c0_i32 : i32 to index
    %c0_106 = arith.constant 0 : index
    %c0_107 = arith.constant 0 : index
    %366 = vector.load %arg11[%365, %c0_106, %c0_107] : memref<8x8x128xbf16, #tpu.memory_space<vmem>>, vector<1x8x128xbf16>
    %367 = vector.shape_cast %366 : vector<1x8x128xbf16> to vector<8x128xbf16>
    %cst_108 = arith.constant dense<0.000000e+00> : vector<8x384xf32>
    %368 = tpu.matmul %367, %353, %cst_108 {dimension_numbers = #tpu.dot_dimension_numbers<[1], [0], [0], [1], [0, 0, 1, 1], [], []>} : vector<8x128xbf16>, vector<128x384xbf16>, vector<8x384xf32> -> vector<8x384xf32>
    %369 = arith.addf %368, %359 : vector<8x384xf32>
    %370 = arith.truncf %364 : vector<8x128xf32> to vector<8x128xbf16>
    %cst_109 = arith.constant dense<0.000000e+00> : vector<8x384xf32>
    %371 = tpu.matmul %370, %355, %cst_109 {dimension_numbers = #tpu.dot_dimension_numbers<[1], [0], [0], [1], [0, 0, 1, 1], [], []>} : vector<8x128xbf16>, vector<128x384xbf16>, vector<8x384xf32> -> vector<8x384xf32>
    %372 = vector.extract_strided_slice %369 {offsets = [0, 0], sizes = [8, 128], strides = [1, 1]} : vector<8x384xf32> to vector<8x128xf32>
    %373 = vector.extract_strided_slice %371 {offsets = [0, 0], sizes = [8, 128], strides = [1, 1]} : vector<8x384xf32> to vector<8x128xf32>
    %374 = arith.addf %372, %373 : vector<8x128xf32>
    %375 = arith.negf %374 : vector<8x128xf32>
    %376 = math.exp %375 : vector<8x128xf32>
    %cst_110 = arith.constant 1.000000e+00 : f32
    %377 = vector.broadcast %cst_110 : f32 to vector<8x128xf32>
    %378 = arith.addf %377, %376 : vector<8x128xf32>
    %379 = arith.divf %377, %378 : vector<8x128xf32>
    %380 = vector.extract_strided_slice %369 {offsets = [0, 128], sizes = [8, 128], strides = [1, 1]} : vector<8x384xf32> to vector<8x128xf32>
    %381 = vector.extract_strided_slice %371 {offsets = [0, 128], sizes = [8, 128], strides = [1, 1]} : vector<8x384xf32> to vector<8x128xf32>
    %382 = arith.addf %380, %381 : vector<8x128xf32>
    %383 = arith.negf %382 : vector<8x128xf32>
    %384 = math.exp %383 : vector<8x128xf32>
    %cst_111 = arith.constant 1.000000e+00 : f32
    %385 = vector.broadcast %cst_111 : f32 to vector<8x128xf32>
    %386 = arith.addf %385, %384 : vector<8x128xf32>
    %387 = arith.divf %385, %386 : vector<8x128xf32>
    %388 = vector.extract_strided_slice %369 {offsets = [0, 256], sizes = [8, 128], strides = [1, 1]} : vector<8x384xf32> to vector<8x128xf32>
    %389 = vector.extract_strided_slice %371 {offsets = [0, 256], sizes = [8, 128], strides = [1, 1]} : vector<8x384xf32> to vector<8x128xf32>
    %390 = arith.addf %389, %363 : vector<8x128xf32>
    %391 = arith.mulf %379, %390 : vector<8x128xf32>
    %392 = arith.addf %388, %391 : vector<8x128xf32>
    %393 = math.tanh %392 : vector<8x128xf32>
    %cst_112 = arith.constant 1.000000e+00 : f32
    %394 = vector.broadcast %cst_112 : f32 to vector<8x128xf32>
    %395 = arith.subf %394, %387 : vector<8x128xf32>
    %396 = arith.mulf %395, %393 : vector<8x128xf32>
    %397 = arith.mulf %387, %364 : vector<8x128xf32>
    %398 = arith.addf %396, %397 : vector<8x128xf32>
    %399 = arith.truncf %398 : vector<8x128xf32> to vector<8x128xbf16>
    %400 = arith.index_cast %c0_i32 : i32 to index
    %c0_113 = arith.constant 0 : index
    %c0_114 = arith.constant 0 : index
    %401 = vector.load %arg11[%400, %c0_113, %c0_114] : memref<8x8x128xbf16, #tpu.memory_space<vmem>>, vector<1x8x128xbf16>
    %402 = vector.shape_cast %401 : vector<1x8x128xbf16> to vector<8x128xbf16>
    %403 = vector.shape_cast %399 : vector<8x128xbf16> to vector<1x8x128xbf16>
    tpu.vector_store %arg11[%400, %c0_113, %c0_114], %403 {strides = array<i32>} : memref<8x8x128xbf16, #tpu.memory_space<vmem>>, vector<1x8x128xbf16>,
    %c1_i32 = arith.constant 1 : i32
    %404 = arith.index_cast %c1_i32 : i32 to index
    %c0_115 = arith.constant 0 : index
    %c0_116 = arith.constant 0 : index
    %405 = vector.load %arg11[%404, %c0_115, %c0_116] : memref<8x8x128xbf16, #tpu.memory_space<vmem>>, vector<1x8x128xbf16>
    %406 = vector.shape_cast %405 : vector<1x8x128xbf16> to vector<8x128xbf16>
    %cst_117 = arith.constant dense<0.000000e+00> : vector<8x384xf32>
    %407 = tpu.matmul %406, %353, %cst_117 {dimension_numbers = #tpu.dot_dimension_numbers<[1], [0], [0], [1], [0, 0, 1, 1], [], []>} : vector<8x128xbf16>, vector<128x384xbf16>, vector<8x384xf32> -> vector<8x384xf32>
    %408 = arith.addf %407, %359 : vector<8x384xf32>
    %409 = arith.truncf %398 : vector<8x128xf32> to vector<8x128xbf16>
    %cst_118 = arith.constant dense<0.000000e+00> : vector<8x384xf32>
    %410 = tpu.matmul %409, %355, %cst_118 {dimension_numbers = #tpu.dot_dimension_numbers<[1], [0], [0], [1], [0, 0, 1, 1], [], []>} : vector<8x128xbf16>, vector<128x384xbf16>, vector<8x384xf32> -> vector<8x384xf32>
    %411 = vector.extract_strided_slice %408 {offsets = [0, 0], sizes = [8, 128], strides = [1, 1]} : vector<8x384xf32> to vector<8x128xf32>
    %412 = vector.extract_strided_slice %410 {offsets = [0, 0], sizes = [8, 128], strides = [1, 1]} : vector<8x384xf32> to vector<8x128xf32>
    %413 = arith.addf %411, %412 : vector<8x128xf32>
    %414 = arith.negf %413 : vector<8x128xf32>
    %415 = math.exp %414 : vector<8x128xf32>
    %cst_119 = arith.constant 1.000000e+00 : f32
    %416 = vector.broadcast %cst_119 : f32 to vector<8x128xf32>
    %417 = arith.addf %416, %415 : vector<8x128xf32>
    %418 = arith.divf %416, %417 : vector<8x128xf32>
    %419 = vector.extract_strided_slice %408 {offsets = [0, 128], sizes = [8, 128], strides = [1, 1]} : vector<8x384xf32> to vector<8x128xf32>
    %420 = vector.extract_strided_slice %410 {offsets = [0, 128], sizes = [8, 128], strides = [1, 1]} : vector<8x384xf32> to vector<8x128xf32>
    %421 = arith.addf %419, %420 : vector<8x128xf32>
    %422 = arith.negf %421 : vector<8x128xf32>
    %423 = math.exp %422 : vector<8x128xf32>
    %cst_120 = arith.constant 1.000000e+00 : f32
    %424 = vector.broadcast %cst_120 : f32 to vector<8x128xf32>
    %425 = arith.addf %424, %423 : vector<8x128xf32>
    %426 = arith.divf %424, %425 : vector<8x128xf32>
    %427 = vector.extract_strided_slice %408 {offsets = [0, 256], sizes = [8, 128], strides = [1, 1]} : vector<8x384xf32> to vector<8x128xf32>
    %428 = vector.extract_strided_slice %410 {offsets = [0, 256], sizes = [8, 128], strides = [1, 1]} : vector<8x384xf32> to vector<8x128xf32>
    %429 = arith.addf %428, %363 : vector<8x128xf32>
    %430 = arith.mulf %418, %429 : vector<8x128xf32>
    %431 = arith.addf %427, %430 : vector<8x128xf32>
    %432 = math.tanh %431 : vector<8x128xf32>
    %cst_121 = arith.constant 1.000000e+00 : f32
    %433 = vector.broadcast %cst_121 : f32 to vector<8x128xf32>
    %434 = arith.subf %433, %426 : vector<8x128xf32>
    %435 = arith.mulf %434, %432 : vector<8x128xf32>
    %436 = arith.mulf %426, %398 : vector<8x128xf32>
    %437 = arith.addf %435, %436 : vector<8x128xf32>
    %438 = arith.truncf %437 : vector<8x128xf32> to vector<8x128xbf16>
    %439 = arith.index_cast %c1_i32 : i32 to index
    %c0_122 = arith.constant 0 : index
    %c0_123 = arith.constant 0 : index
    %440 = vector.load %arg11[%439, %c0_122, %c0_123] : memref<8x8x128xbf16, #tpu.memory_space<vmem>>, vector<1x8x128xbf16>
    %441 = vector.shape_cast %440 : vector<1x8x128xbf16> to vector<8x128xbf16>
    %442 = vector.shape_cast %438 : vector<8x128xbf16> to vector<1x8x128xbf16>
    tpu.vector_store %arg11[%439, %c0_122, %c0_123], %442 {strides = array<i32>} : memref<8x8x128xbf16, #tpu.memory_space<vmem>>, vector<1x8x128xbf16>,
    %c2_i32 = arith.constant 2 : i32
    %443 = arith.index_cast %c2_i32 : i32 to index
    %c0_124 = arith.constant 0 : index
    %c0_125 = arith.constant 0 : index
    %444 = vector.load %arg11[%443, %c0_124, %c0_125] : memref<8x8x128xbf16, #tpu.memory_space<vmem>>, vector<1x8x128xbf16>
    %445 = vector.shape_cast %444 : vector<1x8x128xbf16> to vector<8x128xbf16>
    %cst_126 = arith.constant dense<0.000000e+00> : vector<8x384xf32>
    %446 = tpu.matmul %445, %353, %cst_126 {dimension_numbers = #tpu.dot_dimension_numbers<[1], [0], [0], [1], [0, 0, 1, 1], [], []>} : vector<8x128xbf16>, vector<128x384xbf16>, vector<8x384xf32> -> vector<8x384xf32>
    %447 = arith.addf %446, %359 : vector<8x384xf32>
    %448 = arith.truncf %437 : vector<8x128xf32> to vector<8x128xbf16>
    %cst_127 = arith.constant dense<0.000000e+00> : vector<8x384xf32>
    %449 = tpu.matmul %448, %355, %cst_127 {dimension_numbers = #tpu.dot_dimension_numbers<[1], [0], [0], [1], [0, 0, 1, 1], [], []>} : vector<8x128xbf16>, vector<128x384xbf16>, vector<8x384xf32> -> vector<8x384xf32>
    %450 = vector.extract_strided_slice %447 {offsets = [0, 0], sizes = [8, 128], strides = [1, 1]} : vector<8x384xf32> to vector<8x128xf32>
    %451 = vector.extract_strided_slice %449 {offsets = [0, 0], sizes = [8, 128], strides = [1, 1]} : vector<8x384xf32> to vector<8x128xf32>
    %452 = arith.addf %450, %451 : vector<8x128xf32>
    %453 = arith.negf %452 : vector<8x128xf32>
    %454 = math.exp %453 : vector<8x128xf32>
    %cst_128 = arith.constant 1.000000e+00 : f32
    %455 = vector.broadcast %cst_128 : f32 to vector<8x128xf32>
    %456 = arith.addf %455, %454 : vector<8x128xf32>
    %457 = arith.divf %455, %456 : vector<8x128xf32>
    %458 = vector.extract_strided_slice %447 {offsets = [0, 128], sizes = [8, 128], strides = [1, 1]} : vector<8x384xf32> to vector<8x128xf32>
    %459 = vector.extract_strided_slice %449 {offsets = [0, 128], sizes = [8, 128], strides = [1, 1]} : vector<8x384xf32> to vector<8x128xf32>
    %460 = arith.addf %458, %459 : vector<8x128xf32>
    %461 = arith.negf %460 : vector<8x128xf32>
    %462 = math.exp %461 : vector<8x128xf32>
    %cst_129 = arith.constant 1.000000e+00 : f32
    %463 = vector.broadcast %cst_129 : f32 to vector<8x128xf32>
    %464 = arith.addf %463, %462 : vector<8x128xf32>
    %465 = arith.divf %463, %464 : vector<8x128xf32>
    %466 = vector.extract_strided_slice %447 {offsets = [0, 256], sizes = [8, 128], strides = [1, 1]} : vector<8x384xf32> to vector<8x128xf32>
    %467 = vector.extract_strided_slice %449 {offsets = [0, 256], sizes = [8, 128], strides = [1, 1]} : vector<8x384xf32> to vector<8x128xf32>
    %468 = arith.addf %467, %363 : vector<8x128xf32>
    %469 = arith.mulf %457, %468 : vector<8x128xf32>
    %470 = arith.addf %466, %469 : vector<8x128xf32>
    %471 = math.tanh %470 : vector<8x128xf32>
    %cst_130 = arith.constant 1.000000e+00 : f32
    %472 = vector.broadcast %cst_130 : f32 to vector<8x128xf32>
    %473 = arith.subf %472, %465 : vector<8x128xf32>
    %474 = arith.mulf %473, %471 : vector<8x128xf32>
    %475 = arith.mulf %465, %437 : vector<8x128xf32>
    %476 = arith.addf %474, %475 : vector<8x128xf32>
    %477 = arith.truncf %476 : vector<8x128xf32> to vector<8x128xbf16>
    %478 = arith.index_cast %c2_i32 : i32 to index
    %c0_131 = arith.constant 0 : index
    %c0_132 = arith.constant 0 : index
    %479 = vector.load %arg11[%478, %c0_131, %c0_132] : memref<8x8x128xbf16, #tpu.memory_space<vmem>>, vector<1x8x128xbf16>
    %480 = vector.shape_cast %479 : vector<1x8x128xbf16> to vector<8x128xbf16>
    %481 = vector.shape_cast %477 : vector<8x128xbf16> to vector<1x8x128xbf16>
    tpu.vector_store %arg11[%478, %c0_131, %c0_132], %481 {strides = array<i32>} : memref<8x8x128xbf16, #tpu.memory_space<vmem>>, vector<1x8x128xbf16>,
    %c3_i32 = arith.constant 3 : i32
    %482 = arith.index_cast %c3_i32 : i32 to index
    %c0_133 = arith.constant 0 : index
    %c0_134 = arith.constant 0 : index
    %483 = vector.load %arg11[%482, %c0_133, %c0_134] : memref<8x8x128xbf16, #tpu.memory_space<vmem>>, vector<1x8x128xbf16>
    %484 = vector.shape_cast %483 : vector<1x8x128xbf16> to vector<8x128xbf16>
    %cst_135 = arith.constant dense<0.000000e+00> : vector<8x384xf32>
    %485 = tpu.matmul %484, %353, %cst_135 {dimension_numbers = #tpu.dot_dimension_numbers<[1], [0], [0], [1], [0, 0, 1, 1], [], []>} : vector<8x128xbf16>, vector<128x384xbf16>, vector<8x384xf32> -> vector<8x384xf32>
    %486 = arith.addf %485, %359 : vector<8x384xf32>
    %487 = arith.truncf %476 : vector<8x128xf32> to vector<8x128xbf16>
    %cst_136 = arith.constant dense<0.000000e+00> : vector<8x384xf32>
    %488 = tpu.matmul %487, %355, %cst_136 {dimension_numbers = #tpu.dot_dimension_numbers<[1], [0], [0], [1], [0, 0, 1, 1], [], []>} : vector<8x128xbf16>, vector<128x384xbf16>, vector<8x384xf32> -> vector<8x384xf32>
    %489 = vector.extract_strided_slice %486 {offsets = [0, 0], sizes = [8, 128], strides = [1, 1]} : vector<8x384xf32> to vector<8x128xf32>
    %490 = vector.extract_strided_slice %488 {offsets = [0, 0], sizes = [8, 128], strides = [1, 1]} : vector<8x384xf32> to vector<8x128xf32>
    %491 = arith.addf %489, %490 : vector<8x128xf32>
    %492 = arith.negf %491 : vector<8x128xf32>
    %493 = math.exp %492 : vector<8x128xf32>
    %cst_137 = arith.constant 1.000000e+00 : f32
    %494 = vector.broadcast %cst_137 : f32 to vector<8x128xf32>
    %495 = arith.addf %494, %493 : vector<8x128xf32>
    %496 = arith.divf %494, %495 : vector<8x128xf32>
    %497 = vector.extract_strided_slice %486 {offsets = [0, 128], sizes = [8, 128], strides = [1, 1]} : vector<8x384xf32> to vector<8x128xf32>
    %498 = vector.extract_strided_slice %488 {offsets = [0, 128], sizes = [8, 128], strides = [1, 1]} : vector<8x384xf32> to vector<8x128xf32>
    %499 = arith.addf %497, %498 : vector<8x128xf32>
    %500 = arith.negf %499 : vector<8x128xf32>
    %501 = math.exp %500 : vector<8x128xf32>
    %cst_138 = arith.constant 1.000000e+00 : f32
    %502 = vector.broadcast %cst_138 : f32 to vector<8x128xf32>
    %503 = arith.addf %502, %501 : vector<8x128xf32>
    %504 = arith.divf %502, %503 : vector<8x128xf32>
    %505 = vector.extract_strided_slice %486 {offsets = [0, 256], sizes = [8, 128], strides = [1, 1]} : vector<8x384xf32> to vector<8x128xf32>
    %506 = vector.extract_strided_slice %488 {offsets = [0, 256], sizes = [8, 128], strides = [1, 1]} : vector<8x384xf32> to vector<8x128xf32>
    %507 = arith.addf %506, %363 : vector<8x128xf32>
    %508 = arith.mulf %496, %507 : vector<8x128xf32>
    %509 = arith.addf %505, %508 : vector<8x128xf32>
    %510 = math.tanh %509 : vector<8x128xf32>
    %cst_139 = arith.constant 1.000000e+00 : f32
    %511 = vector.broadcast %cst_139 : f32 to vector<8x128xf32>
    %512 = arith.subf %511, %504 : vector<8x128xf32>
    %513 = arith.mulf %512, %510 : vector<8x128xf32>
    %514 = arith.mulf %504, %476 : vector<8x128xf32>
    %515 = arith.addf %513, %514 : vector<8x128xf32>
    %516 = arith.truncf %515 : vector<8x128xf32> to vector<8x128xbf16>
    %517 = arith.index_cast %c3_i32 : i32 to index
    %c0_140 = arith.constant 0 : index
    %c0_141 = arith.constant 0 : index
    %518 = vector.load %arg11[%517, %c0_140, %c0_141] : memref<8x8x128xbf16, #tpu.memory_space<vmem>>, vector<1x8x128xbf16>
    %519 = vector.shape_cast %518 : vector<1x8x128xbf16> to vector<8x128xbf16>
    %520 = vector.shape_cast %516 : vector<8x128xbf16> to vector<1x8x128xbf16>
    tpu.vector_store %arg11[%517, %c0_140, %c0_141], %520 {strides = array<i32>} : memref<8x8x128xbf16, #tpu.memory_space<vmem>>, vector<1x8x128xbf16>,
    %c4_i32 = arith.constant 4 : i32
    %521 = arith.index_cast %c4_i32 : i32 to index
    %c0_142 = arith.constant 0 : index
    %c0_143 = arith.constant 0 : index
    %522 = vector.load %arg11[%521, %c0_142, %c0_143] : memref<8x8x128xbf16, #tpu.memory_space<vmem>>, vector<1x8x128xbf16>
    %523 = vector.shape_cast %522 : vector<1x8x128xbf16> to vector<8x128xbf16>
    %cst_144 = arith.constant dense<0.000000e+00> : vector<8x384xf32>
    %524 = tpu.matmul %523, %353, %cst_144 {dimension_numbers = #tpu.dot_dimension_numbers<[1], [0], [0], [1], [0, 0, 1, 1], [], []>} : vector<8x128xbf16>, vector<128x384xbf16>, vector<8x384xf32> -> vector<8x384xf32>
    %525 = arith.addf %524, %359 : vector<8x384xf32>
    %526 = arith.truncf %515 : vector<8x128xf32> to vector<8x128xbf16>
    %cst_145 = arith.constant dense<0.000000e+00> : vector<8x384xf32>
    %527 = tpu.matmul %526, %355, %cst_145 {dimension_numbers = #tpu.dot_dimension_numbers<[1], [0], [0], [1], [0, 0, 1, 1], [], []>} : vector<8x128xbf16>, vector<128x384xbf16>, vector<8x384xf32> -> vector<8x384xf32>
    %528 = vector.extract_strided_slice %525 {offsets = [0, 0], sizes = [8, 128], strides = [1, 1]} : vector<8x384xf32> to vector<8x128xf32>
    %529 = vector.extract_strided_slice %527 {offsets = [0, 0], sizes = [8, 128], strides = [1, 1]} : vector<8x384xf32> to vector<8x128xf32>
    %530 = arith.addf %528, %529 : vector<8x128xf32>
    %531 = arith.negf %530 : vector<8x128xf32>
    %532 = math.exp %531 : vector<8x128xf32>
    %cst_146 = arith.constant 1.000000e+00 : f32
    %533 = vector.broadcast %cst_146 : f32 to vector<8x128xf32>
    %534 = arith.addf %533, %532 : vector<8x128xf32>
    %535 = arith.divf %533, %534 : vector<8x128xf32>
    %536 = vector.extract_strided_slice %525 {offsets = [0, 128], sizes = [8, 128], strides = [1, 1]} : vector<8x384xf32> to vector<8x128xf32>
    %537 = vector.extract_strided_slice %527 {offsets = [0, 128], sizes = [8, 128], strides = [1, 1]} : vector<8x384xf32> to vector<8x128xf32>
    %538 = arith.addf %536, %537 : vector<8x128xf32>
    %539 = arith.negf %538 : vector<8x128xf32>
    %540 = math.exp %539 : vector<8x128xf32>
    %cst_147 = arith.constant 1.000000e+00 : f32
    %541 = vector.broadcast %cst_147 : f32 to vector<8x128xf32>
    %542 = arith.addf %541, %540 : vector<8x128xf32>
    %543 = arith.divf %541, %542 : vector<8x128xf32>
    %544 = vector.extract_strided_slice %525 {offsets = [0, 256], sizes = [8, 128], strides = [1, 1]} : vector<8x384xf32> to vector<8x128xf32>
    %545 = vector.extract_strided_slice %527 {offsets = [0, 256], sizes = [8, 128], strides = [1, 1]} : vector<8x384xf32> to vector<8x128xf32>
    %546 = arith.addf %545, %363 : vector<8x128xf32>
    %547 = arith.mulf %535, %546 : vector<8x128xf32>
    %548 = arith.addf %544, %547 : vector<8x128xf32>
    %549 = math.tanh %548 : vector<8x128xf32>
    %cst_148 = arith.constant 1.000000e+00 : f32
    %550 = vector.broadcast %cst_148 : f32 to vector<8x128xf32>
    %551 = arith.subf %550, %543 : vector<8x128xf32>
    %552 = arith.mulf %551, %549 : vector<8x128xf32>
    %553 = arith.mulf %543, %515 : vector<8x128xf32>
    %554 = arith.addf %552, %553 : vector<8x128xf32>
    %555 = arith.truncf %554 : vector<8x128xf32> to vector<8x128xbf16>
    %556 = arith.index_cast %c4_i32 : i32 to index
    %c0_149 = arith.constant 0 : index
    %c0_150 = arith.constant 0 : index
    %557 = vector.load %arg11[%556, %c0_149, %c0_150] : memref<8x8x128xbf16, #tpu.memory_space<vmem>>, vector<1x8x128xbf16>
    %558 = vector.shape_cast %557 : vector<1x8x128xbf16> to vector<8x128xbf16>
    %559 = vector.shape_cast %555 : vector<8x128xbf16> to vector<1x8x128xbf16>
    tpu.vector_store %arg11[%556, %c0_149, %c0_150], %559 {strides = array<i32>} : memref<8x8x128xbf16, #tpu.memory_space<vmem>>, vector<1x8x128xbf16>,
    %c5_i32 = arith.constant 5 : i32
    %560 = arith.index_cast %c5_i32 : i32 to index
    %c0_151 = arith.constant 0 : index
    %c0_152 = arith.constant 0 : index
    %561 = vector.load %arg11[%560, %c0_151, %c0_152] : memref<8x8x128xbf16, #tpu.memory_space<vmem>>, vector<1x8x128xbf16>
    %562 = vector.shape_cast %561 : vector<1x8x128xbf16> to vector<8x128xbf16>
    %cst_153 = arith.constant dense<0.000000e+00> : vector<8x384xf32>
    %563 = tpu.matmul %562, %353, %cst_153 {dimension_numbers = #tpu.dot_dimension_numbers<[1], [0], [0], [1], [0, 0, 1, 1], [], []>} : vector<8x128xbf16>, vector<128x384xbf16>, vector<8x384xf32> -> vector<8x384xf32>
    %564 = arith.addf %563, %359 : vector<8x384xf32>
    %565 = arith.truncf %554 : vector<8x128xf32> to vector<8x128xbf16>
    %cst_154 = arith.constant dense<0.000000e+00> : vector<8x384xf32>
    %566 = tpu.matmul %565, %355, %cst_154 {dimension_numbers = #tpu.dot_dimension_numbers<[1], [0], [0], [1], [0, 0, 1, 1], [], []>} : vector<8x128xbf16>, vector<128x384xbf16>, vector<8x384xf32> -> vector<8x384xf32>
    %567 = vector.extract_strided_slice %564 {offsets = [0, 0], sizes = [8, 128], strides = [1, 1]} : vector<8x384xf32> to vector<8x128xf32>
    %568 = vector.extract_strided_slice %566 {offsets = [0, 0], sizes = [8, 128], strides = [1, 1]} : vector<8x384xf32> to vector<8x128xf32>
    %569 = arith.addf %567, %568 : vector<8x128xf32>
    %570 = arith.negf %569 : vector<8x128xf32>
    %571 = math.exp %570 : vector<8x128xf32>
    %cst_155 = arith.constant 1.000000e+00 : f32
    %572 = vector.broadcast %cst_155 : f32 to vector<8x128xf32>
    %573 = arith.addf %572, %571 : vector<8x128xf32>
    %574 = arith.divf %572, %573 : vector<8x128xf32>
    %575 = vector.extract_strided_slice %564 {offsets = [0, 128], sizes = [8, 128], strides = [1, 1]} : vector<8x384xf32> to vector<8x128xf32>
    %576 = vector.extract_strided_slice %566 {offsets = [0, 128], sizes = [8, 128], strides = [1, 1]} : vector<8x384xf32> to vector<8x128xf32>
    %577 = arith.addf %575, %576 : vector<8x128xf32>
    %578 = arith.negf %577 : vector<8x128xf32>
    %579 = math.exp %578 : vector<8x128xf32>
    %cst_156 = arith.constant 1.000000e+00 : f32
    %580 = vector.broadcast %cst_156 : f32 to vector<8x128xf32>
    %581 = arith.addf %580, %579 : vector<8x128xf32>
    %582 = arith.divf %580, %581 : vector<8x128xf32>
    %583 = vector.extract_strided_slice %564 {offsets = [0, 256], sizes = [8, 128], strides = [1, 1]} : vector<8x384xf32> to vector<8x128xf32>
    %584 = vector.extract_strided_slice %566 {offsets = [0, 256], sizes = [8, 128], strides = [1, 1]} : vector<8x384xf32> to vector<8x128xf32>
    %585 = arith.addf %584, %363 : vector<8x128xf32>
    %586 = arith.mulf %574, %585 : vector<8x128xf32>
    %587 = arith.addf %583, %586 : vector<8x128xf32>
    %588 = math.tanh %587 : vector<8x128xf32>
    %cst_157 = arith.constant 1.000000e+00 : f32
    %589 = vector.broadcast %cst_157 : f32 to vector<8x128xf32>
    %590 = arith.subf %589, %582 : vector<8x128xf32>
    %591 = arith.mulf %590, %588 : vector<8x128xf32>
    %592 = arith.mulf %582, %554 : vector<8x128xf32>
    %593 = arith.addf %591, %592 : vector<8x128xf32>
    %594 = arith.truncf %593 : vector<8x128xf32> to vector<8x128xbf16>
    %595 = arith.index_cast %c5_i32 : i32 to index
    %c0_158 = arith.constant 0 : index
    %c0_159 = arith.constant 0 : index
    %596 = vector.load %arg11[%595, %c0_158, %c0_159] : memref<8x8x128xbf16, #tpu.memory_space<vmem>>, vector<1x8x128xbf16>
    %597 = vector.shape_cast %596 : vector<1x8x128xbf16> to vector<8x128xbf16>
    %598 = vector.shape_cast %594 : vector<8x128xbf16> to vector<1x8x128xbf16>
    tpu.vector_store %arg11[%595, %c0_158, %c0_159], %598 {strides = array<i32>} : memref<8x8x128xbf16, #tpu.memory_space<vmem>>, vector<1x8x128xbf16>,
    %c6_i32 = arith.constant 6 : i32
    %599 = arith.index_cast %c6_i32 : i32 to index
    %c0_160 = arith.constant 0 : index
    %c0_161 = arith.constant 0 : index
    %600 = vector.load %arg11[%599, %c0_160, %c0_161] : memref<8x8x128xbf16, #tpu.memory_space<vmem>>, vector<1x8x128xbf16>
    %601 = vector.shape_cast %600 : vector<1x8x128xbf16> to vector<8x128xbf16>
    %cst_162 = arith.constant dense<0.000000e+00> : vector<8x384xf32>
    %602 = tpu.matmul %601, %353, %cst_162 {dimension_numbers = #tpu.dot_dimension_numbers<[1], [0], [0], [1], [0, 0, 1, 1], [], []>} : vector<8x128xbf16>, vector<128x384xbf16>, vector<8x384xf32> -> vector<8x384xf32>
    %603 = arith.addf %602, %359 : vector<8x384xf32>
    %604 = arith.truncf %593 : vector<8x128xf32> to vector<8x128xbf16>
    %cst_163 = arith.constant dense<0.000000e+00> : vector<8x384xf32>
    %605 = tpu.matmul %604, %355, %cst_163 {dimension_numbers = #tpu.dot_dimension_numbers<[1], [0], [0], [1], [0, 0, 1, 1], [], []>} : vector<8x128xbf16>, vector<128x384xbf16>, vector<8x384xf32> -> vector<8x384xf32>
    %606 = vector.extract_strided_slice %603 {offsets = [0, 0], sizes = [8, 128], strides = [1, 1]} : vector<8x384xf32> to vector<8x128xf32>
    %607 = vector.extract_strided_slice %605 {offsets = [0, 0], sizes = [8, 128], strides = [1, 1]} : vector<8x384xf32> to vector<8x128xf32>
    %608 = arith.addf %606, %607 : vector<8x128xf32>
    %609 = arith.negf %608 : vector<8x128xf32>
    %610 = math.exp %609 : vector<8x128xf32>
    %cst_164 = arith.constant 1.000000e+00 : f32
    %611 = vector.broadcast %cst_164 : f32 to vector<8x128xf32>
    %612 = arith.addf %611, %610 : vector<8x128xf32>
    %613 = arith.divf %611, %612 : vector<8x128xf32>
    %614 = vector.extract_strided_slice %603 {offsets = [0, 128], sizes = [8, 128], strides = [1, 1]} : vector<8x384xf32> to vector<8x128xf32>
    %615 = vector.extract_strided_slice %605 {offsets = [0, 128], sizes = [8, 128], strides = [1, 1]} : vector<8x384xf32> to vector<8x128xf32>
    %616 = arith.addf %614, %615 : vector<8x128xf32>
    %617 = arith.negf %616 : vector<8x128xf32>
    %618 = math.exp %617 : vector<8x128xf32>
    %cst_165 = arith.constant 1.000000e+00 : f32
    %619 = vector.broadcast %cst_165 : f32 to vector<8x128xf32>
    %620 = arith.addf %619, %618 : vector<8x128xf32>
    %621 = arith.divf %619, %620 : vector<8x128xf32>
    %622 = vector.extract_strided_slice %603 {offsets = [0, 256], sizes = [8, 128], strides = [1, 1]} : vector<8x384xf32> to vector<8x128xf32>
    %623 = vector.extract_strided_slice %605 {offsets = [0, 256], sizes = [8, 128], strides = [1, 1]} : vector<8x384xf32> to vector<8x128xf32>
    %624 = arith.addf %623, %363 : vector<8x128xf32>
    %625 = arith.mulf %613, %624 : vector<8x128xf32>
    %626 = arith.addf %622, %625 : vector<8x128xf32>
    %627 = math.tanh %626 : vector<8x128xf32>
    %cst_166 = arith.constant 1.000000e+00 : f32
    %628 = vector.broadcast %cst_166 : f32 to vector<8x128xf32>
    %629 = arith.subf %628, %621 : vector<8x128xf32>
    %630 = arith.mulf %629, %627 : vector<8x128xf32>
    %631 = arith.mulf %621, %593 : vector<8x128xf32>
    %632 = arith.addf %630, %631 : vector<8x128xf32>
    %633 = arith.truncf %632 : vector<8x128xf32> to vector<8x128xbf16>
    %634 = arith.index_cast %c6_i32 : i32 to index
    %c0_167 = arith.constant 0 : index
    %c0_168 = arith.constant 0 : index
    %635 = vector.load %arg11[%634, %c0_167, %c0_168] : memref<8x8x128xbf16, #tpu.memory_space<vmem>>, vector<1x8x128xbf16>
    %636 = vector.shape_cast %635 : vector<1x8x128xbf16> to vector<8x128xbf16>
    %637 = vector.shape_cast %633 : vector<8x128xbf16> to vector<1x8x128xbf16>
    tpu.vector_store %arg11[%634, %c0_167, %c0_168], %637 {strides = array<i32>} : memref<8x8x128xbf16, #tpu.memory_space<vmem>>, vector<1x8x128xbf16>,
    %c7_i32 = arith.constant 7 : i32
    %638 = arith.index_cast %c7_i32 : i32 to index
    %c0_169 = arith.constant 0 : index
    %c0_170 = arith.constant 0 : index
    %639 = vector.load %arg11[%638, %c0_169, %c0_170] : memref<8x8x128xbf16, #tpu.memory_space<vmem>>, vector<1x8x128xbf16>
    %640 = vector.shape_cast %639 : vector<1x8x128xbf16> to vector<8x128xbf16>
    %cst_171 = arith.constant dense<0.000000e+00> : vector<8x384xf32>
    %641 = tpu.matmul %640, %353, %cst_171 {dimension_numbers = #tpu.dot_dimension_numbers<[1], [0], [0], [1], [0, 0, 1, 1], [], []>} : vector<8x128xbf16>, vector<128x384xbf16>, vector<8x384xf32> -> vector<8x384xf32>
    %642 = arith.addf %641, %359 : vector<8x384xf32>
    %643 = arith.truncf %632 : vector<8x128xf32> to vector<8x128xbf16>
    %cst_172 = arith.constant dense<0.000000e+00> : vector<8x384xf32>
    %644 = tpu.matmul %643, %355, %cst_172 {dimension_numbers = #tpu.dot_dimension_numbers<[1], [0], [0], [1], [0, 0, 1, 1], [], []>} : vector<8x128xbf16>, vector<128x384xbf16>, vector<8x384xf32> -> vector<8x384xf32>
    %645 = vector.extract_strided_slice %642 {offsets = [0, 0], sizes = [8, 128], strides = [1, 1]} : vector<8x384xf32> to vector<8x128xf32>
    %646 = vector.extract_strided_slice %644 {offsets = [0, 0], sizes = [8, 128], strides = [1, 1]} : vector<8x384xf32> to vector<8x128xf32>
    %647 = arith.addf %645, %646 : vector<8x128xf32>
    %648 = arith.negf %647 : vector<8x128xf32>
    %649 = math.exp %648 : vector<8x128xf32>
    %cst_173 = arith.constant 1.000000e+00 : f32
    %650 = vector.broadcast %cst_173 : f32 to vector<8x128xf32>
    %651 = arith.addf %650, %649 : vector<8x128xf32>
    %652 = arith.divf %650, %651 : vector<8x128xf32>
    %653 = vector.extract_strided_slice %642 {offsets = [0, 128], sizes = [8, 128], strides = [1, 1]} : vector<8x384xf32> to vector<8x128xf32>
    %654 = vector.extract_strided_slice %644 {offsets = [0, 128], sizes = [8, 128], strides = [1, 1]} : vector<8x384xf32> to vector<8x128xf32>
    %655 = arith.addf %653, %654 : vector<8x128xf32>
    %656 = arith.negf %655 : vector<8x128xf32>
    %657 = math.exp %656 : vector<8x128xf32>
    %cst_174 = arith.constant 1.000000e+00 : f32
    %658 = vector.broadcast %cst_174 : f32 to vector<8x128xf32>
    %659 = arith.addf %658, %657 : vector<8x128xf32>
    %660 = arith.divf %658, %659 : vector<8x128xf32>
    %661 = vector.extract_strided_slice %642 {offsets = [0, 256], sizes = [8, 128], strides = [1, 1]} : vector<8x384xf32> to vector<8x128xf32>
    %662 = vector.extract_strided_slice %644 {offsets = [0, 256], sizes = [8, 128], strides = [1, 1]} : vector<8x384xf32> to vector<8x128xf32>
    %663 = arith.addf %662, %363 : vector<8x128xf32>
    %664 = arith.mulf %652, %663 : vector<8x128xf32>
    %665 = arith.addf %661, %664 : vector<8x128xf32>
    %666 = math.tanh %665 : vector<8x128xf32>
    %cst_175 = arith.constant 1.000000e+00 : f32
    %667 = vector.broadcast %cst_175 : f32 to vector<8x128xf32>
    %668 = arith.subf %667, %660 : vector<8x128xf32>
    %669 = arith.mulf %668, %666 : vector<8x128xf32>
    %670 = arith.mulf %660, %632 : vector<8x128xf32>
    %671 = arith.addf %669, %670 : vector<8x128xf32>
    %672 = arith.truncf %671 : vector<8x128xf32> to vector<8x128xbf16>
    %673 = arith.index_cast %c7_i32 : i32 to index
    %c0_176 = arith.constant 0 : index
    %c0_177 = arith.constant 0 : index
    %674 = vector.load %arg11[%673, %c0_176, %c0_177] : memref<8x8x128xbf16, #tpu.memory_space<vmem>>, vector<1x8x128xbf16>
    %675 = vector.shape_cast %674 : vector<1x8x128xbf16> to vector<8x128xbf16>
    %676 = vector.shape_cast %672 : vector<8x128xbf16> to vector<1x8x128xbf16>
    tpu.vector_store %arg11[%673, %c0_176, %c0_177], %676 {strides = array<i32>} : memref<8x8x128xbf16, #tpu.memory_space<vmem>>, vector<1x8x128xbf16>,
    %c8_i32 = arith.constant 8 : i32
    %c1_178 = arith.constant 1 : index
    %c0_179 = arith.constant 0 : index
    %c0_180 = arith.constant 0 : index
    %677 = vector.load %arg3[%c1_178, %c0_179, %c0_180] : memref<2x128x384xbf16, #tpu.memory_space<vmem>>, vector<1x128x384xbf16>
    %678 = vector.shape_cast %677 : vector<1x128x384xbf16> to vector<128x384xbf16>
    %c2_181 = arith.constant 2 : index
    %c0_182 = arith.constant 0 : index
    %c0_183 = arith.constant 0 : index
    %679 = vector.load %arg4[%c2_181, %c0_182, %c0_183] : memref<3x128x384xbf16, #tpu.memory_space<vmem>>, vector<1x128x384xbf16>
    %680 = vector.shape_cast %679 : vector<1x128x384xbf16> to vector<128x384xbf16>
    %c2_184 = arith.constant 2 : index
    %c0_185 = arith.constant 0 : index
    %c0_186 = arith.constant 0 : index
    %681 = vector.load %arg5[%c2_184, %c0_185, %c0_186] : memref<3x1x384xf32, #tpu.memory_space<vmem>>, vector<1x1x384xf32>
    %682 = vector.shape_cast %681 : vector<1x1x384xf32> to vector<1x384xf32>
    %683 = vector.shape_cast %682 : vector<1x384xf32> to vector<1x384xf32>
    %684 = vector.broadcast %683 : vector<1x384xf32> to vector<8x384xf32>
    %c2_187 = arith.constant 2 : index
    %c0_188 = arith.constant 0 : index
    %c0_189 = arith.constant 0 : index
    %685 = vector.load %arg6[%c2_187, %c0_188, %c0_189] : memref<3x1x128xf32, #tpu.memory_space<vmem>>, vector<1x1x128xf32>
    %686 = vector.shape_cast %685 : vector<1x1x128xf32> to vector<1x128xf32>
    %687 = vector.shape_cast %686 : vector<1x128xf32> to vector<1x128xf32>
    %688 = vector.broadcast %687 : vector<1x128xf32> to vector<8x128xf32>
    %cst_190 = arith.constant 0.000000e+00 : f32
    %689 = vector.broadcast %cst_190 : f32 to vector<8x128xf32>
    %cst_191 = arith.constant 0.000000e+00 : f32
    %690 = vector.broadcast %cst_191 : f32 to vector<8x128xf32>
    %c0_i32_192 = arith.constant 0 : i32
    %691 = arith.index_cast %c0_i32_192 : i32 to index
    %c0_193 = arith.constant 0 : index
    %c0_194 = arith.constant 0 : index
    %692 = vector.load %arg11[%691, %c0_193, %c0_194] : memref<8x8x128xbf16, #tpu.memory_space<vmem>>, vector<1x8x128xbf16>
    %693 = vector.shape_cast %692 : vector<1x8x128xbf16> to vector<8x128xbf16>
    %cst_195 = arith.constant dense<0.000000e+00> : vector<8x384xf32>
    %694 = tpu.matmul %693, %678, %cst_195 {dimension_numbers = #tpu.dot_dimension_numbers<[1], [0], [0], [1], [0, 0, 1, 1], [], []>} : vector<8x128xbf16>, vector<128x384xbf16>, vector<8x384xf32> -> vector<8x384xf32>
    %695 = arith.addf %694, %684 : vector<8x384xf32>
    %696 = arith.truncf %689 : vector<8x128xf32> to vector<8x128xbf16>
    %cst_196 = arith.constant dense<0.000000e+00> : vector<8x384xf32>
    %697 = tpu.matmul %696, %680, %cst_196 {dimension_numbers = #tpu.dot_dimension_numbers<[1], [0], [0], [1], [0, 0, 1, 1], [], []>} : vector<8x128xbf16>, vector<128x384xbf16>, vector<8x384xf32> -> vector<8x384xf32>
    %698 = vector.extract_strided_slice %695 {offsets = [0, 0], sizes = [8, 128], strides = [1, 1]} : vector<8x384xf32> to vector<8x128xf32>
    %699 = vector.extract_strided_slice %697 {offsets = [0, 0], sizes = [8, 128], strides = [1, 1]} : vector<8x384xf32> to vector<8x128xf32>
    %700 = arith.addf %698, %699 : vector<8x128xf32>
    %701 = arith.negf %700 : vector<8x128xf32>
    %702 = math.exp %701 : vector<8x128xf32>
    %cst_197 = arith.constant 1.000000e+00 : f32
    %703 = vector.broadcast %cst_197 : f32 to vector<8x128xf32>
    %704 = arith.addf %703, %702 : vector<8x128xf32>
    %705 = arith.divf %703, %704 : vector<8x128xf32>
    %706 = vector.extract_strided_slice %695 {offsets = [0, 128], sizes = [8, 128], strides = [1, 1]} : vector<8x384xf32> to vector<8x128xf32>
    %707 = vector.extract_strided_slice %697 {offsets = [0, 128], sizes = [8, 128], strides = [1, 1]} : vector<8x384xf32> to vector<8x128xf32>
    %708 = arith.addf %706, %707 : vector<8x128xf32>
    %709 = arith.negf %708 : vector<8x128xf32>
    %710 = math.exp %709 : vector<8x128xf32>
    %cst_198 = arith.constant 1.000000e+00 : f32
    %711 = vector.broadcast %cst_198 : f32 to vector<8x128xf32>
    %712 = arith.addf %711, %710 : vector<8x128xf32>
    %713 = arith.divf %711, %712 : vector<8x128xf32>
    %714 = vector.extract_strided_slice %695 {offsets = [0, 256], sizes = [8, 128], strides = [1, 1]} : vector<8x384xf32> to vector<8x128xf32>
    %715 = vector.extract_strided_slice %697 {offsets = [0, 256], sizes = [8, 128], strides = [1, 1]} : vector<8x384xf32> to vector<8x128xf32>
    %716 = arith.addf %715, %688 : vector<8x128xf32>
    %717 = arith.mulf %705, %716 : vector<8x128xf32>
    %718 = arith.addf %714, %717 : vector<8x128xf32>
    %719 = math.tanh %718 : vector<8x128xf32>
    %cst_199 = arith.constant 1.000000e+00 : f32
    %720 = vector.broadcast %cst_199 : f32 to vector<8x128xf32>
    %721 = arith.subf %720, %713 : vector<8x128xf32>
    %722 = arith.mulf %721, %719 : vector<8x128xf32>
    %723 = arith.mulf %713, %689 : vector<8x128xf32>
    %724 = arith.addf %722, %723 : vector<8x128xf32>
    %725 = arith.mulf %724, %2 : vector<8x128xf32>
    %cst_200 = arith.constant dense<0.000000e+00> : vector<8xf32>
    %726 = vector.multi_reduction <add>, %725, %cst_200 [1] : vector<8x128xf32> to vector<8xf32>
    %727 = vector.shape_cast %726 : vector<8xf32> to vector<8x1xf32>
    %728 = vector.broadcast %727 : vector<8x1xf32> to vector<8x128xf32>
    %729 = arith.mulf %724, %728 : vector<8x128xf32>
    %730 = arith.addf %690, %729 : vector<8x128xf32>
    %c1_i32_201 = arith.constant 1 : i32
    %731 = arith.index_cast %c1_i32_201 : i32 to index
    %c0_202 = arith.constant 0 : index
    %c0_203 = arith.constant 0 : index
    %732 = vector.load %arg11[%731, %c0_202, %c0_203] : memref<8x8x128xbf16, #tpu.memory_space<vmem>>, vector<1x8x128xbf16>
    %733 = vector.shape_cast %732 : vector<1x8x128xbf16> to vector<8x128xbf16>
    %cst_204 = arith.constant dense<0.000000e+00> : vector<8x384xf32>
    %734 = tpu.matmul %733, %678, %cst_204 {dimension_numbers = #tpu.dot_dimension_numbers<[1], [0], [0], [1], [0, 0, 1, 1], [], []>} : vector<8x128xbf16>, vector<128x384xbf16>, vector<8x384xf32> -> vector<8x384xf32>
    %735 = arith.addf %734, %684 : vector<8x384xf32>
    %736 = arith.truncf %724 : vector<8x128xf32> to vector<8x128xbf16>
    %cst_205 = arith.constant dense<0.000000e+00> : vector<8x384xf32>
    %737 = tpu.matmul %736, %680, %cst_205 {dimension_numbers = #tpu.dot_dimension_numbers<[1], [0], [0], [1], [0, 0, 1, 1], [], []>} : vector<8x128xbf16>, vector<128x384xbf16>, vector<8x384xf32> -> vector<8x384xf32>
    %738 = vector.extract_strided_slice %735 {offsets = [0, 0], sizes = [8, 128], strides = [1, 1]} : vector<8x384xf32> to vector<8x128xf32>
    %739 = vector.extract_strided_slice %737 {offsets = [0, 0], sizes = [8, 128], strides = [1, 1]} : vector<8x384xf32> to vector<8x128xf32>
    %740 = arith.addf %738, %739 : vector<8x128xf32>
    %741 = arith.negf %740 : vector<8x128xf32>
    %742 = math.exp %741 : vector<8x128xf32>
    %cst_206 = arith.constant 1.000000e+00 : f32
    %743 = vector.broadcast %cst_206 : f32 to vector<8x128xf32>
    %744 = arith.addf %743, %742 : vector<8x128xf32>
    %745 = arith.divf %743, %744 : vector<8x128xf32>
    %746 = vector.extract_strided_slice %735 {offsets = [0, 128], sizes = [8, 128], strides = [1, 1]} : vector<8x384xf32> to vector<8x128xf32>
    %747 = vector.extract_strided_slice %737 {offsets = [0, 128], sizes = [8, 128], strides = [1, 1]} : vector<8x384xf32> to vector<8x128xf32>
    %748 = arith.addf %746, %747 : vector<8x128xf32>
    %749 = arith.negf %748 : vector<8x128xf32>
    %750 = math.exp %749 : vector<8x128xf32>
    %cst_207 = arith.constant 1.000000e+00 : f32
    %751 = vector.broadcast %cst_207 : f32 to vector<8x128xf32>
    %752 = arith.addf %751, %750 : vector<8x128xf32>
    %753 = arith.divf %751, %752 : vector<8x128xf32>
    %754 = vector.extract_strided_slice %735 {offsets = [0, 256], sizes = [8, 128], strides = [1, 1]} : vector<8x384xf32> to vector<8x128xf32>
    %755 = vector.extract_strided_slice %737 {offsets = [0, 256], sizes = [8, 128], strides = [1, 1]} : vector<8x384xf32> to vector<8x128xf32>
    %756 = arith.addf %755, %688 : vector<8x128xf32>
    %757 = arith.mulf %745, %756 : vector<8x128xf32>
    %758 = arith.addf %754, %757 : vector<8x128xf32>
    %759 = math.tanh %758 : vector<8x128xf32>
    %cst_208 = arith.constant 1.000000e+00 : f32
    %760 = vector.broadcast %cst_208 : f32 to vector<8x128xf32>
    %761 = arith.subf %760, %753 : vector<8x128xf32>
    %762 = arith.mulf %761, %759 : vector<8x128xf32>
    %763 = arith.mulf %753, %724 : vector<8x128xf32>
    %764 = arith.addf %762, %763 : vector<8x128xf32>
    %765 = arith.mulf %764, %2 : vector<8x128xf32>
    %cst_209 = arith.constant dense<0.000000e+00> : vector<8xf32>
    %766 = vector.multi_reduction <add>, %765, %cst_209 [1] : vector<8x128xf32> to vector<8xf32>
    %767 = vector.shape_cast %766 : vector<8xf32> to vector<8x1xf32>
    %768 = vector.broadcast %767 : vector<8x1xf32> to vector<8x128xf32>
    %769 = arith.mulf %764, %768 : vector<8x128xf32>
    %770 = arith.addf %730, %769 : vector<8x128xf32>
    %c2_i32_210 = arith.constant 2 : i32
    %771 = arith.index_cast %c2_i32_210 : i32 to index
    %c0_211 = arith.constant 0 : index
    %c0_212 = arith.constant 0 : index
    %772 = vector.load %arg11[%771, %c0_211, %c0_212] : memref<8x8x128xbf16, #tpu.memory_space<vmem>>, vector<1x8x128xbf16>
    %773 = vector.shape_cast %772 : vector<1x8x128xbf16> to vector<8x128xbf16>
    %cst_213 = arith.constant dense<0.000000e+00> : vector<8x384xf32>
    %774 = tpu.matmul %773, %678, %cst_213 {dimension_numbers = #tpu.dot_dimension_numbers<[1], [0], [0], [1], [0, 0, 1, 1], [], []>} : vector<8x128xbf16>, vector<128x384xbf16>, vector<8x384xf32> -> vector<8x384xf32>
    %775 = arith.addf %774, %684 : vector<8x384xf32>
    %776 = arith.truncf %764 : vector<8x128xf32> to vector<8x128xbf16>
    %cst_214 = arith.constant dense<0.000000e+00> : vector<8x384xf32>
    %777 = tpu.matmul %776, %680, %cst_214 {dimension_numbers = #tpu.dot_dimension_numbers<[1], [0], [0], [1], [0, 0, 1, 1], [], []>} : vector<8x128xbf16>, vector<128x384xbf16>, vector<8x384xf32> -> vector<8x384xf32>
    %778 = vector.extract_strided_slice %775 {offsets = [0, 0], sizes = [8, 128], strides = [1, 1]} : vector<8x384xf32> to vector<8x128xf32>
    %779 = vector.extract_strided_slice %777 {offsets = [0, 0], sizes = [8, 128], strides = [1, 1]} : vector<8x384xf32> to vector<8x128xf32>
    %780 = arith.addf %778, %779 : vector<8x128xf32>
    %781 = arith.negf %780 : vector<8x128xf32>
    %782 = math.exp %781 : vector<8x128xf32>
    %cst_215 = arith.constant 1.000000e+00 : f32
    %783 = vector.broadcast %cst_215 : f32 to vector<8x128xf32>
    %784 = arith.addf %783, %782 : vector<8x128xf32>
    %785 = arith.divf %783, %784 : vector<8x128xf32>
    %786 = vector.extract_strided_slice %775 {offsets = [0, 128], sizes = [8, 128], strides = [1, 1]} : vector<8x384xf32> to vector<8x128xf32>
    %787 = vector.extract_strided_slice %777 {offsets = [0, 128], sizes = [8, 128], strides = [1, 1]} : vector<8x384xf32> to vector<8x128xf32>
    %788 = arith.addf %786, %787 : vector<8x128xf32>
    %789 = arith.negf %788 : vector<8x128xf32>
    %790 = math.exp %789 : vector<8x128xf32>
    %cst_216 = arith.constant 1.000000e+00 : f32
    %791 = vector.broadcast %cst_216 : f32 to vector<8x128xf32>
    %792 = arith.addf %791, %790 : vector<8x128xf32>
    %793 = arith.divf %791, %792 : vector<8x128xf32>
    %794 = vector.extract_strided_slice %775 {offsets = [0, 256], sizes = [8, 128], strides = [1, 1]} : vector<8x384xf32> to vector<8x128xf32>
    %795 = vector.extract_strided_slice %777 {offsets = [0, 256], sizes = [8, 128], strides = [1, 1]} : vector<8x384xf32> to vector<8x128xf32>
    %796 = arith.addf %795, %688 : vector<8x128xf32>
    %797 = arith.mulf %785, %796 : vector<8x128xf32>
    %798 = arith.addf %794, %797 : vector<8x128xf32>
    %799 = math.tanh %798 : vector<8x128xf32>
    %cst_217 = arith.constant 1.000000e+00 : f32
    %800 = vector.broadcast %cst_217 : f32 to vector<8x128xf32>
    %801 = arith.subf %800, %793 : vector<8x128xf32>
    %802 = arith.mulf %801, %799 : vector<8x128xf32>
    %803 = arith.mulf %793, %764 : vector<8x128xf32>
    %804 = arith.addf %802, %803 : vector<8x128xf32>
    %805 = arith.mulf %804, %2 : vector<8x128xf32>
    %cst_218 = arith.constant dense<0.000000e+00> : vector<8xf32>
    %806 = vector.multi_reduction <add>, %805, %cst_218 [1] : vector<8x128xf32> to vector<8xf32>
    %807 = vector.shape_cast %806 : vector<8xf32> to vector<8x1xf32>
    %808 = vector.broadcast %807 : vector<8x1xf32> to vector<8x128xf32>
    %809 = arith.mulf %804, %808 : vector<8x128xf32>
    %810 = arith.addf %770, %809 : vector<8x128xf32>
    %c3_i32_219 = arith.constant 3 : i32
    %811 = arith.index_cast %c3_i32_219 : i32 to index
    %c0_220 = arith.constant 0 : index
    %c0_221 = arith.constant 0 : index
    %812 = vector.load %arg11[%811, %c0_220, %c0_221] : memref<8x8x128xbf16, #tpu.memory_space<vmem>>, vector<1x8x128xbf16>
    %813 = vector.shape_cast %812 : vector<1x8x128xbf16> to vector<8x128xbf16>
    %cst_222 = arith.constant dense<0.000000e+00> : vector<8x384xf32>
    %814 = tpu.matmul %813, %678, %cst_222 {dimension_numbers = #tpu.dot_dimension_numbers<[1], [0], [0], [1], [0, 0, 1, 1], [], []>} : vector<8x128xbf16>, vector<128x384xbf16>, vector<8x384xf32> -> vector<8x384xf32>
    %815 = arith.addf %814, %684 : vector<8x384xf32>
    %816 = arith.truncf %804 : vector<8x128xf32> to vector<8x128xbf16>
    %cst_223 = arith.constant dense<0.000000e+00> : vector<8x384xf32>
    %817 = tpu.matmul %816, %680, %cst_223 {dimension_numbers = #tpu.dot_dimension_numbers<[1], [0], [0], [1], [0, 0, 1, 1], [], []>} : vector<8x128xbf16>, vector<128x384xbf16>, vector<8x384xf32> -> vector<8x384xf32>
    %818 = vector.extract_strided_slice %815 {offsets = [0, 0], sizes = [8, 128], strides = [1, 1]} : vector<8x384xf32> to vector<8x128xf32>
    %819 = vector.extract_strided_slice %817 {offsets = [0, 0], sizes = [8, 128], strides = [1, 1]} : vector<8x384xf32> to vector<8x128xf32>
    %820 = arith.addf %818, %819 : vector<8x128xf32>
    %821 = arith.negf %820 : vector<8x128xf32>
    %822 = math.exp %821 : vector<8x128xf32>
    %cst_224 = arith.constant 1.000000e+00 : f32
    %823 = vector.broadcast %cst_224 : f32 to vector<8x128xf32>
    %824 = arith.addf %823, %822 : vector<8x128xf32>
    %825 = arith.divf %823, %824 : vector<8x128xf32>
    %826 = vector.extract_strided_slice %815 {offsets = [0, 128], sizes = [8, 128], strides = [1, 1]} : vector<8x384xf32> to vector<8x128xf32>
    %827 = vector.extract_strided_slice %817 {offsets = [0, 128], sizes = [8, 128], strides = [1, 1]} : vector<8x384xf32> to vector<8x128xf32>
    %828 = arith.addf %826, %827 : vector<8x128xf32>
    %829 = arith.negf %828 : vector<8x128xf32>
    %830 = math.exp %829 : vector<8x128xf32>
    %cst_225 = arith.constant 1.000000e+00 : f32
    %831 = vector.broadcast %cst_225 : f32 to vector<8x128xf32>
    %832 = arith.addf %831, %830 : vector<8x128xf32>
    %833 = arith.divf %831, %832 : vector<8x128xf32>
    %834 = vector.extract_strided_slice %815 {offsets = [0, 256], sizes = [8, 128], strides = [1, 1]} : vector<8x384xf32> to vector<8x128xf32>
    %835 = vector.extract_strided_slice %817 {offsets = [0, 256], sizes = [8, 128], strides = [1, 1]} : vector<8x384xf32> to vector<8x128xf32>
    %836 = arith.addf %835, %688 : vector<8x128xf32>
    %837 = arith.mulf %825, %836 : vector<8x128xf32>
    %838 = arith.addf %834, %837 : vector<8x128xf32>
    %839 = math.tanh %838 : vector<8x128xf32>
    %cst_226 = arith.constant 1.000000e+00 : f32
    %840 = vector.broadcast %cst_226 : f32 to vector<8x128xf32>
    %841 = arith.subf %840, %833 : vector<8x128xf32>
    %842 = arith.mulf %841, %839 : vector<8x128xf32>
    %843 = arith.mulf %833, %804 : vector<8x128xf32>
    %844 = arith.addf %842, %843 : vector<8x128xf32>
    %845 = arith.mulf %844, %2 : vector<8x128xf32>
    %cst_227 = arith.constant dense<0.000000e+00> : vector<8xf32>
    %846 = vector.multi_reduction <add>, %845, %cst_227 [1] : vector<8x128xf32> to vector<8xf32>
    %847 = vector.shape_cast %846 : vector<8xf32> to vector<8x1xf32>
    %848 = vector.broadcast %847 : vector<8x1xf32> to vector<8x128xf32>
    %849 = arith.mulf %844, %848 : vector<8x128xf32>
    %850 = arith.addf %810, %849 : vector<8x128xf32>
    %c4_i32_228 = arith.constant 4 : i32
    %851 = arith.index_cast %c4_i32_228 : i32 to index
    %c0_229 = arith.constant 0 : index
    %c0_230 = arith.constant 0 : index
    %852 = vector.load %arg11[%851, %c0_229, %c0_230] : memref<8x8x128xbf16, #tpu.memory_space<vmem>>, vector<1x8x128xbf16>
    %853 = vector.shape_cast %852 : vector<1x8x128xbf16> to vector<8x128xbf16>
    %cst_231 = arith.constant dense<0.000000e+00> : vector<8x384xf32>
    %854 = tpu.matmul %853, %678, %cst_231 {dimension_numbers = #tpu.dot_dimension_numbers<[1], [0], [0], [1], [0, 0, 1, 1], [], []>} : vector<8x128xbf16>, vector<128x384xbf16>, vector<8x384xf32> -> vector<8x384xf32>
    %855 = arith.addf %854, %684 : vector<8x384xf32>
    %856 = arith.truncf %844 : vector<8x128xf32> to vector<8x128xbf16>
    %cst_232 = arith.constant dense<0.000000e+00> : vector<8x384xf32>
    %857 = tpu.matmul %856, %680, %cst_232 {dimension_numbers = #tpu.dot_dimension_numbers<[1], [0], [0], [1], [0, 0, 1, 1], [], []>} : vector<8x128xbf16>, vector<128x384xbf16>, vector<8x384xf32> -> vector<8x384xf32>
    %858 = vector.extract_strided_slice %855 {offsets = [0, 0], sizes = [8, 128], strides = [1, 1]} : vector<8x384xf32> to vector<8x128xf32>
    %859 = vector.extract_strided_slice %857 {offsets = [0, 0], sizes = [8, 128], strides = [1, 1]} : vector<8x384xf32> to vector<8x128xf32>
    %860 = arith.addf %858, %859 : vector<8x128xf32>
    %861 = arith.negf %860 : vector<8x128xf32>
    %862 = math.exp %861 : vector<8x128xf32>
    %cst_233 = arith.constant 1.000000e+00 : f32
    %863 = vector.broadcast %cst_233 : f32 to vector<8x128xf32>
    %864 = arith.addf %863, %862 : vector<8x128xf32>
    %865 = arith.divf %863, %864 : vector<8x128xf32>
    %866 = vector.extract_strided_slice %855 {offsets = [0, 128], sizes = [8, 128], strides = [1, 1]} : vector<8x384xf32> to vector<8x128xf32>
    %867 = vector.extract_strided_slice %857 {offsets = [0, 128], sizes = [8, 128], strides = [1, 1]} : vector<8x384xf32> to vector<8x128xf32>
    %868 = arith.addf %866, %867 : vector<8x128xf32>
    %869 = arith.negf %868 : vector<8x128xf32>
    %870 = math.exp %869 : vector<8x128xf32>
    %cst_234 = arith.constant 1.000000e+00 : f32
    %871 = vector.broadcast %cst_234 : f32 to vector<8x128xf32>
    %872 = arith.addf %871, %870 : vector<8x128xf32>
    %873 = arith.divf %871, %872 : vector<8x128xf32>
    %874 = vector.extract_strided_slice %855 {offsets = [0, 256], sizes = [8, 128], strides = [1, 1]} : vector<8x384xf32> to vector<8x128xf32>
    %875 = vector.extract_strided_slice %857 {offsets = [0, 256], sizes = [8, 128], strides = [1, 1]} : vector<8x384xf32> to vector<8x128xf32>
    %876 = arith.addf %875, %688 : vector<8x128xf32>
    %877 = arith.mulf %865, %876 : vector<8x128xf32>
    %878 = arith.addf %874, %877 : vector<8x128xf32>
    %879 = math.tanh %878 : vector<8x128xf32>
    %cst_235 = arith.constant 1.000000e+00 : f32
    %880 = vector.broadcast %cst_235 : f32 to vector<8x128xf32>
    %881 = arith.subf %880, %873 : vector<8x128xf32>
    %882 = arith.mulf %881, %879 : vector<8x128xf32>
    %883 = arith.mulf %873, %844 : vector<8x128xf32>
    %884 = arith.addf %882, %883 : vector<8x128xf32>
    %885 = arith.mulf %884, %2 : vector<8x128xf32>
    %cst_236 = arith.constant dense<0.000000e+00> : vector<8xf32>
    %886 = vector.multi_reduction <add>, %885, %cst_236 [1] : vector<8x128xf32> to vector<8xf32>
    %887 = vector.shape_cast %886 : vector<8xf32> to vector<8x1xf32>
    %888 = vector.broadcast %887 : vector<8x1xf32> to vector<8x128xf32>
    %889 = arith.mulf %884, %888 : vector<8x128xf32>
    %890 = arith.addf %850, %889 : vector<8x128xf32>
    %c5_i32_237 = arith.constant 5 : i32
    %891 = arith.index_cast %c5_i32_237 : i32 to index
    %c0_238 = arith.constant 0 : index
    %c0_239 = arith.constant 0 : index
    %892 = vector.load %arg11[%891, %c0_238, %c0_239] : memref<8x8x128xbf16, #tpu.memory_space<vmem>>, vector<1x8x128xbf16>
    %893 = vector.shape_cast %892 : vector<1x8x128xbf16> to vector<8x128xbf16>
    %cst_240 = arith.constant dense<0.000000e+00> : vector<8x384xf32>
    %894 = tpu.matmul %893, %678, %cst_240 {dimension_numbers = #tpu.dot_dimension_numbers<[1], [0], [0], [1], [0, 0, 1, 1], [], []>} : vector<8x128xbf16>, vector<128x384xbf16>, vector<8x384xf32> -> vector<8x384xf32>
    %895 = arith.addf %894, %684 : vector<8x384xf32>
    %896 = arith.truncf %884 : vector<8x128xf32> to vector<8x128xbf16>
    %cst_241 = arith.constant dense<0.000000e+00> : vector<8x384xf32>
    %897 = tpu.matmul %896, %680, %cst_241 {dimension_numbers = #tpu.dot_dimension_numbers<[1], [0], [0], [1], [0, 0, 1, 1], [], []>} : vector<8x128xbf16>, vector<128x384xbf16>, vector<8x384xf32> -> vector<8x384xf32>
    %898 = vector.extract_strided_slice %895 {offsets = [0, 0], sizes = [8, 128], strides = [1, 1]} : vector<8x384xf32> to vector<8x128xf32>
    %899 = vector.extract_strided_slice %897 {offsets = [0, 0], sizes = [8, 128], strides = [1, 1]} : vector<8x384xf32> to vector<8x128xf32>
    %900 = arith.addf %898, %899 : vector<8x128xf32>
    %901 = arith.negf %900 : vector<8x128xf32>
    %902 = math.exp %901 : vector<8x128xf32>
    %cst_242 = arith.constant 1.000000e+00 : f32
    %903 = vector.broadcast %cst_242 : f32 to vector<8x128xf32>
    %904 = arith.addf %903, %902 : vector<8x128xf32>
    %905 = arith.divf %903, %904 : vector<8x128xf32>
    %906 = vector.extract_strided_slice %895 {offsets = [0, 128], sizes = [8, 128], strides = [1, 1]} : vector<8x384xf32> to vector<8x128xf32>
    %907 = vector.extract_strided_slice %897 {offsets = [0, 128], sizes = [8, 128], strides = [1, 1]} : vector<8x384xf32> to vector<8x128xf32>
    %908 = arith.addf %906, %907 : vector<8x128xf32>
    %909 = arith.negf %908 : vector<8x128xf32>
    %910 = math.exp %909 : vector<8x128xf32>
    %cst_243 = arith.constant 1.000000e+00 : f32
    %911 = vector.broadcast %cst_243 : f32 to vector<8x128xf32>
    %912 = arith.addf %911, %910 : vector<8x128xf32>
    %913 = arith.divf %911, %912 : vector<8x128xf32>
    %914 = vector.extract_strided_slice %895 {offsets = [0, 256], sizes = [8, 128], strides = [1, 1]} : vector<8x384xf32> to vector<8x128xf32>
    %915 = vector.extract_strided_slice %897 {offsets = [0, 256], sizes = [8, 128], strides = [1, 1]} : vector<8x384xf32> to vector<8x128xf32>
    %916 = arith.addf %915, %688 : vector<8x128xf32>
    %917 = arith.mulf %905, %916 : vector<8x128xf32>
    %918 = arith.addf %914, %917 : vector<8x128xf32>
    %919 = math.tanh %918 : vector<8x128xf32>
    %cst_244 = arith.constant 1.000000e+00 : f32
    %920 = vector.broadcast %cst_244 : f32 to vector<8x128xf32>
    %921 = arith.subf %920, %913 : vector<8x128xf32>
    %922 = arith.mulf %921, %919 : vector<8x128xf32>
    %923 = arith.mulf %913, %884 : vector<8x128xf32>
    %924 = arith.addf %922, %923 : vector<8x128xf32>
    %925 = arith.mulf %924, %2 : vector<8x128xf32>
    %cst_245 = arith.constant dense<0.000000e+00> : vector<8xf32>
    %926 = vector.multi_reduction <add>, %925, %cst_245 [1] : vector<8x128xf32> to vector<8xf32>
    %927 = vector.shape_cast %926 : vector<8xf32> to vector<8x1xf32>
    %928 = vector.broadcast %927 : vector<8x1xf32> to vector<8x128xf32>
    %929 = arith.mulf %924, %928 : vector<8x128xf32>
    %930 = arith.addf %890, %929 : vector<8x128xf32>
    %c6_i32_246 = arith.constant 6 : i32
    %931 = arith.index_cast %c6_i32_246 : i32 to index
    %c0_247 = arith.constant 0 : index
    %c0_248 = arith.constant 0 : index
    %932 = vector.load %arg11[%931, %c0_247, %c0_248] : memref<8x8x128xbf16, #tpu.memory_space<vmem>>, vector<1x8x128xbf16>
    %933 = vector.shape_cast %932 : vector<1x8x128xbf16> to vector<8x128xbf16>
    %cst_249 = arith.constant dense<0.000000e+00> : vector<8x384xf32>
    %934 = tpu.matmul %933, %678, %cst_249 {dimension_numbers = #tpu.dot_dimension_numbers<[1], [0], [0], [1], [0, 0, 1, 1], [], []>} : vector<8x128xbf16>, vector<128x384xbf16>, vector<8x384xf32> -> vector<8x384xf32>
    %935 = arith.addf %934, %684 : vector<8x384xf32>
    %936 = arith.truncf %924 : vector<8x128xf32> to vector<8x128xbf16>
    %cst_250 = arith.constant dense<0.000000e+00> : vector<8x384xf32>
    %937 = tpu.matmul %936, %680, %cst_250 {dimension_numbers = #tpu.dot_dimension_numbers<[1], [0], [0], [1], [0, 0, 1, 1], [], []>} : vector<8x128xbf16>, vector<128x384xbf16>, vector<8x384xf32> -> vector<8x384xf32>
    %938 = vector.extract_strided_slice %935 {offsets = [0, 0], sizes = [8, 128], strides = [1, 1]} : vector<8x384xf32> to vector<8x128xf32>
    %939 = vector.extract_strided_slice %937 {offsets = [0, 0], sizes = [8, 128], strides = [1, 1]} : vector<8x384xf32> to vector<8x128xf32>
    %940 = arith.addf %938, %939 : vector<8x128xf32>
    %941 = arith.negf %940 : vector<8x128xf32>
    %942 = math.exp %941 : vector<8x128xf32>
    %cst_251 = arith.constant 1.000000e+00 : f32
    %943 = vector.broadcast %cst_251 : f32 to vector<8x128xf32>
    %944 = arith.addf %943, %942 : vector<8x128xf32>
    %945 = arith.divf %943, %944 : vector<8x128xf32>
    %946 = vector.extract_strided_slice %935 {offsets = [0, 128], sizes = [8, 128], strides = [1, 1]} : vector<8x384xf32> to vector<8x128xf32>
    %947 = vector.extract_strided_slice %937 {offsets = [0, 128], sizes = [8, 128], strides = [1, 1]} : vector<8x384xf32> to vector<8x128xf32>
    %948 = arith.addf %946, %947 : vector<8x128xf32>
    %949 = arith.negf %948 : vector<8x128xf32>
    %950 = math.exp %949 : vector<8x128xf32>
    %cst_252 = arith.constant 1.000000e+00 : f32
    %951 = vector.broadcast %cst_252 : f32 to vector<8x128xf32>
    %952 = arith.addf %951, %950 : vector<8x128xf32>
    %953 = arith.divf %951, %952 : vector<8x128xf32>
    %954 = vector.extract_strided_slice %935 {offsets = [0, 256], sizes = [8, 128], strides = [1, 1]} : vector<8x384xf32> to vector<8x128xf32>
    %955 = vector.extract_strided_slice %937 {offsets = [0, 256], sizes = [8, 128], strides = [1, 1]} : vector<8x384xf32> to vector<8x128xf32>
    %956 = arith.addf %955, %688 : vector<8x128xf32>
    %957 = arith.mulf %945, %956 : vector<8x128xf32>
    %958 = arith.addf %954, %957 : vector<8x128xf32>
    %959 = math.tanh %958 : vector<8x128xf32>
    %cst_253 = arith.constant 1.000000e+00 : f32
    %960 = vector.broadcast %cst_253 : f32 to vector<8x128xf32>
    %961 = arith.subf %960, %953 : vector<8x128xf32>
    %962 = arith.mulf %961, %959 : vector<8x128xf32>
    %963 = arith.mulf %953, %924 : vector<8x128xf32>
    %964 = arith.addf %962, %963 : vector<8x128xf32>
    %965 = arith.mulf %964, %2 : vector<8x128xf32>
    %cst_254 = arith.constant dense<0.000000e+00> : vector<8xf32>
    %966 = vector.multi_reduction <add>, %965, %cst_254 [1] : vector<8x128xf32> to vector<8xf32>
    %967 = vector.shape_cast %966 : vector<8xf32> to vector<8x1xf32>
    %968 = vector.broadcast %967 : vector<8x1xf32> to vector<8x128xf32>
    %969 = arith.mulf %964, %968 : vector<8x128xf32>
    %970 = arith.addf %930, %969 : vector<8x128xf32>
    %c7_i32_255 = arith.constant 7 : i32
    %971 = arith.index_cast %c7_i32_255 : i32 to index
    %c0_256 = arith.constant 0 : index
    %c0_257 = arith.constant 0 : index
    %972 = vector.load %arg11[%971, %c0_256, %c0_257] : memref<8x8x128xbf16, #tpu.memory_space<vmem>>, vector<1x8x128xbf16>
    %973 = vector.shape_cast %972 : vector<1x8x128xbf16> to vector<8x128xbf16>
    %cst_258 = arith.constant dense<0.000000e+00> : vector<8x384xf32>
    %974 = tpu.matmul %973, %678, %cst_258 {dimension_numbers = #tpu.dot_dimension_numbers<[1], [0], [0], [1], [0, 0, 1, 1], [], []>} : vector<8x128xbf16>, vector<128x384xbf16>, vector<8x384xf32> -> vector<8x384xf32>
    %975 = arith.addf %974, %684 : vector<8x384xf32>
    %976 = arith.truncf %964 : vector<8x128xf32> to vector<8x128xbf16>
    %cst_259 = arith.constant dense<0.000000e+00> : vector<8x384xf32>
    %977 = tpu.matmul %976, %680, %cst_259 {dimension_numbers = #tpu.dot_dimension_numbers<[1], [0], [0], [1], [0, 0, 1, 1], [], []>} : vector<8x128xbf16>, vector<128x384xbf16>, vector<8x384xf32> -> vector<8x384xf32>
    %978 = vector.extract_strided_slice %975 {offsets = [0, 0], sizes = [8, 128], strides = [1, 1]} : vector<8x384xf32> to vector<8x128xf32>
    %979 = vector.extract_strided_slice %977 {offsets = [0, 0], sizes = [8, 128], strides = [1, 1]} : vector<8x384xf32> to vector<8x128xf32>
    %980 = arith.addf %978, %979 : vector<8x128xf32>
    %981 = arith.negf %980 : vector<8x128xf32>
    %982 = math.exp %981 : vector<8x128xf32>
    %cst_260 = arith.constant 1.000000e+00 : f32
    %983 = vector.broadcast %cst_260 : f32 to vector<8x128xf32>
    %984 = arith.addf %983, %982 : vector<8x128xf32>
    %985 = arith.divf %983, %984 : vector<8x128xf32>
    %986 = vector.extract_strided_slice %975 {offsets = [0, 128], sizes = [8, 128], strides = [1, 1]} : vector<8x384xf32> to vector<8x128xf32>
    %987 = vector.extract_strided_slice %977 {offsets = [0, 128], sizes = [8, 128], strides = [1, 1]} : vector<8x384xf32> to vector<8x128xf32>
    %988 = arith.addf %986, %987 : vector<8x128xf32>
    %989 = arith.negf %988 : vector<8x128xf32>
    %990 = math.exp %989 : vector<8x128xf32>
    %cst_261 = arith.constant 1.000000e+00 : f32
    %991 = vector.broadcast %cst_261 : f32 to vector<8x128xf32>
    %992 = arith.addf %991, %990 : vector<8x128xf32>
    %993 = arith.divf %991, %992 : vector<8x128xf32>
    %994 = vector.extract_strided_slice %975 {offsets = [0, 256], sizes = [8, 128], strides = [1, 1]} : vector<8x384xf32> to vector<8x128xf32>
    %995 = vector.extract_strided_slice %977 {offsets = [0, 256], sizes = [8, 128], strides = [1, 1]} : vector<8x384xf32> to vector<8x128xf32>
    %996 = arith.addf %995, %688 : vector<8x128xf32>
    %997 = arith.mulf %985, %996 : vector<8x128xf32>
    %998 = arith.addf %994, %997 : vector<8x128xf32>
    %999 = math.tanh %998 : vector<8x128xf32>
    %cst_262 = arith.constant 1.000000e+00 : f32
    %1000 = vector.broadcast %cst_262 : f32 to vector<8x128xf32>
    %1001 = arith.subf %1000, %993 : vector<8x128xf32>
    %1002 = arith.mulf %1001, %999 : vector<8x128xf32>
    %1003 = arith.mulf %993, %964 : vector<8x128xf32>
    %1004 = arith.addf %1002, %1003 : vector<8x128xf32>
    %1005 = arith.mulf %1004, %2 : vector<8x128xf32>
    %cst_263 = arith.constant dense<0.000000e+00> : vector<8xf32>
    %1006 = vector.multi_reduction <add>, %1005, %cst_263 [1] : vector<8x128xf32> to vector<8xf32>
    %1007 = vector.shape_cast %1006 : vector<8xf32> to vector<8x1xf32>
    %1008 = vector.broadcast %1007 : vector<8x1xf32> to vector<8x128xf32>
    %1009 = arith.mulf %1004, %1008 : vector<8x128xf32>
    %1010 = arith.addf %970, %1009 : vector<8x128xf32>
    %c8_i32_264 = arith.constant 8 : i32
    %cst_265 = arith.constant 1.250000e-01 : f32
    %1011 = vector.broadcast %cst_265 : f32 to vector<8x128xf32>
    %1012 = arith.mulf %1010, %1011 : vector<8x128xf32>
    %c0_266 = arith.constant 0 : index
    %c0_267 = arith.constant 0 : index
    %1013 = vector.load %arg8[%c0_266, %c0_267] : memref<1x128xf32, #tpu.memory_space<vmem>>, vector<1x128xf32>
    %1014 = vector.shape_cast %1013 : vector<1x128xf32> to vector<1x128xf32>
    %1015 = vector.broadcast %1014 : vector<1x128xf32> to vector<8x128xf32>
    %1016 = arith.mulf %1012, %1015 : vector<8x128xf32>
    %cst_268 = arith.constant dense<0.000000e+00> : vector<8xf32>
    %1017 = vector.multi_reduction <add>, %1016, %cst_268 [1] : vector<8x128xf32> to vector<8xf32>
    %1018 = vector.shape_cast %1017 : vector<8xf32> to vector<8x1xf32>
    %c0_269 = arith.constant 0 : index
    %c0_270 = arith.constant 0 : index
    %1019 = vector.load %arg9[%c0_269, %c0_270] : memref<1x1xf32, #tpu.memory_space<vmem>>, vector<1x1xf32>
    %1020 = vector.broadcast %1019 : vector<1x1xf32> to vector<8x1xf32>
    %1021 = arith.addf %1018, %1020 : vector<8x1xf32>
    %1022 = arith.negf %1021 : vector<8x1xf32>
    %1023 = math.exp %1022 : vector<8x1xf32>
    %cst_271 = arith.constant 1.000000e+00 : f32
    %1024 = vector.broadcast %cst_271 : f32 to vector<8x1xf32>
    %1025 = arith.addf %1024, %1023 : vector<8x1xf32>
    %1026 = arith.divf %1024, %1025 : vector<8x1xf32>
    %1027 = vector.shape_cast %1026 : vector<8x1xf32> to vector<8x1xf32>
    %1028 = vector.broadcast %1027 : vector<8x1xf32> to vector<8x128xf32>
    %c0_272 = arith.constant 0 : index
    %c0_273 = arith.constant 0 : index
    %1029 = vector.load %arg10[%c0_272, %c0_273] : memref<8x128xf32, #tpu.memory_space<vmem>>, vector<8x128xf32>
    tpu.vector_store %arg10[%c0_272, %c0_273], %1028 {strides = array<i32>} : memref<8x128xf32, #tpu.memory_space<vmem>>, vector<8x128xf32>,
    return
  }
  func.func @transform_0(%arg0: i32) -> (i32, i32, i32) {
    %c0_i32 = arith.constant 0 : i32
    %c0_i32_0 = arith.constant 0 : i32
    %c0_i32_1 = arith.constant 0 : i32
    return %arg0, %c0_i32, %c0_i32_0 : i32, i32, i32
  }
  func.func @transform_1(%arg0: i32) -> (i32, i32) {
    %c0_i32 = arith.constant 0 : i32
    %c0_i32_0 = arith.constant 0 : i32
    %c0_i32_1 = arith.constant 0 : i32
    return %c0_i32, %c0_i32_0 : i32, i32
  }
  func.func @transform_2(%arg0: i32) -> (i32, i32, i32) {
    %c0_i32 = arith.constant 0 : i32
    %c0_i32_0 = arith.constant 0 : i32
    %c0_i32_1 = arith.constant 0 : i32
    %c0_i32_2 = arith.constant 0 : i32
    return %c0_i32, %c0_i32_0, %c0_i32_1 : i32, i32, i32
  }
  func.func @transform_3(%arg0: i32) -> (i32, i32, i32) {
    %c0_i32 = arith.constant 0 : i32
    %c0_i32_0 = arith.constant 0 : i32
    %c0_i32_1 = arith.constant 0 : i32
    %c0_i32_2 = arith.constant 0 : i32
    return %c0_i32, %c0_i32_0, %c0_i32_1 : i32, i32, i32
  }
  func.func @transform_4(%arg0: i32) -> (i32, i32, i32) {
    %c0_i32 = arith.constant 0 : i32
    %c0_i32_0 = arith.constant 0 : i32
    %c0_i32_1 = arith.constant 0 : i32
    %c0_i32_2 = arith.constant 0 : i32
    return %c0_i32, %c0_i32_0, %c0_i32_1 : i32, i32, i32
  }
  func.func @transform_5(%arg0: i32) -> (i32, i32, i32) {
    %c0_i32 = arith.constant 0 : i32
    %c0_i32_0 = arith.constant 0 : i32
    %c0_i32_1 = arith.constant 0 : i32
    %c0_i32_2 = arith.constant 0 : i32
    return %c0_i32, %c0_i32_0, %c0_i32_1 : i32, i32, i32
  }
  func.func @transform_6(%arg0: i32) -> (i32, i32) {
    %c0_i32 = arith.constant 0 : i32
    %c0_i32_0 = arith.constant 0 : i32
    %c0_i32_1 = arith.constant 0 : i32
    return %c0_i32, %c0_i32_0 : i32, i32
  }
  func.func @transform_7(%arg0: i32) -> (i32, i32) {
    %c0_i32 = arith.constant 0 : i32
    %c0_i32_0 = arith.constant 0 : i32
    %c0_i32_1 = arith.constant 0 : i32
    return %c0_i32, %c0_i32_0 : i32, i32
  }
  func.func @transform_8(%arg0: i32) -> (i32, i32) {
    %c0_i32 = arith.constant 0 : i32
    %c0_i32_0 = arith.constant 0 : i32
    %c0_i32_1 = arith.constant 0 : i32
    return %c0_i32, %c0_i32_0 : i32, i32
  }
  func.func @transform_9(%arg0: i32) -> (i32, i32) {
    %c0_i32 = arith.constant 0 : i32
    %c0_i32_0 = arith.constant 0 : i32
    return %arg0, %c0_i32 : i32, i32
  }
}

</mosaic_0001>

<llo_original>
// kernel: event_sequence_encoder.1
$region0: #{event_sequence_encoder.1}
  #allocation0 [shape = 'u32[]', space=smem, size = 0x4, offset = 0x4, fixed_abs, tag = 'smem constant byte address 0x4 - core index']
  #allocation1 [shape = 'u32[72,128]{1,0:T(1,128)}', space=vmem, size = 0x9000, scoped, tag = 'internal scratch']
  #allocation2 [shape = 'bf16[8,8,128]{2,1,0:T(8,128)(2,1)}', space=vmem, size = 0x4000, scoped, tag = 'scratch operand']
  #allocation3 [shape = 'f32[1,1]{1,0:T(1,128)S(1)}', space=vmem, size = 0x200, scoped, tag = 'scoped memory for event_sequence_encoder.1']
  %s0 = inlined_call_operand.vmem [shape: s32[1,8,8], index: 0, kind: input, shape index: {}]
  %s1 = inlined_call_operand.hbm [shape: bf16[128,384], index: 1, kind: input, shape index: {}]
  %s2 = inlined_call_operand.hbm [shape: bf16[2,128,384], index: 2, kind: input, shape index: {}]
  %s3 = inlined_call_operand.hbm [shape: bf16[3,128,384], index: 3, kind: input, shape index: {}]
  %s4 = inlined_call_operand.vmem [shape: f32[3,1,384], index: 4, kind: input, shape index: {}]
  %s5 = inlined_call_operand.vmem [shape: f32[3,1,128], index: 5, kind: input, shape index: {}]
  %s6 = inlined_call_operand.vmem [shape: f32[1,128], index: 6, kind: input, shape index: {}]
  %s7 = inlined_call_operand.vmem [shape: f32[1,128], index: 7, kind: input, shape index: {}]
  %s8 = inlined_call_operand.<no memory space> [shape: f32[1,1], index: 8, kind: input, shape index: {}]
  %s9 = inlined_call_operand.vmem [shape: f32[8,128], index: 9, kind: output, shape index: {}]
  %s10 = sld [smem:[#allocation0]]
  $region58: #{event_sequence_encoder.1} parent=0
    _
  %s12 = ssub.s32 1, %s10
  %s13 = scalar_select 0, %s12, %s10
  %v14 = vstv %s8
  %15 = vst [vmem:[#allocation3] sm:$0x1] %v14
  $region1: #{event_sequence_encoder.1} parent=0
    #allocation4 [shape = 'u8[98304]{0}', space=vmem, size = 0x18000, scoped, tag = 'input window, operand 1, single buffered']
    #allocation5 [shape = 's32[1]{0}', space=sflag, size = 0x4, scoped, tag = 'scoped memory for event_sequence_encoder.1']
    #allocation6 [shape = 'u8[196608]{0}', space=vmem, size = 0x30000, scoped, tag = 'input window, operand 2, single buffered']
    #allocation7 [shape = 's32[1]{0}', space=sflag, size = 0x4, scoped, tag = 'scoped memory for event_sequence_encoder.1']
    #allocation8 [shape = 'u8[294912]{0}', space=vmem, size = 0x48000, scoped, tag = 'input window, operand 3, single buffered']
    %16 = vsyncpa [#allocation5], 0
    %17 = vsyncpa [#allocation7], 0
    // Predicated region
    $region2: #{event_sequence_encoder.1} parent=1 // pred_check
      _
    $region3: #{event_sequence_encoder.1} parent=1 // pred_check_branch
      %19 = sbr.rel (0) target = $region5
    $region4: #{event_sequence_encoder.1} parent=1 // pred_region
      _
    $region5: #{event_sequence_encoder.1} parent=1 // pred_fallthru
      _
    // Predicated region
    $region6: #{event_sequence_encoder.1} parent=1 // pred_check
      _
    $region7: #{event_sequence_encoder.1} parent=1 // pred_check_branch
      %21 = sbr.rel (0) target = $region9
    $region8: #{event_sequence_encoder.1} parent=1 // pred_region
      %23 = vsyncadd [#allocation5], 0
      %s24 = sshll.u32 %s1, 4
      %s25 = int_to_ptr.hbm [resolvable:$true] %s24
      %s26 = sshll.u32 [#allocation4], 4
      %s27 = int_to_ptr.vmem [resolvable:$true] %s26
      %32 = dma.hbm_to_vmem [thread:$0]  %s25, 3072, %s27, [#allocation5], 192, 192, 12
    $region9: #{event_sequence_encoder.1} parent=1 // pred_fallthru
      _
    // Predicated region
    $region10: #{event_sequence_encoder.1} parent=1 // pred_check
      _
    $region11: #{event_sequence_encoder.1} parent=1 // pred_check_branch
      %34 = sbr.rel (0) target = $region13
    $region12: #{event_sequence_encoder.1} parent=1 // pred_region
      %36 = vsyncadd [#allocation7], 0
      %s37 = sshll.u32 %s2, 4
      %s38 = int_to_ptr.hbm [resolvable:$true] %s37
      %s39 = sshll.u32 [#allocation6], 4
      %s40 = int_to_ptr.vmem [resolvable:$true] %s39
      %45 = dma.hbm_to_vmem [thread:$0]  %s38, 6144, %s40, [#allocation7], 192, 192, 12
    $region13: #{event_sequence_encoder.1} parent=1 // pred_fallthru
      _
    // Predicated region
    $region14: #{event_sequence_encoder.1} parent=1 // pred_check
      _
    $region15: #{event_sequence_encoder.1} parent=1 // pred_check_branch
      %47 = sbr.rel (0) target = $region17
    $region16: #{event_sequence_encoder.1} parent=1 // pred_region
      %49 = vsyncadd [#allocation7], 0
      %s50 = sshll.u32 %s3, 4
      %s51 = int_to_ptr.hbm [resolvable:$true] %s50
      %s52 = sshll.u32 [#allocation8], 4
      %s53 = int_to_ptr.vmem [resolvable:$true] %s52
      %58 = dma.hbm_to_vmem [thread:$0]  %s51, 9216, %s53, [#allocation7], 192, 192, 12
    $region17: #{event_sequence_encoder.1} parent=1 // pred_fallthru
      _
    // Predicated region
    $region18: #{event_sequence_encoder.1} parent=1 // pred_check
      _
    $region19: #{event_sequence_encoder.1} parent=1 // pred_check_branch
      %60 = sbr.rel (0) target = $region21
    $region20: #{event_sequence_encoder.1} parent=1 // pred_region
      _
    $region21: #{event_sequence_encoder.1} parent=1 // pred_fallthru
      _
    // Predicated region
    $region22: #{event_sequence_encoder.1} parent=1 // pred_check
      _
    $region23: #{event_sequence_encoder.1} parent=1 // pred_check_branch
      %62 = sbr.rel (0) target = $region25
    $region24: #{event_sequence_encoder.1} parent=1 // pred_region
      _
    $region25: #{event_sequence_encoder.1} parent=1 // pred_fallthru
      _
    // Predicated region
    $region26: #{event_sequence_encoder.1} parent=1 // pred_check
      _
    $region27: #{event_sequence_encoder.1} parent=1 // pred_check_branch
      %64 = sbr.rel (0) target = $region29
    $region28: #{event_sequence_encoder.1} parent=1 // pred_region
      _
    $region29: #{event_sequence_encoder.1} parent=1 // pred_fallthru
      _
    // Predicated region
    $region30: #{event_sequence_encoder.1} parent=1 // pred_check
      _
    $region31: #{event_sequence_encoder.1} parent=1 // pred_check_branch
      %66 = sbr.rel (0) target = $region33
    $region32: #{event_sequence_encoder.1} parent=1 // pred_region
      _
    $region33: #{event_sequence_encoder.1} parent=1 // pred_fallthru
      _
    // Predicated region
    $region34: #{event_sequence_encoder.1} parent=1 // pred_check
      _
    $region35: #{event_sequence_encoder.1} parent=1 // pred_check_branch
      %68 = sbr.rel (0) target = $region37
    $region36: #{event_sequence_encoder.1} parent=1 // pred_region
      _
    $region37: #{event_sequence_encoder.1} parent=1 // pred_fallthru
      _
    // Predicated region
    $region38: #{event_sequence_encoder.1} parent=1 // pred_check
      _
    $region39: #{event_sequence_encoder.1} parent=1 // pred_check_branch
      %70 = sbr.rel (0) target = $region41
    $region40: #{event_sequence_encoder.1} parent=1 // pred_region
      %72 = dma.done [#allocation5], 3072
    $region41: #{event_sequence_encoder.1} parent=1 // pred_fallthru
      _
    // Predicated region
    $region42: #{event_sequence_encoder.1} parent=1 // pred_check
      _
    $region43: #{event_sequence_encoder.1} parent=1 // pred_check_branch
      %74 = sbr.rel (0) target = $region45
    $region44: #{event_sequence_encoder.1} parent=1 // pred_region
      %76 = dma.done [#allocation7], 6144
    $region45: #{event_sequence_encoder.1} parent=1 // pred_fallthru
      _
    // Predicated region
    $region46: #{event_sequence_encoder.1} parent=1 // pred_check
      _
    $region47: #{event_sequence_encoder.1} parent=1 // pred_check_branch
      %78 = sbr.rel (0) target = $region49
    $region48: #{event_sequence_encoder.1} parent=1 // pred_region
      %80 = dma.done [#allocation7], 9216
    $region49: #{event_sequence_encoder.1} parent=1 // pred_fallthru
      _
    %v82 = vld [vmem:[%s6] sm:$0x1]
    %v84 = vperm.slane %v82, 0
    %v86 = vlaneseq
    %v87 = vand.u32 %v86, 127
    %v88 = vld [vmem:[#allocation4] sm:$0xff]
    %v89 = vld [vmem:[#allocation4 + $0x8] sm:$0xf]
    %v90 = vld [vmem:[#allocation4 + $0xc] sm:$0xff]
    %v91 = vld [vmem:[#allocation4 + $0x14] sm:$0xf]
    %v92 = vld [vmem:[#allocation4 + $0x18] sm:$0xff]
    %v93 = vld [vmem:[#allocation4 + $0x20] sm:$0xf]
    %v94 = vld [vmem:[#allocation4 + $0x24] sm:$0xff]
    %v95 = vld [vmem:[#allocation4 + $0x2c] sm:$0xf]
    %v96 = vld [vmem:[#allocation4 + $0x30] sm:$0xff]
    %v97 = vld [vmem:[#allocation4 + $0x38] sm:$0xf]
    %v98 = vld [vmem:[#allocation4 + $0x3c] sm:$0xff]
    %v99 = vld [vmem:[#allocation4 + $0x44] sm:$0xf]
    %v100 = vld [vmem:[#allocation4 + $0x48] sm:$0xff]
    %v101 = vld [vmem:[#allocation4 + $0x50] sm:$0xf]
    %v102 = vld [vmem:[#allocation4 + $0x54] sm:$0xff]
    %v103 = vld [vmem:[#allocation4 + $0x5c] sm:$0xf]
    %v104 = vld [vmem:[#allocation4 + $0x60] sm:$0xff]
    %v105 = vld [vmem:[#allocation4 + $0x68] sm:$0xf]
    %v106 = vld [vmem:[#allocation4 + $0x6c] sm:$0xff]
    %v107 = vld [vmem:[#allocation4 + $0x74] sm:$0xf]
    %v108 = vld [vmem:[#allocation4 + $0x78] sm:$0xff]
    %v109 = vld [vmem:[#allocation4 + $0x80] sm:$0xf]
    %v110 = vld [vmem:[#allocation4 + $0x84] sm:$0xff]
    %v111 = vld [vmem:[#allocation4 + $0x8c] sm:$0xf]
    %v112 = vld [vmem:[#allocation4 + $0x90] sm:$0xff]
    %v113 = vld [vmem:[#allocation4 + $0x98] sm:$0xf]
    %v114 = vld [vmem:[#allocation4 + $0x9c] sm:$0xff]
    %v115 = vld [vmem:[#allocation4 + $0xa4] sm:$0xf]
    %v116 = vld [vmem:[#allocation4 + $0xa8] sm:$0xff]
    %v117 = vld [vmem:[#allocation4 + $0xb0] sm:$0xf]
    %v118 = vld [vmem:[#allocation4 + $0xb4] sm:$0xff]
    %v119 = vld [vmem:[#allocation4 + $0xbc] sm:$0xf]
    %v120 = vld [vmem:[#allocation8] sm:$0xff]
    %v121 = vld [vmem:[#allocation8 + $0x8] sm:$0xf]
    %v122 = vld [vmem:[#allocation8 + $0xc] sm:$0xff]
    %v123 = vld [vmem:[#allocation8 + $0x14] sm:$0xf]
    %v124 = vld [vmem:[#allocation8 + $0x18] sm:$0xff]
    %v125 = vld [vmem:[#allocation8 + $0x20] sm:$0xf]
    %v126 = vld [vmem:[#allocation8 + $0x24] sm:$0xff]
    %v127 = vld [vmem:[#allocation8 + $0x2c] sm:$0xf]
    %v128 = vld [vmem:[#allocation8 + $0x30] sm:$0xff]
    %v129 = vld [vmem:[#allocation8 + $0x38] sm:$0xf]
    %v130 = vld [vmem:[#allocation8 + $0x3c] sm:$0xff]
    %v131 = vld [vmem:[#allocation8 + $0x44] sm:$0xf]
    %v132 = vld [vmem:[#allocation8 + $0x48] sm:$0xff]
    %v133 = vld [vmem:[#allocation8 + $0x50] sm:$0xf]
    %v134 = vld [vmem:[#allocation8 + $0x54] sm:$0xff]
    %v135 = vld [vmem:[#allocation8 + $0x5c] sm:$0xf]
    %v136 = vld [vmem:[#allocation8 + $0x60] sm:$0xff]
    %v137 = vld [vmem:[#allocation8 + $0x68] sm:$0xf]
    %v138 = vld [vmem:[#allocation8 + $0x6c] sm:$0xff]
    %v139 = vld [vmem:[#allocation8 + $0x74] sm:$0xf]
    %v140 = vld [vmem:[#allocation8 + $0x78] sm:$0xff]
    %v141 = vld [vmem:[#allocation8 + $0x80] sm:$0xf]
    %v142 = vld [vmem:[#allocation8 + $0x84] sm:$0xff]
    %v143 = vld [vmem:[#allocation8 + $0x8c] sm:$0xf]
    %v144 = vld [vmem:[#allocation8 + $0x90] sm:$0xff]
    %v145 = vld [vmem:[#allocation8 + $0x98] sm:$0xf]
    %v146 = vld [vmem:[#allocation8 + $0x9c] sm:$0xff]
    %v147 = vld [vmem:[#allocation8 + $0xa4] sm:$0xf]
    %v148 = vld [vmem:[#allocation8 + $0xa8] sm:$0xff]
    %v149 = vld [vmem:[#allocation8 + $0xb0] sm:$0xf]
    %v150 = vld [vmem:[#allocation8 + $0xb4] sm:$0xff]
    %v151 = vld [vmem:[#allocation8 + $0xbc] sm:$0xf]
    %v152 = vld [vmem:[%s4] sm:$0x7]
    %v154 = vperm.slane %v152, 0
    %v155 = vperm.slane %v152, 1
    %v156 = vperm.slane %v152, 2
    %v160 = vld [vmem:[%s5] sm:$0x1]
    %v162 = vperm.slane %v160, 0
    %v164 = vld [vmem:[%s0] sm:$0xff]
    %165 = vset.pattern.permute.xlu0 0
    %166 = vperm.xlu0 %165, %v164
    %v167 = vpop.permute.xlu0 %166
    %vm168 = vcmp.eq.s32.totalorder %v167, %v87
    %v169 = vsel %vm168, 1, 0
    %v170 = vcvt.s32.f32 %v169
    %v171 = vpack.c.bf16 %v170, %v170
    %v204 = vunpack.c.l.b16 %v88
    %v205 = vunpack.c.h.b16 %v88
    %v206 = vunpack.c.l.b16 %v89
    %v207 = vunpack.c.l.b16 %v90
    %v208 = vunpack.c.h.b16 %v90
    %v209 = vunpack.c.l.b16 %v91
    %v210 = vunpack.c.l.b16 %v92
    %v211 = vunpack.c.h.b16 %v92
    %v212 = vunpack.c.l.b16 %v93
    %v213 = vunpack.c.l.b16 %v94
    %v214 = vunpack.c.h.b16 %v94
    %v215 = vunpack.c.l.b16 %v95
    %v216 = vunpack.c.l.b16 %v96
    %v217 = vunpack.c.h.b16 %v96
    %v218 = vunpack.c.l.b16 %v97
    %v219 = vunpack.c.l.b16 %v98
    %v220 = vunpack.c.h.b16 %v98
    %v221 = vunpack.c.l.b16 %v99
    %v222 = vunpack.c.l.b16 %v100
    %v223 = vunpack.c.h.b16 %v100
    %v224 = vunpack.c.l.b16 %v101
    %v225 = vunpack.c.l.b16 %v102
    %v226 = vunpack.c.h.b16 %v102
    %v227 = vunpack.c.l.b16 %v103
    %v228 = vunpack.c.l.b16 %v104
    %v229 = vunpack.c.h.b16 %v104
    %v230 = vunpack.c.l.b16 %v105
    %v231 = vunpack.c.l.b16 %v106
    %v232 = vunpack.c.h.b16 %v106
    %v233 = vunpack.c.l.b16 %v107
    %v234 = vunpack.c.l.b16 %v108
    %v235 = vunpack.c.h.b16 %v108
    %v236 = vunpack.c.l.b16 %v109
    %v237 = vunpack.c.l.b16 %v110
    %v238 = vunpack.c.h.b16 %v110
    %v239 = vunpack.c.l.b16 %v111
    %v240 = vunpack.c.l.b16 %v112
    %v241 = vunpack.c.h.b16 %v112
    %v242 = vunpack.c.l.b16 %v113
    %v243 = vunpack.c.l.b16 %v114
    %v244 = vunpack.c.h.b16 %v114
    %v245 = vunpack.c.l.b16 %v115
    %v246 = vunpack.c.l.b16 %v116
    %v247 = vunpack.c.h.b16 %v116
    %v248 = vunpack.c.l.b16 %v117
    %v249 = vunpack.c.l.b16 %v118
    %v250 = vunpack.c.h.b16 %v118
    %v251 = vunpack.c.l.b16 %v119
    %v252 = vpack.c.b16 %v207, %v204
    %v253 = vpack.c.b16 %v208, %v205
    %v254 = vpack.c.b16 %v209, %v206
    %v255 = vpack.c.b16 %v213, %v210
    %v256 = vpack.c.b16 %v214, %v211
    %v257 = vpack.c.b16 %v215, %v212
    %v258 = vpack.c.b16 %v219, %v216
    %v259 = vpack.c.b16 %v220, %v217
    %v260 = vpack.c.b16 %v221, %v218
    %v261 = vpack.c.b16 %v225, %v222
    %v262 = vpack.c.b16 %v226, %v223
    %v263 = vpack.c.b16 %v227, %v224
    %v264 = vpack.c.b16 %v231, %v228
    %v265 = vpack.c.b16 %v232, %v229
    %v266 = vpack.c.b16 %v233, %v230
    %v267 = vpack.c.b16 %v237, %v234
    %v268 = vpack.c.b16 %v238, %v235
    %v269 = vpack.c.b16 %v239, %v236
    %v270 = vpack.c.b16 %v243, %v240
    %v271 = vpack.c.b16 %v244, %v241
    %v272 = vpack.c.b16 %v245, %v242
    %v273 = vpack.c.b16 %v249, %v246
    %v274 = vpack.c.b16 %v250, %v247
    %v275 = vpack.c.b16 %v251, %v248
    %300 = vmatpush.bf16.msra.mxu0 %v273
    %301 = vmatpush.bf16.msra.mxu0 %v270
    %302 = vmatpush.bf16.msra.mxu0 %v267
    %303 = vmatpush.bf16.msra.mxu0 %v264
    %304 = vmatpush.bf16.msra.mxu0 %v261
    %305 = vmatpush.bf16.msra.mxu0 %v258
    %306 = vmatpush.bf16.msra.mxu0 %v255
    %307 = vmatpush.bf16.msra.mxu0 %v252
    %308 = vmatmul.bf16.gmra.mxu0 %v171
    %v309 = vpop.f32.mrf.mxu0
    %v310 = vadd.f32 %v154, %v309
    %v311 = vpop.f32.mrf.mxu0
    %312 = vdwg.mxu0
    %313 = vmatpush.bf16.msra.mxu0 %v274
    %314 = vmatpush.bf16.msra.mxu0 %v271
    %315 = vmatpush.bf16.msra.mxu0 %v268
    %316 = vmatpush.bf16.msra.mxu0 %v265
    %317 = vmatpush.bf16.msra.mxu0 %v262
    %318 = vmatpush.bf16.msra.mxu0 %v259
    %319 = vmatpush.bf16.msra.mxu0 %v256
    %320 = vmatpush.bf16.msra.mxu0 %v253
    %321 = vmatmul.bf16.gmra.mxu0 %v171
    %v322 = vpop.f32.mrf.mxu0
    %v323 = vadd.f32 %v155, %v322
    %v324 = vpop.f32.mrf.mxu0
    %325 = vdwg.mxu0
    %326 = vmatpush.bf16.msra.mxu0 %v275
    %327 = vmatpush.bf16.msra.mxu0 %v272
    %328 = vmatpush.bf16.msra.mxu0 %v269
    %329 = vmatpush.bf16.msra.mxu0 %v266
    %330 = vmatpush.bf16.msra.mxu0 %v263
    %331 = vmatpush.bf16.msra.mxu0 %v260
    %332 = vmatpush.bf16.msra.mxu0 %v257
    %333 = vmatpush.bf16.msra.mxu0 %v254
    %334 = vmatmul.bf16.gmra.mxu0 %v171
    %v335 = vpop.f32.mrf.mxu0
    %v336 = vadd.f32 %v156, %v335
    %v337 = vpop.f32.mrf.mxu0
    %338 = vdwg.mxu0
    %v371 = vunpack.c.l.b16 %v120
    %v372 = vunpack.c.h.b16 %v120
    %v373 = vunpack.c.l.b16 %v121
    %v374 = vunpack.c.l.b16 %v122
    %v375 = vunpack.c.h.b16 %v122
    %v376 = vunpack.c.l.b16 %v123
    %v377 = vunpack.c.l.b16 %v124
    %v378 = vunpack.c.h.b16 %v124
    %v379 = vunpack.c.l.b16 %v125
    %v380 = vunpack.c.l.b16 %v126
    %v381 = vunpack.c.h.b16 %v126
    %v382 = vunpack.c.l.b16 %v127
    %v383 = vunpack.c.l.b16 %v128
    %v384 = vunpack.c.h.b16 %v128
    %v385 = vunpack.c.l.b16 %v129
    %v386 = vunpack.c.l.b16 %v130
    %v387 = vunpack.c.h.b16 %v130
    %v388 = vunpack.c.l.b16 %v131
    %v389 = vunpack.c.l.b16 %v132
    %v390 = vunpack.c.h.b16 %v132
    %v391 = vunpack.c.l.b16 %v133
    %v392 = vunpack.c.l.b16 %v134
    %v393 = vunpack.c.h.b16 %v134
    %v394 = vunpack.c.l.b16 %v135
    %v395 = vunpack.c.l.b16 %v136
    %v396 = vunpack.c.h.b16 %v136
    %v397 = vunpack.c.l.b16 %v137
    %v398 = vunpack.c.l.b16 %v138
    %v399 = vunpack.c.h.b16 %v138
    %v400 = vunpack.c.l.b16 %v139
    %v401 = vunpack.c.l.b16 %v140
    %v402 = vunpack.c.h.b16 %v140
    %v403 = vunpack.c.l.b16 %v141
    %v404 = vunpack.c.l.b16 %v142
    %v405 = vunpack.c.h.b16 %v142
    %v406 = vunpack.c.l.b16 %v143
    %v407 = vunpack.c.l.b16 %v144
    %v408 = vunpack.c.h.b16 %v144
    %v409 = vunpack.c.l.b16 %v145
    %v410 = vunpack.c.l.b16 %v146
    %v411 = vunpack.c.h.b16 %v146
    %v412 = vunpack.c.l.b16 %v147
    %v413 = vunpack.c.l.b16 %v148
    %v414 = vunpack.c.h.b16 %v148
    %v415 = vunpack.c.l.b16 %v149
    %v416 = vunpack.c.l.b16 %v150
    %v417 = vunpack.c.h.b16 %v150
    %v418 = vunpack.c.l.b16 %v151
    %v419 = vpack.c.b16 %v374, %v371
    %v420 = vpack.c.b16 %v375, %v372
    %v421 = vpack.c.b16 %v376, %v373
    %v422 = vpack.c.b16 %v380, %v377
    %v423 = vpack.c.b16 %v381, %v378
    %v424 = vpack.c.b16 %v382, %v379
    %v425 = vpack.c.b16 %v386, %v383
    %v426 = vpack.c.b16 %v387, %v384
    %v427 = vpack.c.b16 %v388, %v385
    %v428 = vpack.c.b16 %v392, %v389
    %v429 = vpack.c.b16 %v393, %v390
    %v430 = vpack.c.b16 %v394, %v391
    %v431 = vpack.c.b16 %v398, %v395
    %v432 = vpack.c.b16 %v399, %v396
    %v433 = vpack.c.b16 %v400, %v397
    %v434 = vpack.c.b16 %v404, %v401
    %v435 = vpack.c.b16 %v405, %v402
    %v436 = vpack.c.b16 %v406, %v403
    %v437 = vpack.c.b16 %v410, %v407
    %v438 = vpack.c.b16 %v411, %v408
    %v439 = vpack.c.b16 %v412, %v409
    %v440 = vpack.c.b16 %v416, %v413
    %v441 = vpack.c.b16 %v417, %v414
    %v442 = vpack.c.b16 %v418, %v415
    %467 = vmatpush.bf16.msra.mxu0 %v440
    %468 = vmatpush.bf16.msra.mxu0 %v437
    %469 = vmatpush.bf16.msra.mxu0 %v434
    %470 = vmatpush.bf16.msra.mxu0 %v431
    %471 = vmatpush.bf16.msra.mxu0 %v428
    %472 = vmatpush.bf16.msra.mxu0 %v425
    %473 = vmatpush.bf16.msra.mxu0 %v422
    %474 = vmatpush.bf16.msra.mxu0 %v419
    %475 = vmatmul.bf16.gmra.mxu0 0
    %v476 = vpop.f32.mrf.mxu0
    %v477 = vadd.f32 0.0, %v476
    %v478 = vpop.f32.mrf.mxu0
    %479 = vdwg.mxu0
    %480 = vmatpush.bf16.msra.mxu0 %v441
    %481 = vmatpush.bf16.msra.mxu0 %v438
    %482 = vmatpush.bf16.msra.mxu0 %v435
    %483 = vmatpush.bf16.msra.mxu0 %v432
    %484 = vmatpush.bf16.msra.mxu0 %v429
    %485 = vmatpush.bf16.msra.mxu0 %v426
    %486 = vmatpush.bf16.msra.mxu0 %v423
    %487 = vmatpush.bf16.msra.mxu0 %v420
    %488 = vmatmul.bf16.gmra.mxu0 0
    %v489 = vpop.f32.mrf.mxu0
    %v490 = vadd.f32 0.0, %v489
    %v491 = vpop.f32.mrf.mxu0
    %492 = vdwg.mxu0
    %493 = vmatpush.bf16.msra.mxu0 %v442
    %494 = vmatpush.bf16.msra.mxu0 %v439
    %495 = vmatpush.bf16.msra.mxu0 %v436
    %496 = vmatpush.bf16.msra.mxu0 %v433
    %497 = vmatpush.bf16.msra.mxu0 %v430
    %498 = vmatpush.bf16.msra.mxu0 %v427
    %499 = vmatpush.bf16.msra.mxu0 %v424
    %500 = vmatpush.bf16.msra.mxu0 %v421
    %501 = vmatmul.bf16.gmra.mxu0 0
    %v502 = vpop.f32.mrf.mxu0
    %v503 = vadd.f32 0.0, %v502
    %v504 = vpop.f32.mrf.mxu0
    %505 = vdwg.mxu0
    %v506 = vadd.f32 %v310, %v477
    %v507 = vxor.u32 %v506, 2147483648
    %v508 = vmul.f32 %v507, 1.442695
    %v509 = vpow.pop %v508
    %v510 = vadd.f32 %v509, 1.0
    %v511 = vrcp.pop %v510
    %v512 = vmul.f32 %v510, %v511
    %v513 = vsub.f32 1.0, %v512
    %v514 = vmul.f32 %v511, %v513
    %v515 = vadd.f32 %v511, %v514
    %vm516 = vweird.f32 %v510
    %vm517 = vweird.f32 %v511
    %vm518 = vmor %vm516, %vm517
    %v519 = vsel %vm518, %v511, %v515
    %v520 = vand.u32 2147483647, %v510
    %vm521 = vcmp.eq.f32.partialorder %v520, 8.507059e+37
    %v522 = vand.u32 %v510, 2147483648
    %v523 = vor.u32 1.1754944e-38, %v522
    %v524 = vsel %vm521, %v523, %v519
    %v525 = vmul.f32 1.0, %v524
    %v526 = vadd.f32 %v323, %v490
    %v527 = vxor.u32 %v526, 2147483648
    %v528 = vmul.f32 %v527, 1.442695
    %v529 = vpow.pop %v528
    %v530 = vadd.f32 %v529, 1.0
    %v531 = vrcp.pop %v530
    %v532 = vmul.f32 %v530, %v531
    %v533 = vsub.f32 1.0, %v532
    %v534 = vmul.f32 %v531, %v533
    %v535 = vadd.f32 %v531, %v534
    %vm536 = vweird.f32 %v530
    %vm537 = vweird.f32 %v531
    %vm538 = vmor %vm536, %vm537
    %v539 = vsel %vm538, %v531, %v535
    %v540 = vand.u32 2147483647, %v530
    %vm541 = vcmp.eq.f32.partialorder %v540, 8.507059e+37
    %v542 = vand.u32 %v530, 2147483648
    %v543 = vor.u32 1.1754944e-38, %v542
    %v544 = vsel %vm541, %v543, %v539
    %v545 = vmul.f32 1.0, %v544
    %v546 = vadd.f32 %v503, %v162
    %v547 = vmul.f32 %v525, %v546
    %v548 = vadd.f32 %v336, %v547
    %v549 = vtanh.pop %v548
    %v550 = vsub.f32 1.0, %v545
    %v551 = vmul.f32 %v550, %v549
    %v552 = vmul.f32 %v545, 0.0
    %v553 = vadd.f32 %v551, %v552
    %v554 = vpack.c.bf16 %v553, %v553
    %555 = vst [vmem:[#allocation2] sm:$0xf] %v554
    %v556 = vld [vmem:[%s0] sm:$0xff]
    %557 = vset.pattern.permute.xlu0 1
    %558 = vperm.xlu0 %557, %v556
    %v559 = vpop.permute.xlu0 %558
    %vm560 = vcmp.eq.s32.totalorder %v559, %v87
    %v561 = vsel %vm560, 1, 0
    %v562 = vcvt.s32.f32 %v561
    %v563 = vpack.c.bf16 %v562, %v562
    %564 = vmatpush.bf16.msra.mxu0 %v273
    %565 = vmatpush.bf16.msra.mxu0 %v270
    %566 = vmatpush.bf16.msra.mxu0 %v267
    %567 = vmatpush.bf16.msra.mxu0 %v264
    %568 = vmatpush.bf16.msra.mxu0 %v261
    %569 = vmatpush.bf16.msra.mxu0 %v258
    %570 = vmatpush.bf16.msra.mxu0 %v255
    %571 = vmatpush.bf16.msra.mxu0 %v252
    %572 = vmatmul.bf16.gmra.mxu0 %v563
    %v573 = vpop.f32.mrf.mxu0
    %v574 = vadd.f32 %v154, %v573
    %v575 = vpop.f32.mrf.mxu0
    %576 = vdwg.mxu0
    %577 = vmatpush.bf16.msra.mxu0 %v274
    %578 = vmatpush.bf16.msra.mxu0 %v271
    %579 = vmatpush.bf16.msra.mxu0 %v268
    %580 = vmatpush.bf16.msra.mxu0 %v265
    %581 = vmatpush.bf16.msra.mxu0 %v262
    %582 = vmatpush.bf16.msra.mxu0 %v259
    %583 = vmatpush.bf16.msra.mxu0 %v256
    %584 = vmatpush.bf16.msra.mxu0 %v253
    %585 = vmatmul.bf16.gmra.mxu0 %v563
    %v586 = vpop.f32.mrf.mxu0
    %v587 = vadd.f32 %v155, %v586
    %v588 = vpop.f32.mrf.mxu0
    %589 = vdwg.mxu0
    %590 = vmatpush.bf16.msra.mxu0 %v275
    %591 = vmatpush.bf16.msra.mxu0 %v272
    %592 = vmatpush.bf16.msra.mxu0 %v269
    %593 = vmatpush.bf16.msra.mxu0 %v266
    %594 = vmatpush.bf16.msra.mxu0 %v263
    %595 = vmatpush.bf16.msra.mxu0 %v260
    %596 = vmatpush.bf16.msra.mxu0 %v257
    %597 = vmatpush.bf16.msra.mxu0 %v254
    %598 = vmatmul.bf16.gmra.mxu0 %v563
    %v599 = vpop.f32.mrf.mxu0
    %v600 = vadd.f32 %v156, %v599
    %v601 = vpop.f32.mrf.mxu0
    %602 = vdwg.mxu0
    %603 = vmatpush.bf16.msra.mxu0 %v440
    %604 = vmatpush.bf16.msra.mxu0 %v437
    %605 = vmatpush.bf16.msra.mxu0 %v434
    %606 = vmatpush.bf16.msra.mxu0 %v431
    %607 = vmatpush.bf16.msra.mxu0 %v428
    %608 = vmatpush.bf16.msra.mxu0 %v425
    %609 = vmatpush.bf16.msra.mxu0 %v422
    %610 = vmatpush.bf16.msra.mxu0 %v419
    %611 = vmatmul.bf16.gmra.mxu0 %v554
    %v612 = vpop.f32.mrf.mxu0
    %v613 = vadd.f32 0.0, %v612
    %v614 = vpop.f32.mrf.mxu0
    %615 = vdwg.mxu0
    %616 = vmatpush.bf16.msra.mxu0 %v441
    %617 = vmatpush.bf16.msra.mxu0 %v438
    %618 = vmatpush.bf16.msra.mxu0 %v435
    %619 = vmatpush.bf16.msra.mxu0 %v432
    %620 = vmatpush.bf16.msra.mxu0 %v429
    %621 = vmatpush.bf16.msra.mxu0 %v426
    %622 = vmatpush.bf16.msra.mxu0 %v423
    %623 = vmatpush.bf16.msra.mxu0 %v420
    %624 = vmatmul.bf16.gmra.mxu0 %v554
    %v625 = vpop.f32.mrf.mxu0
    %v626 = vadd.f32 0.0, %v625
    %v627 = vpop.f32.mrf.mxu0
    %628 = vdwg.mxu0
    %629 = vmatpush.bf16.msra.mxu0 %v442
    %630 = vmatpush.bf16.msra.mxu0 %v439
    %631 = vmatpush.bf16.msra.mxu0 %v436
    %632 = vmatpush.bf16.msra.mxu0 %v433
    %633 = vmatpush.bf16.msra.mxu0 %v430
    %634 = vmatpush.bf16.msra.mxu0 %v427
    %635 = vmatpush.bf16.msra.mxu0 %v424
    %636 = vmatpush.bf16.msra.mxu0 %v421
    %637 = vmatmul.bf16.gmra.mxu0 %v554
    %v638 = vpop.f32.mrf.mxu0
    %v639 = vadd.f32 0.0, %v638
    %v640 = vpop.f32.mrf.mxu0
    %641 = vdwg.mxu0
    %v642 = vadd.f32 %v574, %v613
    %v643 = vxor.u32 %v642, 2147483648
    %v644 = vmul.f32 %v643, 1.442695
    %v645 = vpow.pop %v644
    %v646 = vadd.f32 %v645, 1.0
    %v647 = vrcp.pop %v646
    %v648 = vmul.f32 %v646, %v647
    %v649 = vsub.f32 1.0, %v648
    %v650 = vmul.f32 %v647, %v649
    %v651 = vadd.f32 %v647, %v650
    %vm652 = vweird.f32 %v646
    %vm653 = vweird.f32 %v647
    %vm654 = vmor %vm652, %vm653
    %v655 = vsel %vm654, %v647, %v651
    %v656 = vand.u32 2147483647, %v646
    %vm657 = vcmp.eq.f32.partialorder %v656, 8.507059e+37
    %v658 = vand.u32 %v646, 2147483648
    %v659 = vor.u32 1.1754944e-38, %v658
    %v660 = vsel %vm657, %v659, %v655
    %v661 = vmul.f32 1.0, %v660
    %v662 = vadd.f32 %v587, %v626
    %v663 = vxor.u32 %v662, 2147483648
    %v664 = vmul.f32 %v663, 1.442695
    %v665 = vpow.pop %v664
    %v666 = vadd.f32 %v665, 1.0
    %v667 = vrcp.pop %v666
    %v668 = vmul.f32 %v666, %v667
    %v669 = vsub.f32 1.0, %v668
    %v670 = vmul.f32 %v667, %v669
    %v671 = vadd.f32 %v667, %v670
    %vm672 = vweird.f32 %v666
    %vm673 = vweird.f32 %v667
    %vm674 = vmor %vm672, %vm673
    %v675 = vsel %vm674, %v667, %v671
    %v676 = vand.u32 2147483647, %v666
    %vm677 = vcmp.eq.f32.partialorder %v676, 8.507059e+37
    %v678 = vand.u32 %v666, 2147483648
    %v679 = vor.u32 1.1754944e-38, %v678
    %v680 = vsel %vm677, %v679, %v675
    %v681 = vmul.f32 1.0, %v680
    %v682 = vadd.f32 %v639, %v162
    %v683 = vmul.f32 %v661, %v682
    %v684 = vadd.f32 %v600, %v683
    %v685 = vtanh.pop %v684
    %v686 = vsub.f32 1.0, %v681
    %v687 = vmul.f32 %v686, %v685
    %v688 = vmul.f32 %v681, %v553
    %v689 = vadd.f32 %v687, %v688
    %v690 = vpack.c.bf16 %v689, %v689
    %s691 = scalar_lea.vmem [#allocation2], 4
    %692 = vst [vmem:[%s691] sm:$0xf] %v690
    %v693 = vld [vmem:[%s0] sm:$0xff]
    %694 = vset.pattern.permute.xlu0 2
    %695 = vperm.xlu0 %694, %v693
    %v696 = vpop.permute.xlu0 %695
    %vm697 = vcmp.eq.s32.totalorder %v696, %v87
    %v698 = vsel %vm697, 1, 0
    %v699 = vcvt.s32.f32 %v698
    %v700 = vpack.c.bf16 %v699, %v699
    %701 = vmatpush.bf16.msra.mxu0 %v273
    %702 = vmatpush.bf16.msra.mxu0 %v270
    %703 = vmatpush.bf16.msra.mxu0 %v267
    %704 = vmatpush.bf16.msra.mxu0 %v264
    %705 = vmatpush.bf16.msra.mxu0 %v261
    %706 = vmatpush.bf16.msra.mxu0 %v258
    %707 = vmatpush.bf16.msra.mxu0 %v255
    %708 = vmatpush.bf16.msra.mxu0 %v252
    %709 = vmatmul.bf16.gmra.mxu0 %v700
    %v710 = vpop.f32.mrf.mxu0
    %v711 = vadd.f32 %v154, %v710
    %v712 = vpop.f32.mrf.mxu0
    %713 = vdwg.mxu0
    %714 = vmatpush.bf16.msra.mxu0 %v274
    %715 = vmatpush.bf16.msra.mxu0 %v271
    %716 = vmatpush.bf16.msra.mxu0 %v268
    %717 = vmatpush.bf16.msra.mxu0 %v265
    %718 = vmatpush.bf16.msra.mxu0 %v262
    %719 = vmatpush.bf16.msra.mxu0 %v259
    %720 = vmatpush.bf16.msra.mxu0 %v256
    %721 = vmatpush.bf16.msra.mxu0 %v253
    %722 = vmatmul.bf16.gmra.mxu0 %v700
    %v723 = vpop.f32.mrf.mxu0
    %v724 = vadd.f32 %v155, %v723
    %v725 = vpop.f32.mrf.mxu0
    %726 = vdwg.mxu0
    %727 = vmatpush.bf16.msra.mxu0 %v275
    %728 = vmatpush.bf16.msra.mxu0 %v272
    %729 = vmatpush.bf16.msra.mxu0 %v269
    %730 = vmatpush.bf16.msra.mxu0 %v266
    %731 = vmatpush.bf16.msra.mxu0 %v263
    %732 = vmatpush.bf16.msra.mxu0 %v260
    %733 = vmatpush.bf16.msra.mxu0 %v257
    %734 = vmatpush.bf16.msra.mxu0 %v254
    %735 = vmatmul.bf16.gmra.mxu0 %v700
    %v736 = vpop.f32.mrf.mxu0
    %v737 = vadd.f32 %v156, %v736
    %v738 = vpop.f32.mrf.mxu0
    %739 = vdwg.mxu0
    %740 = vmatpush.bf16.msra.mxu0 %v440
    %741 = vmatpush.bf16.msra.mxu0 %v437
    %742 = vmatpush.bf16.msra.mxu0 %v434
    %743 = vmatpush.bf16.msra.mxu0 %v431
    %744 = vmatpush.bf16.msra.mxu0 %v428
    %745 = vmatpush.bf16.msra.mxu0 %v425
    %746 = vmatpush.bf16.msra.mxu0 %v422
    %747 = vmatpush.bf16.msra.mxu0 %v419
    %748 = vmatmul.bf16.gmra.mxu0 %v690
    %v749 = vpop.f32.mrf.mxu0
    %v750 = vadd.f32 0.0, %v749
    %v751 = vpop.f32.mrf.mxu0
    %752 = vdwg.mxu0
    %753 = vmatpush.bf16.msra.mxu0 %v441
    %754 = vmatpush.bf16.msra.mxu0 %v438
    %755 = vmatpush.bf16.msra.mxu0 %v435
    %756 = vmatpush.bf16.msra.mxu0 %v432
    %757 = vmatpush.bf16.msra.mxu0 %v429
    %758 = vmatpush.bf16.msra.mxu0 %v426
    %759 = vmatpush.bf16.msra.mxu0 %v423
    %760 = vmatpush.bf16.msra.mxu0 %v420
    %761 = vmatmul.bf16.gmra.mxu0 %v690
    %v762 = vpop.f32.mrf.mxu0
    %v763 = vadd.f32 0.0, %v762
    %v764 = vpop.f32.mrf.mxu0
    %765 = vdwg.mxu0
    %766 = vmatpush.bf16.msra.mxu0 %v442
    %767 = vmatpush.bf16.msra.mxu0 %v439
    %768 = vmatpush.bf16.msra.mxu0 %v436
    %769 = vmatpush.bf16.msra.mxu0 %v433
    %770 = vmatpush.bf16.msra.mxu0 %v430
    %771 = vmatpush.bf16.msra.mxu0 %v427
    %772 = vmatpush.bf16.msra.mxu0 %v424
    %773 = vmatpush.bf16.msra.mxu0 %v421
    %774 = vmatmul.bf16.gmra.mxu0 %v690
    %v775 = vpop.f32.mrf.mxu0
    %v776 = vadd.f32 0.0, %v775
    %v777 = vpop.f32.mrf.mxu0
    %778 = vdwg.mxu0
    %v779 = vadd.f32 %v711, %v750
    %v780 = vxor.u32 %v779, 2147483648
    %v781 = vmul.f32 %v780, 1.442695
    %v782 = vpow.pop %v781
    %v783 = vadd.f32 %v782, 1.0
    %v784 = vrcp.pop %v783
    %v785 = vmul.f32 %v783, %v784
    %v786 = vsub.f32 1.0, %v785
    %v787 = vmul.f32 %v784, %v786
    %v788 = vadd.f32 %v784, %v787
    %vm789 = vweird.f32 %v783
    %vm790 = vweird.f32 %v784
    %vm791 = vmor %vm789, %vm790
    %v792 = vsel %vm791, %v784, %v788
    %v793 = vand.u32 2147483647, %v783
    %vm794 = vcmp.eq.f32.partialorder %v793, 8.507059e+37
    %v795 = vand.u32 %v783, 2147483648
    %v796 = vor.u32 1.1754944e-38, %v795
    %v797 = vsel %vm794, %v796, %v792
    %v798 = vmul.f32 1.0, %v797
    %v799 = vadd.f32 %v724, %v763
    %v800 = vxor.u32 %v799, 2147483648
    %v801 = vmul.f32 %v800, 1.442695
    %v802 = vpow.pop %v801
    %v803 = vadd.f32 %v802, 1.0
    %v804 = vrcp.pop %v803
    %v805 = vmul.f32 %v803, %v804
    %v806 = vsub.f32 1.0, %v805
    %v807 = vmul.f32 %v804, %v806
    %v808 = vadd.f32 %v804, %v807
    %vm809 = vweird.f32 %v803
    %vm810 = vweird.f32 %v804
    %vm811 = vmor %vm809, %vm810
    %v812 = vsel %vm811, %v804, %v808
    %v813 = vand.u32 2147483647, %v803
    %vm814 = vcmp.eq.f32.partialorder %v813, 8.507059e+37
    %v815 = vand.u32 %v803, 2147483648
    %v816 = vor.u32 1.1754944e-38, %v815
    %v817 = vsel %vm814, %v816, %v812
    %v818 = vmul.f32 1.0, %v817
    %v819 = vadd.f32 %v776, %v162
    %v820 = vmul.f32 %v798, %v819
    %v821 = vadd.f32 %v737, %v820
    %v822 = vtanh.pop %v821
    %v823 = vsub.f32 1.0, %v818
    %v824 = vmul.f32 %v823, %v822
    %v825 = vmul.f32 %v818, %v689
    %v826 = vadd.f32 %v824, %v825
    %v827 = vpack.c.bf16 %v826, %v826
    %s828 = scalar_lea.vmem [#allocation2], 8
    %829 = vst [vmem:[%s828] sm:$0xf] %v827
    %v830 = vld [vmem:[%s0] sm:$0xff]
    %831 = vset.pattern.permute.xlu0 3
    %832 = vperm.xlu0 %831, %v830
    %v833 = vpop.permute.xlu0 %832
    %vm834 = vcmp.eq.s32.totalorder %v833, %v87
    %v835 = vsel %vm834, 1, 0
    %v836 = vcvt.s32.f32 %v835
    %v837 = vpack.c.bf16 %v836, %v836
    %838 = vmatpush.bf16.msra.mxu0 %v273
    %839 = vmatpush.bf16.msra.mxu0 %v270
    %840 = vmatpush.bf16.msra.mxu0 %v267
    %841 = vmatpush.bf16.msra.mxu0 %v264
    %842 = vmatpush.bf16.msra.mxu0 %v261
    %843 = vmatpush.bf16.msra.mxu0 %v258
    %844 = vmatpush.bf16.msra.mxu0 %v255
    %845 = vmatpush.bf16.msra.mxu0 %v252
    %846 = vmatmul.bf16.gmra.mxu0 %v837
    %v847 = vpop.f32.mrf.mxu0
    %v848 = vadd.f32 %v154, %v847
    %v849 = vpop.f32.mrf.mxu0
    %850 = vdwg.mxu0
    %851 = vmatpush.bf16.msra.mxu0 %v274
    %852 = vmatpush.bf16.msra.mxu0 %v271
    %853 = vmatpush.bf16.msra.mxu0 %v268
    %854 = vmatpush.bf16.msra.mxu0 %v265
    %855 = vmatpush.bf16.msra.mxu0 %v262
    %856 = vmatpush.bf16.msra.mxu0 %v259
    %857 = vmatpush.bf16.msra.mxu0 %v256
    %858 = vmatpush.bf16.msra.mxu0 %v253
    %859 = vmatmul.bf16.gmra.mxu0 %v837
    %v860 = vpop.f32.mrf.mxu0
    %v861 = vadd.f32 %v155, %v860
    %v862 = vpop.f32.mrf.mxu0
    %863 = vdwg.mxu0
    %864 = vmatpush.bf16.msra.mxu0 %v275
    %865 = vmatpush.bf16.msra.mxu0 %v272
    %866 = vmatpush.bf16.msra.mxu0 %v269
    %867 = vmatpush.bf16.msra.mxu0 %v266
    %868 = vmatpush.bf16.msra.mxu0 %v263
    %869 = vmatpush.bf16.msra.mxu0 %v260
    %870 = vmatpush.bf16.msra.mxu0 %v257
    %871 = vmatpush.bf16.msra.mxu0 %v254
    %872 = vmatmul.bf16.gmra.mxu0 %v837
    %v873 = vpop.f32.mrf.mxu0
    %v874 = vadd.f32 %v156, %v873
    %v875 = vpop.f32.mrf.mxu0
    %876 = vdwg.mxu0
    %877 = vmatpush.bf16.msra.mxu0 %v440
    %878 = vmatpush.bf16.msra.mxu0 %v437
    %879 = vmatpush.bf16.msra.mxu0 %v434
    %880 = vmatpush.bf16.msra.mxu0 %v431
    %881 = vmatpush.bf16.msra.mxu0 %v428
    %882 = vmatpush.bf16.msra.mxu0 %v425
    %883 = vmatpush.bf16.msra.mxu0 %v422
    %884 = vmatpush.bf16.msra.mxu0 %v419
    %885 = vmatmul.bf16.gmra.mxu0 %v827
    %v886 = vpop.f32.mrf.mxu0
    %v887 = vadd.f32 0.0, %v886
    %v888 = vpop.f32.mrf.mxu0
    %889 = vdwg.mxu0
    %890 = vmatpush.bf16.msra.mxu0 %v441
    %891 = vmatpush.bf16.msra.mxu0 %v438
    %892 = vmatpush.bf16.msra.mxu0 %v435
    %893 = vmatpush.bf16.msra.mxu0 %v432
    %894 = vmatpush.bf16.msra.mxu0 %v429
    %895 = vmatpush.bf16.msra.mxu0 %v426
    %896 = vmatpush.bf16.msra.mxu0 %v423
    %897 = vmatpush.bf16.msra.mxu0 %v420
    %898 = vmatmul.bf16.gmra.mxu0 %v827
    %v899 = vpop.f32.mrf.mxu0
    %v900 = vadd.f32 0.0, %v899
    %v901 = vpop.f32.mrf.mxu0
    %902 = vdwg.mxu0
    %903 = vmatpush.bf16.msra.mxu0 %v442
    %904 = vmatpush.bf16.msra.mxu0 %v439
    %905 = vmatpush.bf16.msra.mxu0 %v436
    %906 = vmatpush.bf16.msra.mxu0 %v433
    %907 = vmatpush.bf16.msra.mxu0 %v430
    %908 = vmatpush.bf16.msra.mxu0 %v427
    %909 = vmatpush.bf16.msra.mxu0 %v424
    %910 = vmatpush.bf16.msra.mxu0 %v421
    %911 = vmatmul.bf16.gmra.mxu0 %v827
    %v912 = vpop.f32.mrf.mxu0
    %v913 = vadd.f32 0.0, %v912
    %v914 = vpop.f32.mrf.mxu0
    %915 = vdwg.mxu0
    %v916 = vadd.f32 %v848, %v887
    %v917 = vxor.u32 %v916, 2147483648
    %v918 = vmul.f32 %v917, 1.442695
    %v919 = vpow.pop %v918
    %v920 = vadd.f32 %v919, 1.0
    %v921 = vrcp.pop %v920
    %v922 = vmul.f32 %v920, %v921
    %v923 = vsub.f32 1.0, %v922
    %v924 = vmul.f32 %v921, %v923
    %v925 = vadd.f32 %v921, %v924
    %vm926 = vweird.f32 %v920
    %vm927 = vweird.f32 %v921
    %vm928 = vmor %vm926, %vm927
    %v929 = vsel %vm928, %v921, %v925
    %v930 = vand.u32 2147483647, %v920
    %vm931 = vcmp.eq.f32.partialorder %v930, 8.507059e+37
    %v932 = vand.u32 %v920, 2147483648
    %v933 = vor.u32 1.1754944e-38, %v932
    %v934 = vsel %vm931, %v933, %v929
    %v935 = vmul.f32 1.0, %v934
    %v936 = vadd.f32 %v861, %v900
    %v937 = vxor.u32 %v936, 2147483648
    %v938 = vmul.f32 %v937, 1.442695
    %v939 = vpow.pop %v938
    %v940 = vadd.f32 %v939, 1.0
    %v941 = vrcp.pop %v940
    %v942 = vmul.f32 %v940, %v941
    %v943 = vsub.f32 1.0, %v942
    %v944 = vmul.f32 %v941, %v943
    %v945 = vadd.f32 %v941, %v944
    %vm946 = vweird.f32 %v940
    %vm947 = vweird.f32 %v941
    %vm948 = vmor %vm946, %vm947
    %v949 = vsel %vm948, %v941, %v945
    %v950 = vand.u32 2147483647, %v940
    %vm951 = vcmp.eq.f32.partialorder %v950, 8.507059e+37
    %v952 = vand.u32 %v940, 2147483648
    %v953 = vor.u32 1.1754944e-38, %v952
    %v954 = vsel %vm951, %v953, %v949
    %v955 = vmul.f32 1.0, %v954
    %v956 = vadd.f32 %v913, %v162
    %v957 = vmul.f32 %v935, %v956
    %v958 = vadd.f32 %v874, %v957
    %v959 = vtanh.pop %v958
    %v960 = vsub.f32 1.0, %v955
    %v961 = vmul.f32 %v960, %v959
    %v962 = vmul.f32 %v955, %v826
    %v963 = vadd.f32 %v961, %v962
    %v964 = vpack.c.bf16 %v963, %v963
    %s965 = scalar_lea.vmem [#allocation2], 12
    %966 = vst [vmem:[%s965] sm:$0xf] %v964
    %v967 = vld [vmem:[%s0] sm:$0xff]
    %968 = vset.pattern.permute.xlu0 4
    %969 = vperm.xlu0 %968, %v967
    %v970 = vpop.permute.xlu0 %969
    %vm971 = vcmp.eq.s32.totalorder %v970, %v87
    %v972 = vsel %vm971, 1, 0
    %v973 = vcvt.s32.f32 %v972
    %v974 = vpack.c.bf16 %v973, %v973
    %975 = vmatpush.bf16.msra.mxu0 %v273
    %976 = vmatpush.bf16.msra.mxu0 %v270
    %977 = vmatpush.bf16.msra.mxu0 %v267
    %978 = vmatpush.bf16.msra.mxu0 %v264
    %979 = vmatpush.bf16.msra.mxu0 %v261
    %980 = vmatpush.bf16.msra.mxu0 %v258
    %981 = vmatpush.bf16.msra.mxu0 %v255
    %982 = vmatpush.bf16.msra.mxu0 %v252
    %983 = vmatmul.bf16.gmra.mxu0 %v974
    %v984 = vpop.f32.mrf.mxu0
    %v985 = vadd.f32 %v154, %v984
    %v986 = vpop.f32.mrf.mxu0
    %987 = vdwg.mxu0
    %988 = vmatpush.bf16.msra.mxu0 %v274
    %989 = vmatpush.bf16.msra.mxu0 %v271
    %990 = vmatpush.bf16.msra.mxu0 %v268
    %991 = vmatpush.bf16.msra.mxu0 %v265
    %992 = vmatpush.bf16.msra.mxu0 %v262
    %993 = vmatpush.bf16.msra.mxu0 %v259
    %994 = vmatpush.bf16.msra.mxu0 %v256
    %995 = vmatpush.bf16.msra.mxu0 %v253
    %996 = vmatmul.bf16.gmra.mxu0 %v974
    %v997 = vpop.f32.mrf.mxu0
    %v998 = vadd.f32 %v155, %v997
    %v999 = vpop.f32.mrf.mxu0
    %1000 = vdwg.mxu0
    %1001 = vmatpush.bf16.msra.mxu0 %v275
    %1002 = vmatpush.bf16.msra.mxu0 %v272
    %1003 = vmatpush.bf16.msra.mxu0 %v269
    %1004 = vmatpush.bf16.msra.mxu0 %v266
    %1005 = vmatpush.bf16.msra.mxu0 %v263
    %1006 = vmatpush.bf16.msra.mxu0 %v260
    %1007 = vmatpush.bf16.msra.mxu0 %v257
    %1008 = vmatpush.bf16.msra.mxu0 %v254
    %1009 = vmatmul.bf16.gmra.mxu0 %v974
    %v1010 = vpop.f32.mrf.mxu0
    %v1011 = vadd.f32 %v156, %v1010
    %v1012 = vpop.f32.mrf.mxu0
    %1013 = vdwg.mxu0
    %1014 = vmatpush.bf16.msra.mxu0 %v440
    %1015 = vmatpush.bf16.msra.mxu0 %v437
    %1016 = vmatpush.bf16.msra.mxu0 %v434
    %1017 = vmatpush.bf16.msra.mxu0 %v431
    %1018 = vmatpush.bf16.msra.mxu0 %v428
    %1019 = vmatpush.bf16.msra.mxu0 %v425
    %1020 = vmatpush.bf16.msra.mxu0 %v422
    %1021 = vmatpush.bf16.msra.mxu0 %v419
    %1022 = vmatmul.bf16.gmra.mxu0 %v964
    %v1023 = vpop.f32.mrf.mxu0
    %v1024 = vadd.f32 0.0, %v1023
    %v1025 = vpop.f32.mrf.mxu0
    %1026 = vdwg.mxu0
    %1027 = vmatpush.bf16.msra.mxu0 %v441
    %1028 = vmatpush.bf16.msra.mxu0 %v438
    %1029 = vmatpush.bf16.msra.mxu0 %v435
    %1030 = vmatpush.bf16.msra.mxu0 %v432
    %1031 = vmatpush.bf16.msra.mxu0 %v429
    %1032 = vmatpush.bf16.msra.mxu0 %v426
    %1033 = vmatpush.bf16.msra.mxu0 %v423
    %1034 = vmatpush.bf16.msra.mxu0 %v420
    %1035 = vmatmul.bf16.gmra.mxu0 %v964
    %v1036 = vpop.f32.mrf.mxu0
    %v1037 = vadd.f32 0.0, %v1036
    %v1038 = vpop.f32.mrf.mxu0
    %1039 = vdwg.mxu0
    %1040 = vmatpush.bf16.msra.mxu0 %v442
    %1041 = vmatpush.bf16.msra.mxu0 %v439
    %1042 = vmatpush.bf16.msra.mxu0 %v436
    %1043 = vmatpush.bf16.msra.mxu0 %v433
    %1044 = vmatpush.bf16.msra.mxu0 %v430
    %1045 = vmatpush.bf16.msra.mxu0 %v427
    %1046 = vmatpush.bf16.msra.mxu0 %v424
    %1047 = vmatpush.bf16.msra.mxu0 %v421
    %1048 = vmatmul.bf16.gmra.mxu0 %v964
    %v1049 = vpop.f32.mrf.mxu0
    %v1050 = vadd.f32 0.0, %v1049
    %v1051 = vpop.f32.mrf.mxu0
    %1052 = vdwg.mxu0
    %v1053 = vadd.f32 %v985, %v1024
    %v1054 = vxor.u32 %v1053, 2147483648
    %v1055 = vmul.f32 %v1054, 1.442695
    %v1056 = vpow.pop %v1055
    %v1057 = vadd.f32 %v1056, 1.0
    %v1058 = vrcp.pop %v1057
    %v1059 = vmul.f32 %v1057, %v1058
    %v1060 = vsub.f32 1.0, %v1059
    %v1061 = vmul.f32 %v1058, %v1060
    %v1062 = vadd.f32 %v1058, %v1061
    %vm1063 = vweird.f32 %v1057
    %vm1064 = vweird.f32 %v1058
    %vm1065 = vmor %vm1063, %vm1064
    %v1066 = vsel %vm1065, %v1058, %v1062
    %v1067 = vand.u32 2147483647, %v1057
    %vm1068 = vcmp.eq.f32.partialorder %v1067, 8.507059e+37
    %v1069 = vand.u32 %v1057, 2147483648
    %v1070 = vor.u32 1.1754944e-38, %v1069
    %v1071 = vsel %vm1068, %v1070, %v1066
    %v1072 = vmul.f32 1.0, %v1071
    %v1073 = vadd.f32 %v998, %v1037
    %v1074 = vxor.u32 %v1073, 2147483648
    %v1075 = vmul.f32 %v1074, 1.442695
    %v1076 = vpow.pop %v1075
    %v1077 = vadd.f32 %v1076, 1.0
    %v1078 = vrcp.pop %v1077
    %v1079 = vmul.f32 %v1077, %v1078
    %v1080 = vsub.f32 1.0, %v1079
    %v1081 = vmul.f32 %v1078, %v1080
    %v1082 = vadd.f32 %v1078, %v1081
    %vm1083 = vweird.f32 %v1077
    %vm1084 = vweird.f32 %v1078
    %vm1085 = vmor %vm1083, %vm1084
    %v1086 = vsel %vm1085, %v1078, %v1082
    %v1087 = vand.u32 2147483647, %v1077
    %vm1088 = vcmp.eq.f32.partialorder %v1087, 8.507059e+37
    %v1089 = vand.u32 %v1077, 2147483648
    %v1090 = vor.u32 1.1754944e-38, %v1089
    %v1091 = vsel %vm1088, %v1090, %v1086
    %v1092 = vmul.f32 1.0, %v1091
    %v1093 = vadd.f32 %v1050, %v162
    %v1094 = vmul.f32 %v1072, %v1093
    %v1095 = vadd.f32 %v1011, %v1094
    %v1096 = vtanh.pop %v1095
    %v1097 = vsub.f32 1.0, %v1092
    %v1098 = vmul.f32 %v1097, %v1096
    %v1099 = vmul.f32 %v1092, %v963
    %v1100 = vadd.f32 %v1098, %v1099
    %v1101 = vpack.c.bf16 %v1100, %v1100
    %s1102 = scalar_lea.vmem [#allocation2], 16
    %1103 = vst [vmem:[%s1102] sm:$0xf] %v1101
    %v1104 = vld [vmem:[%s0] sm:$0xff]
    %1105 = vset.pattern.permute.xlu0 5
    %1106 = vperm.xlu0 %1105, %v1104
    %v1107 = vpop.permute.xlu0 %1106
    %vm1108 = vcmp.eq.s32.totalorder %v1107, %v87
    %v1109 = vsel %vm1108, 1, 0
    %v1110 = vcvt.s32.f32 %v1109
    %v1111 = vpack.c.bf16 %v1110, %v1110
    %1112 = vmatpush.bf16.msra.mxu0 %v273
    %1113 = vmatpush.bf16.msra.mxu0 %v270
    %1114 = vmatpush.bf16.msra.mxu0 %v267
    %1115 = vmatpush.bf16.msra.mxu0 %v264
    %1116 = vmatpush.bf16.msra.mxu0 %v261
    %1117 = vmatpush.bf16.msra.mxu0 %v258
    %1118 = vmatpush.bf16.msra.mxu0 %v255
    %1119 = vmatpush.bf16.msra.mxu0 %v252
    %1120 = vmatmul.bf16.gmra.mxu0 %v1111
    %v1121 = vpop.f32.mrf.mxu0
    %v1122 = vadd.f32 %v154, %v1121
    %v1123 = vpop.f32.mrf.mxu0
    %1124 = vdwg.mxu0
    %1125 = vmatpush.bf16.msra.mxu0 %v274
    %1126 = vmatpush.bf16.msra.mxu0 %v271
    %1127 = vmatpush.bf16.msra.mxu0 %v268
    %1128 = vmatpush.bf16.msra.mxu0 %v265
    %1129 = vmatpush.bf16.msra.mxu0 %v262
    %1130 = vmatpush.bf16.msra.mxu0 %v259
    %1131 = vmatpush.bf16.msra.mxu0 %v256
    %1132 = vmatpush.bf16.msra.mxu0 %v253
    %1133 = vmatmul.bf16.gmra.mxu0 %v1111
    %v1134 = vpop.f32.mrf.mxu0
    %v1135 = vadd.f32 %v155, %v1134
    %v1136 = vpop.f32.mrf.mxu0
    %1137 = vdwg.mxu0
    %1138 = vmatpush.bf16.msra.mxu0 %v275
    %1139 = vmatpush.bf16.msra.mxu0 %v272
    %1140 = vmatpush.bf16.msra.mxu0 %v269
    %1141 = vmatpush.bf16.msra.mxu0 %v266
    %1142 = vmatpush.bf16.msra.mxu0 %v263
    %1143 = vmatpush.bf16.msra.mxu0 %v260
    %1144 = vmatpush.bf16.msra.mxu0 %v257
    %1145 = vmatpush.bf16.msra.mxu0 %v254
    %1146 = vmatmul.bf16.gmra.mxu0 %v1111
    %v1147 = vpop.f32.mrf.mxu0
    %v1148 = vadd.f32 %v156, %v1147
    %v1149 = vpop.f32.mrf.mxu0
    %1150 = vdwg.mxu0
    %1151 = vmatpush.bf16.msra.mxu0 %v440
    %1152 = vmatpush.bf16.msra.mxu0 %v437
    %1153 = vmatpush.bf16.msra.mxu0 %v434
    %1154 = vmatpush.bf16.msra.mxu0 %v431
    %1155 = vmatpush.bf16.msra.mxu0 %v428
    %1156 = vmatpush.bf16.msra.mxu0 %v425
    %1157 = vmatpush.bf16.msra.mxu0 %v422
    %1158 = vmatpush.bf16.msra.mxu0 %v419
    %1159 = vmatmul.bf16.gmra.mxu0 %v1101
    %v1160 = vpop.f32.mrf.mxu0
    %v1161 = vadd.f32 0.0, %v1160
    %v1162 = vpop.f32.mrf.mxu0
    %1163 = vdwg.mxu0
    %1164 = vmatpush.bf16.msra.mxu0 %v441
    %1165 = vmatpush.bf16.msra.mxu0 %v438
    %1166 = vmatpush.bf16.msra.mxu0 %v435
    %1167 = vmatpush.bf16.msra.mxu0 %v432
    %1168 = vmatpush.bf16.msra.mxu0 %v429
    %1169 = vmatpush.bf16.msra.mxu0 %v426
    %1170 = vmatpush.bf16.msra.mxu0 %v423
    %1171 = vmatpush.bf16.msra.mxu0 %v420
    %1172 = vmatmul.bf16.gmra.mxu0 %v1101
    %v1173 = vpop.f32.mrf.mxu0
    %v1174 = vadd.f32 0.0, %v1173
    %v1175 = vpop.f32.mrf.mxu0
    %1176 = vdwg.mxu0
    %1177 = vmatpush.bf16.msra.mxu0 %v442
    %1178 = vmatpush.bf16.msra.mxu0 %v439
    %1179 = vmatpush.bf16.msra.mxu0 %v436
    %1180 = vmatpush.bf16.msra.mxu0 %v433
    %1181 = vmatpush.bf16.msra.mxu0 %v430
    %1182 = vmatpush.bf16.msra.mxu0 %v427
    %1183 = vmatpush.bf16.msra.mxu0 %v424
    %1184 = vmatpush.bf16.msra.mxu0 %v421
    %1185 = vmatmul.bf16.gmra.mxu0 %v1101
    %v1186 = vpop.f32.mrf.mxu0
    %v1187 = vadd.f32 0.0, %v1186
    %v1188 = vpop.f32.mrf.mxu0
    %1189 = vdwg.mxu0
    %v1190 = vadd.f32 %v1122, %v1161
    %v1191 = vxor.u32 %v1190, 2147483648
    %v1192 = vmul.f32 %v1191, 1.442695
    %v1193 = vpow.pop %v1192
    %v1194 = vadd.f32 %v1193, 1.0
    %v1195 = vrcp.pop %v1194
    %v1196 = vmul.f32 %v1194, %v1195
    %v1197 = vsub.f32 1.0, %v1196
    %v1198 = vmul.f32 %v1195, %v1197
    %v1199 = vadd.f32 %v1195, %v1198
    %vm1200 = vweird.f32 %v1194
    %vm1201 = vweird.f32 %v1195
    %vm1202 = vmor %vm1200, %vm1201
    %v1203 = vsel %vm1202, %v1195, %v1199
    %v1204 = vand.u32 2147483647, %v1194
    %vm1205 = vcmp.eq.f32.partialorder %v1204, 8.507059e+37
    %v1206 = vand.u32 %v1194, 2147483648
    %v1207 = vor.u32 1.1754944e-38, %v1206
    %v1208 = vsel %vm1205, %v1207, %v1203
    %v1209 = vmul.f32 1.0, %v1208
    %v1210 = vadd.f32 %v1135, %v1174
    %v1211 = vxor.u32 %v1210, 2147483648
    %v1212 = vmul.f32 %v1211, 1.442695
    %v1213 = vpow.pop %v1212
    %v1214 = vadd.f32 %v1213, 1.0
    %v1215 = vrcp.pop %v1214
    %v1216 = vmul.f32 %v1214, %v1215
    %v1217 = vsub.f32 1.0, %v1216
    %v1218 = vmul.f32 %v1215, %v1217
    %v1219 = vadd.f32 %v1215, %v1218
    %vm1220 = vweird.f32 %v1214
    %vm1221 = vweird.f32 %v1215
    %vm1222 = vmor %vm1220, %vm1221
    %v1223 = vsel %vm1222, %v1215, %v1219
    %v1224 = vand.u32 2147483647, %v1214
    %vm1225 = vcmp.eq.f32.partialorder %v1224, 8.507059e+37
    %v1226 = vand.u32 %v1214, 2147483648
    %v1227 = vor.u32 1.1754944e-38, %v1226
    %v1228 = vsel %vm1225, %v1227, %v1223
    %v1229 = vmul.f32 1.0, %v1228
    %v1230 = vadd.f32 %v1187, %v162
    %v1231 = vmul.f32 %v1209, %v1230
    %v1232 = vadd.f32 %v1148, %v1231
    %v1233 = vtanh.pop %v1232
    %v1234 = vsub.f32 1.0, %v1229
    %v1235 = vmul.f32 %v1234, %v1233
    %v1236 = vmul.f32 %v1229, %v1100
    %v1237 = vadd.f32 %v1235, %v1236
    %v1238 = vpack.c.bf16 %v1237, %v1237
    %s1239 = scalar_lea.vmem [#allocation2], 20
    %1240 = vst [vmem:[%s1239] sm:$0xf] %v1238
    %v1241 = vld [vmem:[%s0] sm:$0xff]
    %1242 = vset.pattern.permute.xlu0 6
    %1243 = vperm.xlu0 %1242, %v1241
    %v1244 = vpop.permute.xlu0 %1243
    %vm1245 = vcmp.eq.s32.totalorder %v1244, %v87
    %v1246 = vsel %vm1245, 1, 0
    %v1247 = vcvt.s32.f32 %v1246
    %v1248 = vpack.c.bf16 %v1247, %v1247
    %1249 = vmatpush.bf16.msra.mxu0 %v273
    %1250 = vmatpush.bf16.msra.mxu0 %v270
    %1251 = vmatpush.bf16.msra.mxu0 %v267
    %1252 = vmatpush.bf16.msra.mxu0 %v264
    %1253 = vmatpush.bf16.msra.mxu0 %v261
    %1254 = vmatpush.bf16.msra.mxu0 %v258
    %1255 = vmatpush.bf16.msra.mxu0 %v255
    %1256 = vmatpush.bf16.msra.mxu0 %v252
    %1257 = vmatmul.bf16.gmra.mxu0 %v1248
    %v1258 = vpop.f32.mrf.mxu0
    %v1259 = vadd.f32 %v154, %v1258
    %v1260 = vpop.f32.mrf.mxu0
    %1261 = vdwg.mxu0
    %1262 = vmatpush.bf16.msra.mxu0 %v274
    %1263 = vmatpush.bf16.msra.mxu0 %v271
    %1264 = vmatpush.bf16.msra.mxu0 %v268
    %1265 = vmatpush.bf16.msra.mxu0 %v265
    %1266 = vmatpush.bf16.msra.mxu0 %v262
    %1267 = vmatpush.bf16.msra.mxu0 %v259
    %1268 = vmatpush.bf16.msra.mxu0 %v256
    %1269 = vmatpush.bf16.msra.mxu0 %v253
    %1270 = vmatmul.bf16.gmra.mxu0 %v1248
    %v1271 = vpop.f32.mrf.mxu0
    %v1272 = vadd.f32 %v155, %v1271
    %v1273 = vpop.f32.mrf.mxu0
    %1274 = vdwg.mxu0
    %1275 = vmatpush.bf16.msra.mxu0 %v275
    %1276 = vmatpush.bf16.msra.mxu0 %v272
    %1277 = vmatpush.bf16.msra.mxu0 %v269
    %1278 = vmatpush.bf16.msra.mxu0 %v266
    %1279 = vmatpush.bf16.msra.mxu0 %v263
    %1280 = vmatpush.bf16.msra.mxu0 %v260
    %1281 = vmatpush.bf16.msra.mxu0 %v257
    %1282 = vmatpush.bf16.msra.mxu0 %v254
    %1283 = vmatmul.bf16.gmra.mxu0 %v1248
    %v1284 = vpop.f32.mrf.mxu0
    %v1285 = vadd.f32 %v156, %v1284
    %v1286 = vpop.f32.mrf.mxu0
    %1287 = vdwg.mxu0
    %1288 = vmatpush.bf16.msra.mxu0 %v440
    %1289 = vmatpush.bf16.msra.mxu0 %v437
    %1290 = vmatpush.bf16.msra.mxu0 %v434
    %1291 = vmatpush.bf16.msra.mxu0 %v431
    %1292 = vmatpush.bf16.msra.mxu0 %v428
    %1293 = vmatpush.bf16.msra.mxu0 %v425
    %1294 = vmatpush.bf16.msra.mxu0 %v422
    %1295 = vmatpush.bf16.msra.mxu0 %v419
    %1296 = vmatmul.bf16.gmra.mxu0 %v1238
    %v1297 = vpop.f32.mrf.mxu0
    %v1298 = vadd.f32 0.0, %v1297
    %v1299 = vpop.f32.mrf.mxu0
    %1300 = vdwg.mxu0
    %1301 = vmatpush.bf16.msra.mxu0 %v441
    %1302 = vmatpush.bf16.msra.mxu0 %v438
    %1303 = vmatpush.bf16.msra.mxu0 %v435
    %1304 = vmatpush.bf16.msra.mxu0 %v432
    %1305 = vmatpush.bf16.msra.mxu0 %v429
    %1306 = vmatpush.bf16.msra.mxu0 %v426
    %1307 = vmatpush.bf16.msra.mxu0 %v423
    %1308 = vmatpush.bf16.msra.mxu0 %v420
    %1309 = vmatmul.bf16.gmra.mxu0 %v1238
    %v1310 = vpop.f32.mrf.mxu0
    %v1311 = vadd.f32 0.0, %v1310
    %v1312 = vpop.f32.mrf.mxu0
    %1313 = vdwg.mxu0
    %1314 = vmatpush.bf16.msra.mxu0 %v442
    %1315 = vmatpush.bf16.msra.mxu0 %v439
    %1316 = vmatpush.bf16.msra.mxu0 %v436
    %1317 = vmatpush.bf16.msra.mxu0 %v433
    %1318 = vmatpush.bf16.msra.mxu0 %v430
    %1319 = vmatpush.bf16.msra.mxu0 %v427
    %1320 = vmatpush.bf16.msra.mxu0 %v424
    %1321 = vmatpush.bf16.msra.mxu0 %v421
    %1322 = vmatmul.bf16.gmra.mxu0 %v1238
    %v1323 = vpop.f32.mrf.mxu0
    %v1324 = vadd.f32 0.0, %v1323
    %v1325 = vpop.f32.mrf.mxu0
    %1326 = vdwg.mxu0
    %v1327 = vadd.f32 %v1259, %v1298
    %v1328 = vxor.u32 %v1327, 2147483648
    %v1329 = vmul.f32 %v1328, 1.442695
    %v1330 = vpow.pop %v1329
    %v1331 = vadd.f32 %v1330, 1.0
    %v1332 = vrcp.pop %v1331
    %v1333 = vmul.f32 %v1331, %v1332
    %v1334 = vsub.f32 1.0, %v1333
    %v1335 = vmul.f32 %v1332, %v1334
    %v1336 = vadd.f32 %v1332, %v1335
    %vm1337 = vweird.f32 %v1331
    %vm1338 = vweird.f32 %v1332
    %vm1339 = vmor %vm1337, %vm1338
    %v1340 = vsel %vm1339, %v1332, %v1336
    %v1341 = vand.u32 2147483647, %v1331
    %vm1342 = vcmp.eq.f32.partialorder %v1341, 8.507059e+37
    %v1343 = vand.u32 %v1331, 2147483648
    %v1344 = vor.u32 1.1754944e-38, %v1343
    %v1345 = vsel %vm1342, %v1344, %v1340
    %v1346 = vmul.f32 1.0, %v1345
    %v1347 = vadd.f32 %v1272, %v1311
    %v1348 = vxor.u32 %v1347, 2147483648
    %v1349 = vmul.f32 %v1348, 1.442695
    %v1350 = vpow.pop %v1349
    %v1351 = vadd.f32 %v1350, 1.0
    %v1352 = vrcp.pop %v1351
    %v1353 = vmul.f32 %v1351, %v1352
    %v1354 = vsub.f32 1.0, %v1353
    %v1355 = vmul.f32 %v1352, %v1354
    %v1356 = vadd.f32 %v1352, %v1355
    %vm1357 = vweird.f32 %v1351
    %vm1358 = vweird.f32 %v1352
    %vm1359 = vmor %vm1357, %vm1358
    %v1360 = vsel %vm1359, %v1352, %v1356
    %v1361 = vand.u32 2147483647, %v1351
    %vm1362 = vcmp.eq.f32.partialorder %v1361, 8.507059e+37
    %v1363 = vand.u32 %v1351, 2147483648
    %v1364 = vor.u32 1.1754944e-38, %v1363
    %v1365 = vsel %vm1362, %v1364, %v1360
    %v1366 = vmul.f32 1.0, %v1365
    %v1367 = vadd.f32 %v1324, %v162
    %v1368 = vmul.f32 %v1346, %v1367
    %v1369 = vadd.f32 %v1285, %v1368
    %v1370 = vtanh.pop %v1369
    %v1371 = vsub.f32 1.0, %v1366
    %v1372 = vmul.f32 %v1371, %v1370
    %v1373 = vmul.f32 %v1366, %v1237
    %v1374 = vadd.f32 %v1372, %v1373
    %v1375 = vpack.c.bf16 %v1374, %v1374
    %s1376 = scalar_lea.vmem [#allocation2], 24
    %1377 = vst [vmem:[%s1376] sm:$0xf] %v1375
    %v1378 = vld [vmem:[%s0] sm:$0xff]
    %1379 = vset.pattern.permute.xlu0 7
    %1380 = vperm.xlu0 %1379, %v1378
    %v1381 = vpop.permute.xlu0 %1380
    %vm1382 = vcmp.eq.s32.totalorder %v1381, %v87
    %v1383 = vsel %vm1382, 1, 0
    %v1384 = vcvt.s32.f32 %v1383
    %v1385 = vpack.c.bf16 %v1384, %v1384
    %1386 = vmatpush.bf16.msra.mxu0 %v273
    %1387 = vmatpush.bf16.msra.mxu0 %v270
    %1388 = vmatpush.bf16.msra.mxu0 %v267
    %1389 = vmatpush.bf16.msra.mxu0 %v264
    %1390 = vmatpush.bf16.msra.mxu0 %v261
    %1391 = vmatpush.bf16.msra.mxu0 %v258
    %1392 = vmatpush.bf16.msra.mxu0 %v255
    %1393 = vmatpush.bf16.msra.mxu0 %v252
    %1394 = vmatmul.bf16.gmra.mxu0 %v1385
    %v1395 = vpop.f32.mrf.mxu0
    %v1396 = vadd.f32 %v154, %v1395
    %v1397 = vpop.f32.mrf.mxu0
    %1398 = vdwg.mxu0
    %1399 = vmatpush.bf16.msra.mxu0 %v274
    %1400 = vmatpush.bf16.msra.mxu0 %v271
    %1401 = vmatpush.bf16.msra.mxu0 %v268
    %1402 = vmatpush.bf16.msra.mxu0 %v265
    %1403 = vmatpush.bf16.msra.mxu0 %v262
    %1404 = vmatpush.bf16.msra.mxu0 %v259
    %1405 = vmatpush.bf16.msra.mxu0 %v256
    %1406 = vmatpush.bf16.msra.mxu0 %v253
    %1407 = vmatmul.bf16.gmra.mxu0 %v1385
    %v1408 = vpop.f32.mrf.mxu0
    %v1409 = vadd.f32 %v155, %v1408
    %v1410 = vpop.f32.mrf.mxu0
    %1411 = vdwg.mxu0
    %1412 = vmatpush.bf16.msra.mxu0 %v275
    %1413 = vmatpush.bf16.msra.mxu0 %v272
    %1414 = vmatpush.bf16.msra.mxu0 %v269
    %1415 = vmatpush.bf16.msra.mxu0 %v266
    %1416 = vmatpush.bf16.msra.mxu0 %v263
    %1417 = vmatpush.bf16.msra.mxu0 %v260
    %1418 = vmatpush.bf16.msra.mxu0 %v257
    %1419 = vmatpush.bf16.msra.mxu0 %v254
    %1420 = vmatmul.bf16.gmra.mxu0 %v1385
    %v1421 = vpop.f32.mrf.mxu0
    %v1422 = vadd.f32 %v156, %v1421
    %v1423 = vpop.f32.mrf.mxu0
    %1424 = vdwg.mxu0
    %1425 = vmatpush.bf16.msra.mxu0 %v440
    %1426 = vmatpush.bf16.msra.mxu0 %v437
    %1427 = vmatpush.bf16.msra.mxu0 %v434
    %1428 = vmatpush.bf16.msra.mxu0 %v431
    %1429 = vmatpush.bf16.msra.mxu0 %v428
    %1430 = vmatpush.bf16.msra.mxu0 %v425
    %1431 = vmatpush.bf16.msra.mxu0 %v422
    %1432 = vmatpush.bf16.msra.mxu0 %v419
    %1433 = vmatmul.bf16.gmra.mxu0 %v1375
    %v1434 = vpop.f32.mrf.mxu0
    %v1435 = vadd.f32 0.0, %v1434
    %v1436 = vpop.f32.mrf.mxu0
    %1437 = vdwg.mxu0
    %1438 = vmatpush.bf16.msra.mxu0 %v441
    %1439 = vmatpush.bf16.msra.mxu0 %v438
    %1440 = vmatpush.bf16.msra.mxu0 %v435
    %1441 = vmatpush.bf16.msra.mxu0 %v432
    %1442 = vmatpush.bf16.msra.mxu0 %v429
    %1443 = vmatpush.bf16.msra.mxu0 %v426
    %1444 = vmatpush.bf16.msra.mxu0 %v423
    %1445 = vmatpush.bf16.msra.mxu0 %v420
    %1446 = vmatmul.bf16.gmra.mxu0 %v1375
    %v1447 = vpop.f32.mrf.mxu0
    %v1448 = vadd.f32 0.0, %v1447
    %v1449 = vpop.f32.mrf.mxu0
    %1450 = vdwg.mxu0
    %1451 = vmatpush.bf16.msra.mxu0 %v442
    %1452 = vmatpush.bf16.msra.mxu0 %v439
    %1453 = vmatpush.bf16.msra.mxu0 %v436
    %1454 = vmatpush.bf16.msra.mxu0 %v433
    %1455 = vmatpush.bf16.msra.mxu0 %v430
    %1456 = vmatpush.bf16.msra.mxu0 %v427
    %1457 = vmatpush.bf16.msra.mxu0 %v424
    %1458 = vmatpush.bf16.msra.mxu0 %v421
    %1459 = vmatmul.bf16.gmra.mxu0 %v1375
    %v1460 = vpop.f32.mrf.mxu0
    %v1461 = vadd.f32 0.0, %v1460
    %v1462 = vpop.f32.mrf.mxu0
    %1463 = vdwg.mxu0
    %v1464 = vadd.f32 %v1396, %v1435
    %v1465 = vxor.u32 %v1464, 2147483648
    %v1466 = vmul.f32 %v1465, 1.442695
    %v1467 = vpow.pop %v1466
    %v1468 = vadd.f32 %v1467, 1.0
    %v1469 = vrcp.pop %v1468
    %v1470 = vmul.f32 %v1468, %v1469
    %v1471 = vsub.f32 1.0, %v1470
    %v1472 = vmul.f32 %v1469, %v1471
    %v1473 = vadd.f32 %v1469, %v1472
    %vm1474 = vweird.f32 %v1468
    %vm1475 = vweird.f32 %v1469
    %vm1476 = vmor %vm1474, %vm1475
    %v1477 = vsel %vm1476, %v1469, %v1473
    %v1478 = vand.u32 2147483647, %v1468
    %vm1479 = vcmp.eq.f32.partialorder %v1478, 8.507059e+37
    %v1480 = vand.u32 %v1468, 2147483648
    %v1481 = vor.u32 1.1754944e-38, %v1480
    %v1482 = vsel %vm1479, %v1481, %v1477
    %v1483 = vmul.f32 1.0, %v1482
    %v1484 = vadd.f32 %v1409, %v1448
    %v1485 = vxor.u32 %v1484, 2147483648
    %v1486 = vmul.f32 %v1485, 1.442695
    %v1487 = vpow.pop %v1486
    %v1488 = vadd.f32 %v1487, 1.0
    %v1489 = vrcp.pop %v1488
    %v1490 = vmul.f32 %v1488, %v1489
    %v1491 = vsub.f32 1.0, %v1490
    %v1492 = vmul.f32 %v1489, %v1491
    %v1493 = vadd.f32 %v1489, %v1492
    %vm1494 = vweird.f32 %v1488
    %vm1495 = vweird.f32 %v1489
    %vm1496 = vmor %vm1494, %vm1495
    %v1497 = vsel %vm1496, %v1489, %v1493
    %v1498 = vand.u32 2147483647, %v1488
    %vm1499 = vcmp.eq.f32.partialorder %v1498, 8.507059e+37
    %v1500 = vand.u32 %v1488, 2147483648
    %v1501 = vor.u32 1.1754944e-38, %v1500
    %v1502 = vsel %vm1499, %v1501, %v1497
    %v1503 = vmul.f32 1.0, %v1502
    %v1504 = vadd.f32 %v1461, %v162
    %v1505 = vmul.f32 %v1483, %v1504
    %v1506 = vadd.f32 %v1422, %v1505
    %v1507 = vtanh.pop %v1506
    %v1508 = vsub.f32 1.0, %v1503
    %v1509 = vmul.f32 %v1508, %v1507
    %v1510 = vmul.f32 %v1503, %v1374
    %v1511 = vadd.f32 %v1509, %v1510
    %v1512 = vpack.c.bf16 %v1511, %v1511
    %s1513 = scalar_lea.vmem [#allocation2], 28
    %1514 = vst [vmem:[%s1513] sm:$0xf] %v1512
    %v1515 = vld [vmem:[#allocation6] sm:$0xff]
    %v1516 = vld [vmem:[#allocation6 + $0x8] sm:$0xf]
    %v1517 = vld [vmem:[#allocation6 + $0xc] sm:$0xff]
    %v1518 = vld [vmem:[#allocation6 + $0x14] sm:$0xf]
    %v1519 = vld [vmem:[#allocation6 + $0x18] sm:$0xff]
    %v1520 = vld [vmem:[#allocation6 + $0x20] sm:$0xf]
    %v1521 = vld [vmem:[#allocation6 + $0x24] sm:$0xff]
    %v1522 = vld [vmem:[#allocation6 + $0x2c] sm:$0xf]
    %v1523 = vld [vmem:[#allocation6 + $0x30] sm:$0xff]
    %v1524 = vld [vmem:[#allocation6 + $0x38] sm:$0xf]
    %v1525 = vld [vmem:[#allocation6 + $0x3c] sm:$0xff]
    %v1526 = vld [vmem:[#allocation6 + $0x44] sm:$0xf]
    %v1527 = vld [vmem:[#allocation6 + $0x48] sm:$0xff]
    %v1528 = vld [vmem:[#allocation6 + $0x50] sm:$0xf]
    %v1529 = vld [vmem:[#allocation6 + $0x54] sm:$0xff]
    %v1530 = vld [vmem:[#allocation6 + $0x5c] sm:$0xf]
    %v1531 = vld [vmem:[#allocation6 + $0x60] sm:$0xff]
    %v1532 = vld [vmem:[#allocation6 + $0x68] sm:$0xf]
    %v1533 = vld [vmem:[#allocation6 + $0x6c] sm:$0xff]
    %v1534 = vld [vmem:[#allocation6 + $0x74] sm:$0xf]
    %v1535 = vld [vmem:[#allocation6 + $0x78] sm:$0xff]
    %v1536 = vld [vmem:[#allocation6 + $0x80] sm:$0xf]
    %v1537 = vld [vmem:[#allocation6 + $0x84] sm:$0xff]
    %v1538 = vld [vmem:[#allocation6 + $0x8c] sm:$0xf]
    %v1539 = vld [vmem:[#allocation6 + $0x90] sm:$0xff]
    %v1540 = vld [vmem:[#allocation6 + $0x98] sm:$0xf]
    %v1541 = vld [vmem:[#allocation6 + $0x9c] sm:$0xff]
    %v1542 = vld [vmem:[#allocation6 + $0xa4] sm:$0xf]
    %v1543 = vld [vmem:[#allocation6 + $0xa8] sm:$0xff]
    %v1544 = vld [vmem:[#allocation6 + $0xb0] sm:$0xf]
    %v1545 = vld [vmem:[#allocation6 + $0xb4] sm:$0xff]
    %v1546 = vld [vmem:[#allocation6 + $0xbc] sm:$0xf]
    %s1547 = scalar_lea.vmem [#allocation8], 192
    %v1548 = vld [vmem:[%s1547] sm:$0xff]
    %v1549 = vld [vmem:[%s1547 + $0x8] sm:$0xf]
    %v1550 = vld [vmem:[%s1547 + $0xc] sm:$0xff]
    %v1551 = vld [vmem:[%s1547 + $0x14] sm:$0xf]
    %v1552 = vld [vmem:[%s1547 + $0x18] sm:$0xff]
    %v1553 = vld [vmem:[%s1547 + $0x20] sm:$0xf]
    %v1554 = vld [vmem:[%s1547 + $0x24] sm:$0xff]
    %v1555 = vld [vmem:[%s1547 + $0x2c] sm:$0xf]
    %v1556 = vld [vmem:[%s1547 + $0x30] sm:$0xff]
    %v1557 = vld [vmem:[%s1547 + $0x38] sm:$0xf]
    %v1558 = vld [vmem:[%s1547 + $0x3c] sm:$0xff]
    %v1559 = vld [vmem:[%s1547 + $0x44] sm:$0xf]
    %v1560 = vld [vmem:[%s1547 + $0x48] sm:$0xff]
    %v1561 = vld [vmem:[%s1547 + $0x50] sm:$0xf]
    %v1562 = vld [vmem:[%s1547 + $0x54] sm:$0xff]
    %v1563 = vld [vmem:[%s1547 + $0x5c] sm:$0xf]
    %v1564 = vld [vmem:[%s1547 + $0x60] sm:$0xff]
    %v1565 = vld [vmem:[%s1547 + $0x68] sm:$0xf]
    %v1566 = vld [vmem:[%s1547 + $0x6c] sm:$0xff]
    %v1567 = vld [vmem:[%s1547 + $0x74] sm:$0xf]
    %v1568 = vld [vmem:[%s1547 + $0x78] sm:$0xff]
    %v1569 = vld [vmem:[%s1547 + $0x80] sm:$0xf]
    %v1570 = vld [vmem:[%s1547 + $0x84] sm:$0xff]
    %v1571 = vld [vmem:[%s1547 + $0x8c] sm:$0xf]
    %v1572 = vld [vmem:[%s1547 + $0x90] sm:$0xff]
    %v1573 = vld [vmem:[%s1547 + $0x98] sm:$0xf]
    %v1574 = vld [vmem:[%s1547 + $0x9c] sm:$0xff]
    %v1575 = vld [vmem:[%s1547 + $0xa4] sm:$0xf]
    %v1576 = vld [vmem:[%s1547 + $0xa8] sm:$0xff]
    %v1577 = vld [vmem:[%s1547 + $0xb0] sm:$0xf]
    %v1578 = vld [vmem:[%s1547 + $0xb4] sm:$0xff]
    %v1579 = vld [vmem:[%s1547 + $0xbc] sm:$0xf]
    %s1580 = scalar_lea.vmem %s4, 3
    %v1581 = vld [vmem:[%s1580] sm:$0x7]
    %v1583 = vperm.slane %v1581, 0
    %v1584 = vperm.slane %v1581, 1
    %v1585 = vperm.slane %v1581, 2
    %s1589 = scalar_lea.vmem %s5, 1
    %v1590 = vld [vmem:[%s1589] sm:$0x1]
    %v1592 = vperm.slane %v1590, 0
    %v1594 = vld [vmem:[#allocation2] sm:$0xf]
    %v1627 = vunpack.c.l.b16 %v1515
    %v1628 = vunpack.c.h.b16 %v1515
    %v1629 = vunpack.c.l.b16 %v1516
    %v1630 = vunpack.c.l.b16 %v1517
    %v1631 = vunpack.c.h.b16 %v1517
    %v1632 = vunpack.c.l.b16 %v1518
    %v1633 = vunpack.c.l.b16 %v1519
    %v1634 = vunpack.c.h.b16 %v1519
    %v1635 = vunpack.c.l.b16 %v1520
    %v1636 = vunpack.c.l.b16 %v1521
    %v1637 = vunpack.c.h.b16 %v1521
    %v1638 = vunpack.c.l.b16 %v1522
    %v1639 = vunpack.c.l.b16 %v1523
    %v1640 = vunpack.c.h.b16 %v1523
    %v1641 = vunpack.c.l.b16 %v1524
    %v1642 = vunpack.c.l.b16 %v1525
    %v1643 = vunpack.c.h.b16 %v1525
    %v1644 = vunpack.c.l.b16 %v1526
    %v1645 = vunpack.c.l.b16 %v1527
    %v1646 = vunpack.c.h.b16 %v1527
    %v1647 = vunpack.c.l.b16 %v1528
    %v1648 = vunpack.c.l.b16 %v1529
    %v1649 = vunpack.c.h.b16 %v1529
    %v1650 = vunpack.c.l.b16 %v1530
    %v1651 = vunpack.c.l.b16 %v1531
    %v1652 = vunpack.c.h.b16 %v1531
    %v1653 = vunpack.c.l.b16 %v1532
    %v1654 = vunpack.c.l.b16 %v1533
    %v1655 = vunpack.c.h.b16 %v1533
    %v1656 = vunpack.c.l.b16 %v1534
    %v1657 = vunpack.c.l.b16 %v1535
    %v1658 = vunpack.c.h.b16 %v1535
    %v1659 = vunpack.c.l.b16 %v1536
    %v1660 = vunpack.c.l.b16 %v1537
    %v1661 = vunpack.c.h.b16 %v1537
    %v1662 = vunpack.c.l.b16 %v1538
    %v1663 = vunpack.c.l.b16 %v1539
    %v1664 = vunpack.c.h.b16 %v1539
    %v1665 = vunpack.c.l.b16 %v1540
    %v1666 = vunpack.c.l.b16 %v1541
    %v1667 = vunpack.c.h.b16 %v1541
    %v1668 = vunpack.c.l.b16 %v1542
    %v1669 = vunpack.c.l.b16 %v1543
    %v1670 = vunpack.c.h.b16 %v1543
    %v1671 = vunpack.c.l.b16 %v1544
    %v1672 = vunpack.c.l.b16 %v1545
    %v1673 = vunpack.c.h.b16 %v1545
    %v1674 = vunpack.c.l.b16 %v1546
    %v1675 = vpack.c.b16 %v1630, %v1627
    %v1676 = vpack.c.b16 %v1631, %v1628
    %v1677 = vpack.c.b16 %v1632, %v1629
    %v1678 = vpack.c.b16 %v1636, %v1633
    %v1679 = vpack.c.b16 %v1637, %v1634
    %v1680 = vpack.c.b16 %v1638, %v1635
    %v1681 = vpack.c.b16 %v1642, %v1639
    %v1682 = vpack.c.b16 %v1643, %v1640
    %v1683 = vpack.c.b16 %v1644, %v1641
    %v1684 = vpack.c.b16 %v1648, %v1645
    %v1685 = vpack.c.b16 %v1649, %v1646
    %v1686 = vpack.c.b16 %v1650, %v1647
    %v1687 = vpack.c.b16 %v1654, %v1651
    %v1688 = vpack.c.b16 %v1655, %v1652
    %v1689 = vpack.c.b16 %v1656, %v1653
    %v1690 = vpack.c.b16 %v1660, %v1657
    %v1691 = vpack.c.b16 %v1661, %v1658
    %v1692 = vpack.c.b16 %v1662, %v1659
    %v1693 = vpack.c.b16 %v1666, %v1663
    %v1694 = vpack.c.b16 %v1667, %v1664
    %v1695 = vpack.c.b16 %v1668, %v1665
    %v1696 = vpack.c.b16 %v1672, %v1669
    %v1697 = vpack.c.b16 %v1673, %v1670
    %v1698 = vpack.c.b16 %v1674, %v1671
    %1723 = vmatpush.bf16.msra.mxu0 %v1696
    %1724 = vmatpush.bf16.msra.mxu0 %v1693
    %1725 = vmatpush.bf16.msra.mxu0 %v1690
    %1726 = vmatpush.bf16.msra.mxu0 %v1687
    %1727 = vmatpush.bf16.msra.mxu0 %v1684
    %1728 = vmatpush.bf16.msra.mxu0 %v1681
    %1729 = vmatpush.bf16.msra.mxu0 %v1678
    %1730 = vmatpush.bf16.msra.mxu0 %v1675
    %1731 = vmatmul.bf16.gmra.mxu0 %v1594
    %v1732 = vpop.f32.mrf.mxu0
    %v1733 = vadd.f32 %v1583, %v1732
    %v1734 = vpop.f32.mrf.mxu0
    %1735 = vdwg.mxu0
    %1736 = vmatpush.bf16.msra.mxu0 %v1697
    %1737 = vmatpush.bf16.msra.mxu0 %v1694
    %1738 = vmatpush.bf16.msra.mxu0 %v1691
    %1739 = vmatpush.bf16.msra.mxu0 %v1688
    %1740 = vmatpush.bf16.msra.mxu0 %v1685
    %1741 = vmatpush.bf16.msra.mxu0 %v1682
    %1742 = vmatpush.bf16.msra.mxu0 %v1679
    %1743 = vmatpush.bf16.msra.mxu0 %v1676
    %1744 = vmatmul.bf16.gmra.mxu0 %v1594
    %v1745 = vpop.f32.mrf.mxu0
    %v1746 = vadd.f32 %v1584, %v1745
    %v1747 = vpop.f32.mrf.mxu0
    %1748 = vdwg.mxu0
    %1749 = vmatpush.bf16.msra.mxu0 %v1698
    %1750 = vmatpush.bf16.msra.mxu0 %v1695
    %1751 = vmatpush.bf16.msra.mxu0 %v1692
    %1752 = vmatpush.bf16.msra.mxu0 %v1689
    %1753 = vmatpush.bf16.msra.mxu0 %v1686
    %1754 = vmatpush.bf16.msra.mxu0 %v1683
    %1755 = vmatpush.bf16.msra.mxu0 %v1680
    %1756 = vmatpush.bf16.msra.mxu0 %v1677
    %1757 = vmatmul.bf16.gmra.mxu0 %v1594
    %v1758 = vpop.f32.mrf.mxu0
    %v1759 = vadd.f32 %v1585, %v1758
    %v1760 = vpop.f32.mrf.mxu0
    %1761 = vdwg.mxu0
    %v1794 = vunpack.c.l.b16 %v1548
    %v1795 = vunpack.c.h.b16 %v1548
    %v1796 = vunpack.c.l.b16 %v1549
    %v1797 = vunpack.c.l.b16 %v1550
    %v1798 = vunpack.c.h.b16 %v1550
    %v1799 = vunpack.c.l.b16 %v1551
    %v1800 = vunpack.c.l.b16 %v1552
    %v1801 = vunpack.c.h.b16 %v1552
    %v1802 = vunpack.c.l.b16 %v1553
    %v1803 = vunpack.c.l.b16 %v1554
    %v1804 = vunpack.c.h.b16 %v1554
    %v1805 = vunpack.c.l.b16 %v1555
    %v1806 = vunpack.c.l.b16 %v1556
    %v1807 = vunpack.c.h.b16 %v1556
    %v1808 = vunpack.c.l.b16 %v1557
    %v1809 = vunpack.c.l.b16 %v1558
    %v1810 = vunpack.c.h.b16 %v1558
    %v1811 = vunpack.c.l.b16 %v1559
    %v1812 = vunpack.c.l.b16 %v1560
    %v1813 = vunpack.c.h.b16 %v1560
    %v1814 = vunpack.c.l.b16 %v1561
    %v1815 = vunpack.c.l.b16 %v1562
    %v1816 = vunpack.c.h.b16 %v1562
    %v1817 = vunpack.c.l.b16 %v1563
    %v1818 = vunpack.c.l.b16 %v1564
    %v1819 = vunpack.c.h.b16 %v1564
    %v1820 = vunpack.c.l.b16 %v1565
    %v1821 = vunpack.c.l.b16 %v1566
    %v1822 = vunpack.c.h.b16 %v1566
    %v1823 = vunpack.c.l.b16 %v1567
    %v1824 = vunpack.c.l.b16 %v1568
    %v1825 = vunpack.c.h.b16 %v1568
    %v1826 = vunpack.c.l.b16 %v1569
    %v1827 = vunpack.c.l.b16 %v1570
    %v1828 = vunpack.c.h.b16 %v1570
    %v1829 = vunpack.c.l.b16 %v1571
    %v1830 = vunpack.c.l.b16 %v1572
    %v1831 = vunpack.c.h.b16 %v1572
    %v1832 = vunpack.c.l.b16 %v1573
    %v1833 = vunpack.c.l.b16 %v1574
    %v1834 = vunpack.c.h.b16 %v1574
    %v1835 = vunpack.c.l.b16 %v1575
    %v1836 = vunpack.c.l.b16 %v1576
    %v1837 = vunpack.c.h.b16 %v1576
    %v1838 = vunpack.c.l.b16 %v1577
    %v1839 = vunpack.c.l.b16 %v1578
    %v1840 = vunpack.c.h.b16 %v1578
    %v1841 = vunpack.c.l.b16 %v1579
    %v1842 = vpack.c.b16 %v1797, %v1794
    %v1843 = vpack.c.b16 %v1798, %v1795
    %v1844 = vpack.c.b16 %v1799, %v1796
    %v1845 = vpack.c.b16 %v1803, %v1800
    %v1846 = vpack.c.b16 %v1804, %v1801
    %v1847 = vpack.c.b16 %v1805, %v1802
    %v1848 = vpack.c.b16 %v1809, %v1806
    %v1849 = vpack.c.b16 %v1810, %v1807
    %v1850 = vpack.c.b16 %v1811, %v1808
    %v1851 = vpack.c.b16 %v1815, %v1812
    %v1852 = vpack.c.b16 %v1816, %v1813
    %v1853 = vpack.c.b16 %v1817, %v1814
    %v1854 = vpack.c.b16 %v1821, %v1818
    %v1855 = vpack.c.b16 %v1822, %v1819
    %v1856 = vpack.c.b16 %v1823, %v1820
    %v1857 = vpack.c.b16 %v1827, %v1824
    %v1858 = vpack.c.b16 %v1828, %v1825
    %v1859 = vpack.c.b16 %v1829, %v1826
    %v1860 = vpack.c.b16 %v1833, %v1830
    %v1861 = vpack.c.b16 %v1834, %v1831
    %v1862 = vpack.c.b16 %v1835, %v1832
    %v1863 = vpack.c.b16 %v1839, %v1836
    %v1864 = vpack.c.b16 %v1840, %v1837
    %v1865 = vpack.c.b16 %v1841, %v1838
    %1890 = vmatpush.bf16.msra.mxu0 %v1863
    %1891 = vmatpush.bf16.msra.mxu0 %v1860
    %1892 = vmatpush.bf16.msra.mxu0 %v1857
    %1893 = vmatpush.bf16.msra.mxu0 %v1854
    %1894 = vmatpush.bf16.msra.mxu0 %v1851
    %1895 = vmatpush.bf16.msra.mxu0 %v1848
    %1896 = vmatpush.bf16.msra.mxu0 %v1845
    %1897 = vmatpush.bf16.msra.mxu0 %v1842
    %1898 = vmatmul.bf16.gmra.mxu0 0
    %v1899 = vpop.f32.mrf.mxu0
    %v1900 = vadd.f32 0.0, %v1899
    %v1901 = vpop.f32.mrf.mxu0
    %1902 = vdwg.mxu0
    %1903 = vmatpush.bf16.msra.mxu0 %v1864
    %1904 = vmatpush.bf16.msra.mxu0 %v1861
    %1905 = vmatpush.bf16.msra.mxu0 %v1858
    %1906 = vmatpush.bf16.msra.mxu0 %v1855
    %1907 = vmatpush.bf16.msra.mxu0 %v1852
    %1908 = vmatpush.bf16.msra.mxu0 %v1849
    %1909 = vmatpush.bf16.msra.mxu0 %v1846
    %1910 = vmatpush.bf16.msra.mxu0 %v1843
    %1911 = vmatmul.bf16.gmra.mxu0 0
    %v1912 = vpop.f32.mrf.mxu0
    %v1913 = vadd.f32 0.0, %v1912
    %v1914 = vpop.f32.mrf.mxu0
    %1915 = vdwg.mxu0
    %1916 = vmatpush.bf16.msra.mxu0 %v1865
    %1917 = vmatpush.bf16.msra.mxu0 %v1862
    %1918 = vmatpush.bf16.msra.mxu0 %v1859
    %1919 = vmatpush.bf16.msra.mxu0 %v1856
    %1920 = vmatpush.bf16.msra.mxu0 %v1853
    %1921 = vmatpush.bf16.msra.mxu0 %v1850
    %1922 = vmatpush.bf16.msra.mxu0 %v1847
    %1923 = vmatpush.bf16.msra.mxu0 %v1844
    %1924 = vmatmul.bf16.gmra.mxu0 0
    %v1925 = vpop.f32.mrf.mxu0
    %v1926 = vadd.f32 0.0, %v1925
    %v1927 = vpop.f32.mrf.mxu0
    %1928 = vdwg.mxu0
    %v1929 = vadd.f32 %v1733, %v1900
    %v1930 = vxor.u32 %v1929, 2147483648
    %v1931 = vmul.f32 %v1930, 1.442695
    %v1932 = vpow.pop %v1931
    %v1933 = vadd.f32 %v1932, 1.0
    %v1934 = vrcp.pop %v1933
    %v1935 = vmul.f32 %v1933, %v1934
    %v1936 = vsub.f32 1.0, %v1935
    %v1937 = vmul.f32 %v1934, %v1936
    %v1938 = vadd.f32 %v1934, %v1937
    %vm1939 = vweird.f32 %v1933
    %vm1940 = vweird.f32 %v1934
    %vm1941 = vmor %vm1939, %vm1940
    %v1942 = vsel %vm1941, %v1934, %v1938
    %v1943 = vand.u32 2147483647, %v1933
    %vm1944 = vcmp.eq.f32.partialorder %v1943, 8.507059e+37
    %v1945 = vand.u32 %v1933, 2147483648
    %v1946 = vor.u32 1.1754944e-38, %v1945
    %v1947 = vsel %vm1944, %v1946, %v1942
    %v1948 = vmul.f32 1.0, %v1947
    %v1949 = vadd.f32 %v1746, %v1913
    %v1950 = vxor.u32 %v1949, 2147483648
    %v1951 = vmul.f32 %v1950, 1.442695
    %v1952 = vpow.pop %v1951
    %v1953 = vadd.f32 %v1952, 1.0
    %v1954 = vrcp.pop %v1953
    %v1955 = vmul.f32 %v1953, %v1954
    %v1956 = vsub.f32 1.0, %v1955
    %v1957 = vmul.f32 %v1954, %v1956
    %v1958 = vadd.f32 %v1954, %v1957
    %vm1959 = vweird.f32 %v1953
    %vm1960 = vweird.f32 %v1954
    %vm1961 = vmor %vm1959, %vm1960
    %v1962 = vsel %vm1961, %v1954, %v1958
    %v1963 = vand.u32 2147483647, %v1953
    %vm1964 = vcmp.eq.f32.partialorder %v1963, 8.507059e+37
    %v1965 = vand.u32 %v1953, 2147483648
    %v1966 = vor.u32 1.1754944e-38, %v1965
    %v1967 = vsel %vm1964, %v1966, %v1962
    %v1968 = vmul.f32 1.0, %v1967
    %v1969 = vadd.f32 %v1926, %v1592
    %v1970 = vmul.f32 %v1948, %v1969
    %v1971 = vadd.f32 %v1759, %v1970
    %v1972 = vtanh.pop %v1971
    %v1973 = vsub.f32 1.0, %v1968
    %v1974 = vmul.f32 %v1973, %v1972
    %v1975 = vmul.f32 %v1968, 0.0
    %v1976 = vadd.f32 %v1974, %v1975
    %v1977 = vpack.c.bf16 %v1976, %v1976
    %1978 = vst [vmem:[#allocation2] sm:$0xf] %v1977
    %v1979 = vld [vmem:[%s691] sm:$0xf]
    %1980 = vmatpush.bf16.msra.mxu0 %v1696
    %1981 = vmatpush.bf16.msra.mxu0 %v1693
    %1982 = vmatpush.bf16.msra.mxu0 %v1690
    %1983 = vmatpush.bf16.msra.mxu0 %v1687
    %1984 = vmatpush.bf16.msra.mxu0 %v1684
    %1985 = vmatpush.bf16.msra.mxu0 %v1681
    %1986 = vmatpush.bf16.msra.mxu0 %v1678
    %1987 = vmatpush.bf16.msra.mxu0 %v1675
    %1988 = vmatmul.bf16.gmra.mxu0 %v1979
    %v1989 = vpop.f32.mrf.mxu0
    %v1990 = vadd.f32 %v1583, %v1989
    %v1991 = vpop.f32.mrf.mxu0
    %1992 = vdwg.mxu0
    %1993 = vmatpush.bf16.msra.mxu0 %v1697
    %1994 = vmatpush.bf16.msra.mxu0 %v1694
    %1995 = vmatpush.bf16.msra.mxu0 %v1691
    %1996 = vmatpush.bf16.msra.mxu0 %v1688
    %1997 = vmatpush.bf16.msra.mxu0 %v1685
    %1998 = vmatpush.bf16.msra.mxu0 %v1682
    %1999 = vmatpush.bf16.msra.mxu0 %v1679
    %2000 = vmatpush.bf16.msra.mxu0 %v1676
    %2001 = vmatmul.bf16.gmra.mxu0 %v1979
    %v2002 = vpop.f32.mrf.mxu0
    %v2003 = vadd.f32 %v1584, %v2002
    %v2004 = vpop.f32.mrf.mxu0
    %2005 = vdwg.mxu0
    %2006 = vmatpush.bf16.msra.mxu0 %v1698
    %2007 = vmatpush.bf16.msra.mxu0 %v1695
    %2008 = vmatpush.bf16.msra.mxu0 %v1692
    %2009 = vmatpush.bf16.msra.mxu0 %v1689
    %2010 = vmatpush.bf16.msra.mxu0 %v1686
    %2011 = vmatpush.bf16.msra.mxu0 %v1683
    %2012 = vmatpush.bf16.msra.mxu0 %v1680
    %2013 = vmatpush.bf16.msra.mxu0 %v1677
    %2014 = vmatmul.bf16.gmra.mxu0 %v1979
    %v2015 = vpop.f32.mrf.mxu0
    %v2016 = vadd.f32 %v1585, %v2015
    %v2017 = vpop.f32.mrf.mxu0
    %2018 = vdwg.mxu0
    %2019 = vmatpush.bf16.msra.mxu0 %v1863
    %2020 = vmatpush.bf16.msra.mxu0 %v1860
    %2021 = vmatpush.bf16.msra.mxu0 %v1857
    %2022 = vmatpush.bf16.msra.mxu0 %v1854
    %2023 = vmatpush.bf16.msra.mxu0 %v1851
    %2024 = vmatpush.bf16.msra.mxu0 %v1848
    %2025 = vmatpush.bf16.msra.mxu0 %v1845
    %2026 = vmatpush.bf16.msra.mxu0 %v1842
    %2027 = vmatmul.bf16.gmra.mxu0 %v1977
    %v2028 = vpop.f32.mrf.mxu0
    %v2029 = vadd.f32 0.0, %v2028
    %v2030 = vpop.f32.mrf.mxu0
    %2031 = vdwg.mxu0
    %2032 = vmatpush.bf16.msra.mxu0 %v1864
    %2033 = vmatpush.bf16.msra.mxu0 %v1861
    %2034 = vmatpush.bf16.msra.mxu0 %v1858
    %2035 = vmatpush.bf16.msra.mxu0 %v1855
    %2036 = vmatpush.bf16.msra.mxu0 %v1852
    %2037 = vmatpush.bf16.msra.mxu0 %v1849
    %2038 = vmatpush.bf16.msra.mxu0 %v1846
    %2039 = vmatpush.bf16.msra.mxu0 %v1843
    %2040 = vmatmul.bf16.gmra.mxu0 %v1977
    %v2041 = vpop.f32.mrf.mxu0
    %v2042 = vadd.f32 0.0, %v2041
    %v2043 = vpop.f32.mrf.mxu0
    %2044 = vdwg.mxu0
    %2045 = vmatpush.bf16.msra.mxu0 %v1865
    %2046 = vmatpush.bf16.msra.mxu0 %v1862
    %2047 = vmatpush.bf16.msra.mxu0 %v1859
    %2048 = vmatpush.bf16.msra.mxu0 %v1856
    %2049 = vmatpush.bf16.msra.mxu0 %v1853
    %2050 = vmatpush.bf16.msra.mxu0 %v1850
    %2051 = vmatpush.bf16.msra.mxu0 %v1847
    %2052 = vmatpush.bf16.msra.mxu0 %v1844
    %2053 = vmatmul.bf16.gmra.mxu0 %v1977
    %v2054 = vpop.f32.mrf.mxu0
    %v2055 = vadd.f32 0.0, %v2054
    %v2056 = vpop.f32.mrf.mxu0
    %2057 = vdwg.mxu0
    %v2058 = vadd.f32 %v1990, %v2029
    %v2059 = vxor.u32 %v2058, 2147483648
    %v2060 = vmul.f32 %v2059, 1.442695
    %v2061 = vpow.pop %v2060
    %v2062 = vadd.f32 %v2061, 1.0
    %v2063 = vrcp.pop %v2062
    %v2064 = vmul.f32 %v2062, %v2063
    %v2065 = vsub.f32 1.0, %v2064
    %v2066 = vmul.f32 %v2063, %v2065
    %v2067 = vadd.f32 %v2063, %v2066
    %vm2068 = vweird.f32 %v2062
    %vm2069 = vweird.f32 %v2063
    %vm2070 = vmor %vm2068, %vm2069
    %v2071 = vsel %vm2070, %v2063, %v2067
    %v2072 = vand.u32 2147483647, %v2062
    %vm2073 = vcmp.eq.f32.partialorder %v2072, 8.507059e+37
    %v2074 = vand.u32 %v2062, 2147483648
    %v2075 = vor.u32 1.1754944e-38, %v2074
    %v2076 = vsel %vm2073, %v2075, %v2071
    %v2077 = vmul.f32 1.0, %v2076
    %v2078 = vadd.f32 %v2003, %v2042
    %v2079 = vxor.u32 %v2078, 2147483648
    %v2080 = vmul.f32 %v2079, 1.442695
    %v2081 = vpow.pop %v2080
    %v2082 = vadd.f32 %v2081, 1.0
    %v2083 = vrcp.pop %v2082
    %v2084 = vmul.f32 %v2082, %v2083
    %v2085 = vsub.f32 1.0, %v2084
    %v2086 = vmul.f32 %v2083, %v2085
    %v2087 = vadd.f32 %v2083, %v2086
    %vm2088 = vweird.f32 %v2082
    %vm2089 = vweird.f32 %v2083
    %vm2090 = vmor %vm2088, %vm2089
    %v2091 = vsel %vm2090, %v2083, %v2087
    %v2092 = vand.u32 2147483647, %v2082
    %vm2093 = vcmp.eq.f32.partialorder %v2092, 8.507059e+37
    %v2094 = vand.u32 %v2082, 2147483648
    %v2095 = vor.u32 1.1754944e-38, %v2094
    %v2096 = vsel %vm2093, %v2095, %v2091
    %v2097 = vmul.f32 1.0, %v2096
    %v2098 = vadd.f32 %v2055, %v1592
    %v2099 = vmul.f32 %v2077, %v2098
    %v2100 = vadd.f32 %v2016, %v2099
    %v2101 = vtanh.pop %v2100
    %v2102 = vsub.f32 1.0, %v2097
    %v2103 = vmul.f32 %v2102, %v2101
    %v2104 = vmul.f32 %v2097, %v1976
    %v2105 = vadd.f32 %v2103, %v2104
    %v2106 = vpack.c.bf16 %v2105, %v2105
    %2107 = vst [vmem:[%s691] sm:$0xf] %v2106
    %v2108 = vld [vmem:[%s828] sm:$0xf]
    %2109 = vmatpush.bf16.msra.mxu0 %v1696
    %2110 = vmatpush.bf16.msra.mxu0 %v1693
    %2111 = vmatpush.bf16.msra.mxu0 %v1690
    %2112 = vmatpush.bf16.msra.mxu0 %v1687
    %2113 = vmatpush.bf16.msra.mxu0 %v1684
    %2114 = vmatpush.bf16.msra.mxu0 %v1681
    %2115 = vmatpush.bf16.msra.mxu0 %v1678
    %2116 = vmatpush.bf16.msra.mxu0 %v1675
    %2117 = vmatmul.bf16.gmra.mxu0 %v2108
    %v2118 = vpop.f32.mrf.mxu0
    %v2119 = vadd.f32 %v1583, %v2118
    %v2120 = vpop.f32.mrf.mxu0
    %2121 = vdwg.mxu0
    %2122 = vmatpush.bf16.msra.mxu0 %v1697
    %2123 = vmatpush.bf16.msra.mxu0 %v1694
    %2124 = vmatpush.bf16.msra.mxu0 %v1691
    %2125 = vmatpush.bf16.msra.mxu0 %v1688
    %2126 = vmatpush.bf16.msra.mxu0 %v1685
    %2127 = vmatpush.bf16.msra.mxu0 %v1682
    %2128 = vmatpush.bf16.msra.mxu0 %v1679
    %2129 = vmatpush.bf16.msra.mxu0 %v1676
    %2130 = vmatmul.bf16.gmra.mxu0 %v2108
    %v2131 = vpop.f32.mrf.mxu0
    %v2132 = vadd.f32 %v1584, %v2131
    %v2133 = vpop.f32.mrf.mxu0
    %2134 = vdwg.mxu0
    %2135 = vmatpush.bf16.msra.mxu0 %v1698
    %2136 = vmatpush.bf16.msra.mxu0 %v1695
    %2137 = vmatpush.bf16.msra.mxu0 %v1692
    %2138 = vmatpush.bf16.msra.mxu0 %v1689
    %2139 = vmatpush.bf16.msra.mxu0 %v1686
    %2140 = vmatpush.bf16.msra.mxu0 %v1683
    %2141 = vmatpush.bf16.msra.mxu0 %v1680
    %2142 = vmatpush.bf16.msra.mxu0 %v1677
    %2143 = vmatmul.bf16.gmra.mxu0 %v2108
    %v2144 = vpop.f32.mrf.mxu0
    %v2145 = vadd.f32 %v1585, %v2144
    %v2146 = vpop.f32.mrf.mxu0
    %2147 = vdwg.mxu0
    %2148 = vmatpush.bf16.msra.mxu0 %v1863
    %2149 = vmatpush.bf16.msra.mxu0 %v1860
    %2150 = vmatpush.bf16.msra.mxu0 %v1857
    %2151 = vmatpush.bf16.msra.mxu0 %v1854
    %2152 = vmatpush.bf16.msra.mxu0 %v1851
    %2153 = vmatpush.bf16.msra.mxu0 %v1848
    %2154 = vmatpush.bf16.msra.mxu0 %v1845
    %2155 = vmatpush.bf16.msra.mxu0 %v1842
    %2156 = vmatmul.bf16.gmra.mxu0 %v2106
    %v2157 = vpop.f32.mrf.mxu0
    %v2158 = vadd.f32 0.0, %v2157
    %v2159 = vpop.f32.mrf.mxu0
    %2160 = vdwg.mxu0
    %2161 = vmatpush.bf16.msra.mxu0 %v1864
    %2162 = vmatpush.bf16.msra.mxu0 %v1861
    %2163 = vmatpush.bf16.msra.mxu0 %v1858
    %2164 = vmatpush.bf16.msra.mxu0 %v1855
    %2165 = vmatpush.bf16.msra.mxu0 %v1852
    %2166 = vmatpush.bf16.msra.mxu0 %v1849
    %2167 = vmatpush.bf16.msra.mxu0 %v1846
    %2168 = vmatpush.bf16.msra.mxu0 %v1843
    %2169 = vmatmul.bf16.gmra.mxu0 %v2106
    %v2170 = vpop.f32.mrf.mxu0
    %v2171 = vadd.f32 0.0, %v2170
    %v2172 = vpop.f32.mrf.mxu0
    %2173 = vdwg.mxu0
    %2174 = vmatpush.bf16.msra.mxu0 %v1865
    %2175 = vmatpush.bf16.msra.mxu0 %v1862
    %2176 = vmatpush.bf16.msra.mxu0 %v1859
    %2177 = vmatpush.bf16.msra.mxu0 %v1856
    %2178 = vmatpush.bf16.msra.mxu0 %v1853
    %2179 = vmatpush.bf16.msra.mxu0 %v1850
    %2180 = vmatpush.bf16.msra.mxu0 %v1847
    %2181 = vmatpush.bf16.msra.mxu0 %v1844
    %2182 = vmatmul.bf16.gmra.mxu0 %v2106
    %v2183 = vpop.f32.mrf.mxu0
    %v2184 = vadd.f32 0.0, %v2183
    %v2185 = vpop.f32.mrf.mxu0
    %2186 = vdwg.mxu0
    %v2187 = vadd.f32 %v2119, %v2158
    %v2188 = vxor.u32 %v2187, 2147483648
    %v2189 = vmul.f32 %v2188, 1.442695
    %v2190 = vpow.pop %v2189
    %v2191 = vadd.f32 %v2190, 1.0
    %v2192 = vrcp.pop %v2191
    %v2193 = vmul.f32 %v2191, %v2192
    %v2194 = vsub.f32 1.0, %v2193
    %v2195 = vmul.f32 %v2192, %v2194
    %v2196 = vadd.f32 %v2192, %v2195
    %vm2197 = vweird.f32 %v2191
    %vm2198 = vweird.f32 %v2192
    %vm2199 = vmor %vm2197, %vm2198
    %v2200 = vsel %vm2199, %v2192, %v2196
    %v2201 = vand.u32 2147483647, %v2191
    %vm2202 = vcmp.eq.f32.partialorder %v2201, 8.507059e+37
    %v2203 = vand.u32 %v2191, 2147483648
    %v2204 = vor.u32 1.1754944e-38, %v2203
    %v2205 = vsel %vm2202, %v2204, %v2200
    %v2206 = vmul.f32 1.0, %v2205
    %v2207 = vadd.f32 %v2132, %v2171
    %v2208 = vxor.u32 %v2207, 2147483648
    %v2209 = vmul.f32 %v2208, 1.442695
    %v2210 = vpow.pop %v2209
    %v2211 = vadd.f32 %v2210, 1.0
    %v2212 = vrcp.pop %v2211
    %v2213 = vmul.f32 %v2211, %v2212
    %v2214 = vsub.f32 1.0, %v2213
    %v2215 = vmul.f32 %v2212, %v2214
    %v2216 = vadd.f32 %v2212, %v2215
    %vm2217 = vweird.f32 %v2211
    %vm2218 = vweird.f32 %v2212
    %vm2219 = vmor %vm2217, %vm2218
    %v2220 = vsel %vm2219, %v2212, %v2216
    %v2221 = vand.u32 2147483647, %v2211
    %vm2222 = vcmp.eq.f32.partialorder %v2221, 8.507059e+37
    %v2223 = vand.u32 %v2211, 2147483648
    %v2224 = vor.u32 1.1754944e-38, %v2223
    %v2225 = vsel %vm2222, %v2224, %v2220
    %v2226 = vmul.f32 1.0, %v2225
    %v2227 = vadd.f32 %v2184, %v1592
    %v2228 = vmul.f32 %v2206, %v2227
    %v2229 = vadd.f32 %v2145, %v2228
    %v2230 = vtanh.pop %v2229
    %v2231 = vsub.f32 1.0, %v2226
    %v2232 = vmul.f32 %v2231, %v2230
    %v2233 = vmul.f32 %v2226, %v2105
    %v2234 = vadd.f32 %v2232, %v2233
    %v2235 = vpack.c.bf16 %v2234, %v2234
    %2236 = vst [vmem:[%s828] sm:$0xf] %v2235
    %v2237 = vld [vmem:[%s965] sm:$0xf]
    %2238 = vmatpush.bf16.msra.mxu0 %v1696
    %2239 = vmatpush.bf16.msra.mxu0 %v1693
    %2240 = vmatpush.bf16.msra.mxu0 %v1690
    %2241 = vmatpush.bf16.msra.mxu0 %v1687
    %2242 = vmatpush.bf16.msra.mxu0 %v1684
    %2243 = vmatpush.bf16.msra.mxu0 %v1681
    %2244 = vmatpush.bf16.msra.mxu0 %v1678
    %2245 = vmatpush.bf16.msra.mxu0 %v1675
    %2246 = vmatmul.bf16.gmra.mxu0 %v2237
    %v2247 = vpop.f32.mrf.mxu0
    %v2248 = vadd.f32 %v1583, %v2247
    %v2249 = vpop.f32.mrf.mxu0
    %2250 = vdwg.mxu0
    %2251 = vmatpush.bf16.msra.mxu0 %v1697
    %2252 = vmatpush.bf16.msra.mxu0 %v1694
    %2253 = vmatpush.bf16.msra.mxu0 %v1691
    %2254 = vmatpush.bf16.msra.mxu0 %v1688
    %2255 = vmatpush.bf16.msra.mxu0 %v1685
    %2256 = vmatpush.bf16.msra.mxu0 %v1682
    %2257 = vmatpush.bf16.msra.mxu0 %v1679
    %2258 = vmatpush.bf16.msra.mxu0 %v1676
    %2259 = vmatmul.bf16.gmra.mxu0 %v2237
    %v2260 = vpop.f32.mrf.mxu0
    %v2261 = vadd.f32 %v1584, %v2260
    %v2262 = vpop.f32.mrf.mxu0
    %2263 = vdwg.mxu0
    %2264 = vmatpush.bf16.msra.mxu0 %v1698
    %2265 = vmatpush.bf16.msra.mxu0 %v1695
    %2266 = vmatpush.bf16.msra.mxu0 %v1692
    %2267 = vmatpush.bf16.msra.mxu0 %v1689
    %2268 = vmatpush.bf16.msra.mxu0 %v1686
    %2269 = vmatpush.bf16.msra.mxu0 %v1683
    %2270 = vmatpush.bf16.msra.mxu0 %v1680
    %2271 = vmatpush.bf16.msra.mxu0 %v1677
    %2272 = vmatmul.bf16.gmra.mxu0 %v2237
    %v2273 = vpop.f32.mrf.mxu0
    %v2274 = vadd.f32 %v1585, %v2273
    %v2275 = vpop.f32.mrf.mxu0
    %2276 = vdwg.mxu0
    %2277 = vmatpush.bf16.msra.mxu0 %v1863
    %2278 = vmatpush.bf16.msra.mxu0 %v1860
    %2279 = vmatpush.bf16.msra.mxu0 %v1857
    %2280 = vmatpush.bf16.msra.mxu0 %v1854
    %2281 = vmatpush.bf16.msra.mxu0 %v1851
    %2282 = vmatpush.bf16.msra.mxu0 %v1848
    %2283 = vmatpush.bf16.msra.mxu0 %v1845
    %2284 = vmatpush.bf16.msra.mxu0 %v1842
    %2285 = vmatmul.bf16.gmra.mxu0 %v2235
    %v2286 = vpop.f32.mrf.mxu0
    %v2287 = vadd.f32 0.0, %v2286
    %v2288 = vpop.f32.mrf.mxu0
    %2289 = vdwg.mxu0
    %2290 = vmatpush.bf16.msra.mxu0 %v1864
    %2291 = vmatpush.bf16.msra.mxu0 %v1861
    %2292 = vmatpush.bf16.msra.mxu0 %v1858
    %2293 = vmatpush.bf16.msra.mxu0 %v1855
    %2294 = vmatpush.bf16.msra.mxu0 %v1852
    %2295 = vmatpush.bf16.msra.mxu0 %v1849
    %2296 = vmatpush.bf16.msra.mxu0 %v1846
    %2297 = vmatpush.bf16.msra.mxu0 %v1843
    %2298 = vmatmul.bf16.gmra.mxu0 %v2235
    %v2299 = vpop.f32.mrf.mxu0
    %v2300 = vadd.f32 0.0, %v2299
    %v2301 = vpop.f32.mrf.mxu0
    %2302 = vdwg.mxu0
    %2303 = vmatpush.bf16.msra.mxu0 %v1865
    %2304 = vmatpush.bf16.msra.mxu0 %v1862
    %2305 = vmatpush.bf16.msra.mxu0 %v1859
    %2306 = vmatpush.bf16.msra.mxu0 %v1856
    %2307 = vmatpush.bf16.msra.mxu0 %v1853
    %2308 = vmatpush.bf16.msra.mxu0 %v1850
    %2309 = vmatpush.bf16.msra.mxu0 %v1847
    %2310 = vmatpush.bf16.msra.mxu0 %v1844
    %2311 = vmatmul.bf16.gmra.mxu0 %v2235
    %v2312 = vpop.f32.mrf.mxu0
    %v2313 = vadd.f32 0.0, %v2312
    %v2314 = vpop.f32.mrf.mxu0
    %2315 = vdwg.mxu0
    %v2316 = vadd.f32 %v2248, %v2287
    %v2317 = vxor.u32 %v2316, 2147483648
    %v2318 = vmul.f32 %v2317, 1.442695
    %v2319 = vpow.pop %v2318
    %v2320 = vadd.f32 %v2319, 1.0
    %v2321 = vrcp.pop %v2320
    %v2322 = vmul.f32 %v2320, %v2321
    %v2323 = vsub.f32 1.0, %v2322
    %v2324 = vmul.f32 %v2321, %v2323
    %v2325 = vadd.f32 %v2321, %v2324
    %vm2326 = vweird.f32 %v2320
    %vm2327 = vweird.f32 %v2321
    %vm2328 = vmor %vm2326, %vm2327
    %v2329 = vsel %vm2328, %v2321, %v2325
    %v2330 = vand.u32 2147483647, %v2320
    %vm2331 = vcmp.eq.f32.partialorder %v2330, 8.507059e+37
    %v2332 = vand.u32 %v2320, 2147483648
    %v2333 = vor.u32 1.1754944e-38, %v2332
    %v2334 = vsel %vm2331, %v2333, %v2329
    %v2335 = vmul.f32 1.0, %v2334
    %v2336 = vadd.f32 %v2261, %v2300
    %v2337 = vxor.u32 %v2336, 2147483648
    %v2338 = vmul.f32 %v2337, 1.442695
    %v2339 = vpow.pop %v2338
    %v2340 = vadd.f32 %v2339, 1.0
    %v2341 = vrcp.pop %v2340
    %v2342 = vmul.f32 %v2340, %v2341
    %v2343 = vsub.f32 1.0, %v2342
    %v2344 = vmul.f32 %v2341, %v2343
    %v2345 = vadd.f32 %v2341, %v2344
    %vm2346 = vweird.f32 %v2340
    %vm2347 = vweird.f32 %v2341
    %vm2348 = vmor %vm2346, %vm2347
    %v2349 = vsel %vm2348, %v2341, %v2345
    %v2350 = vand.u32 2147483647, %v2340
    %vm2351 = vcmp.eq.f32.partialorder %v2350, 8.507059e+37
    %v2352 = vand.u32 %v2340, 2147483648
    %v2353 = vor.u32 1.1754944e-38, %v2352
    %v2354 = vsel %vm2351, %v2353, %v2349
    %v2355 = vmul.f32 1.0, %v2354
    %v2356 = vadd.f32 %v2313, %v1592
    %v2357 = vmul.f32 %v2335, %v2356
    %v2358 = vadd.f32 %v2274, %v2357
    %v2359 = vtanh.pop %v2358
    %v2360 = vsub.f32 1.0, %v2355
    %v2361 = vmul.f32 %v2360, %v2359
    %v2362 = vmul.f32 %v2355, %v2234
    %v2363 = vadd.f32 %v2361, %v2362
    %v2364 = vpack.c.bf16 %v2363, %v2363
    %2365 = vst [vmem:[%s965] sm:$0xf] %v2364
    %v2366 = vld [vmem:[%s1102] sm:$0xf]
    %2367 = vmatpush.bf16.msra.mxu0 %v1696
    %2368 = vmatpush.bf16.msra.mxu0 %v1693
    %2369 = vmatpush.bf16.msra.mxu0 %v1690
    %2370 = vmatpush.bf16.msra.mxu0 %v1687
    %2371 = vmatpush.bf16.msra.mxu0 %v1684
    %2372 = vmatpush.bf16.msra.mxu0 %v1681
    %2373 = vmatpush.bf16.msra.mxu0 %v1678
    %2374 = vmatpush.bf16.msra.mxu0 %v1675
    %2375 = vmatmul.bf16.gmra.mxu0 %v2366
    %v2376 = vpop.f32.mrf.mxu0
    %v2377 = vadd.f32 %v1583, %v2376
    %v2378 = vpop.f32.mrf.mxu0
    %2379 = vdwg.mxu0
    %2380 = vmatpush.bf16.msra.mxu0 %v1697
    %2381 = vmatpush.bf16.msra.mxu0 %v1694
    %2382 = vmatpush.bf16.msra.mxu0 %v1691
    %2383 = vmatpush.bf16.msra.mxu0 %v1688
    %2384 = vmatpush.bf16.msra.mxu0 %v1685
    %2385 = vmatpush.bf16.msra.mxu0 %v1682
    %2386 = vmatpush.bf16.msra.mxu0 %v1679
    %2387 = vmatpush.bf16.msra.mxu0 %v1676
    %2388 = vmatmul.bf16.gmra.mxu0 %v2366
    %v2389 = vpop.f32.mrf.mxu0
    %v2390 = vadd.f32 %v1584, %v2389
    %v2391 = vpop.f32.mrf.mxu0
    %2392 = vdwg.mxu0
    %2393 = vmatpush.bf16.msra.mxu0 %v1698
    %2394 = vmatpush.bf16.msra.mxu0 %v1695
    %2395 = vmatpush.bf16.msra.mxu0 %v1692
    %2396 = vmatpush.bf16.msra.mxu0 %v1689
    %2397 = vmatpush.bf16.msra.mxu0 %v1686
    %2398 = vmatpush.bf16.msra.mxu0 %v1683
    %2399 = vmatpush.bf16.msra.mxu0 %v1680
    %2400 = vmatpush.bf16.msra.mxu0 %v1677
    %2401 = vmatmul.bf16.gmra.mxu0 %v2366
    %v2402 = vpop.f32.mrf.mxu0
    %v2403 = vadd.f32 %v1585, %v2402
    %v2404 = vpop.f32.mrf.mxu0
    %2405 = vdwg.mxu0
    %2406 = vmatpush.bf16.msra.mxu0 %v1863
    %2407 = vmatpush.bf16.msra.mxu0 %v1860
    %2408 = vmatpush.bf16.msra.mxu0 %v1857
    %2409 = vmatpush.bf16.msra.mxu0 %v1854
    %2410 = vmatpush.bf16.msra.mxu0 %v1851
    %2411 = vmatpush.bf16.msra.mxu0 %v1848
    %2412 = vmatpush.bf16.msra.mxu0 %v1845
    %2413 = vmatpush.bf16.msra.mxu0 %v1842
    %2414 = vmatmul.bf16.gmra.mxu0 %v2364
    %v2415 = vpop.f32.mrf.mxu0
    %v2416 = vadd.f32 0.0, %v2415
    %v2417 = vpop.f32.mrf.mxu0
    %2418 = vdwg.mxu0
    %2419 = vmatpush.bf16.msra.mxu0 %v1864
    %2420 = vmatpush.bf16.msra.mxu0 %v1861
    %2421 = vmatpush.bf16.msra.mxu0 %v1858
    %2422 = vmatpush.bf16.msra.mxu0 %v1855
    %2423 = vmatpush.bf16.msra.mxu0 %v1852
    %2424 = vmatpush.bf16.msra.mxu0 %v1849
    %2425 = vmatpush.bf16.msra.mxu0 %v1846
    %2426 = vmatpush.bf16.msra.mxu0 %v1843
    %2427 = vmatmul.bf16.gmra.mxu0 %v2364
    %v2428 = vpop.f32.mrf.mxu0
    %v2429 = vadd.f32 0.0, %v2428
    %v2430 = vpop.f32.mrf.mxu0
    %2431 = vdwg.mxu0
    %2432 = vmatpush.bf16.msra.mxu0 %v1865
    %2433 = vmatpush.bf16.msra.mxu0 %v1862
    %2434 = vmatpush.bf16.msra.mxu0 %v1859
    %2435 = vmatpush.bf16.msra.mxu0 %v1856
    %2436 = vmatpush.bf16.msra.mxu0 %v1853
    %2437 = vmatpush.bf16.msra.mxu0 %v1850
    %2438 = vmatpush.bf16.msra.mxu0 %v1847
    %2439 = vmatpush.bf16.msra.mxu0 %v1844
    %2440 = vmatmul.bf16.gmra.mxu0 %v2364
    %v2441 = vpop.f32.mrf.mxu0
    %v2442 = vadd.f32 0.0, %v2441
    %v2443 = vpop.f32.mrf.mxu0
    %2444 = vdwg.mxu0
    %v2445 = vadd.f32 %v2377, %v2416
    %v2446 = vxor.u32 %v2445, 2147483648
    %v2447 = vmul.f32 %v2446, 1.442695
    %v2448 = vpow.pop %v2447
    %v2449 = vadd.f32 %v2448, 1.0
    %v2450 = vrcp.pop %v2449
    %v2451 = vmul.f32 %v2449, %v2450
    %v2452 = vsub.f32 1.0, %v2451
    %v2453 = vmul.f32 %v2450, %v2452
    %v2454 = vadd.f32 %v2450, %v2453
    %vm2455 = vweird.f32 %v2449
    %vm2456 = vweird.f32 %v2450
    %vm2457 = vmor %vm2455, %vm2456
    %v2458 = vsel %vm2457, %v2450, %v2454
    %v2459 = vand.u32 2147483647, %v2449
    %vm2460 = vcmp.eq.f32.partialorder %v2459, 8.507059e+37
    %v2461 = vand.u32 %v2449, 2147483648
    %v2462 = vor.u32 1.1754944e-38, %v2461
    %v2463 = vsel %vm2460, %v2462, %v2458
    %v2464 = vmul.f32 1.0, %v2463
    %v2465 = vadd.f32 %v2390, %v2429
    %v2466 = vxor.u32 %v2465, 2147483648
    %v2467 = vmul.f32 %v2466, 1.442695
    %v2468 = vpow.pop %v2467
    %v2469 = vadd.f32 %v2468, 1.0
    %v2470 = vrcp.pop %v2469
    %v2471 = vmul.f32 %v2469, %v2470
    %v2472 = vsub.f32 1.0, %v2471
    %v2473 = vmul.f32 %v2470, %v2472
    %v2474 = vadd.f32 %v2470, %v2473
    %vm2475 = vweird.f32 %v2469
    %vm2476 = vweird.f32 %v2470
    %vm2477 = vmor %vm2475, %vm2476
    %v2478 = vsel %vm2477, %v2470, %v2474
    %v2479 = vand.u32 2147483647, %v2469
    %vm2480 = vcmp.eq.f32.partialorder %v2479, 8.507059e+37
    %v2481 = vand.u32 %v2469, 2147483648
    %v2482 = vor.u32 1.1754944e-38, %v2481
    %v2483 = vsel %vm2480, %v2482, %v2478
    %v2484 = vmul.f32 1.0, %v2483
    %v2485 = vadd.f32 %v2442, %v1592
    %v2486 = vmul.f32 %v2464, %v2485
    %v2487 = vadd.f32 %v2403, %v2486
    %v2488 = vtanh.pop %v2487
    %v2489 = vsub.f32 1.0, %v2484
    %v2490 = vmul.f32 %v2489, %v2488
    %v2491 = vmul.f32 %v2484, %v2363
    %v2492 = vadd.f32 %v2490, %v2491
    %v2493 = vpack.c.bf16 %v2492, %v2492
    %2494 = vst [vmem:[%s1102] sm:$0xf] %v2493
    %v2495 = vld [vmem:[%s1239] sm:$0xf]
    %2496 = vmatpush.bf16.msra.mxu0 %v1696
    %2497 = vmatpush.bf16.msra.mxu0 %v1693
    %2498 = vmatpush.bf16.msra.mxu0 %v1690
    %2499 = vmatpush.bf16.msra.mxu0 %v1687
    %2500 = vmatpush.bf16.msra.mxu0 %v1684
    %2501 = vmatpush.bf16.msra.mxu0 %v1681
    %2502 = vmatpush.bf16.msra.mxu0 %v1678
    %2503 = vmatpush.bf16.msra.mxu0 %v1675
    %2504 = vmatmul.bf16.gmra.mxu0 %v2495
    %v2505 = vpop.f32.mrf.mxu0
    %v2506 = vadd.f32 %v1583, %v2505
    %v2507 = vpop.f32.mrf.mxu0
    %2508 = vdwg.mxu0
    %2509 = vmatpush.bf16.msra.mxu0 %v1697
    %2510 = vmatpush.bf16.msra.mxu0 %v1694
    %2511 = vmatpush.bf16.msra.mxu0 %v1691
    %2512 = vmatpush.bf16.msra.mxu0 %v1688
    %2513 = vmatpush.bf16.msra.mxu0 %v1685
    %2514 = vmatpush.bf16.msra.mxu0 %v1682
    %2515 = vmatpush.bf16.msra.mxu0 %v1679
    %2516 = vmatpush.bf16.msra.mxu0 %v1676
    %2517 = vmatmul.bf16.gmra.mxu0 %v2495
    %v2518 = vpop.f32.mrf.mxu0
    %v2519 = vadd.f32 %v1584, %v2518
    %v2520 = vpop.f32.mrf.mxu0
    %2521 = vdwg.mxu0
    %2522 = vmatpush.bf16.msra.mxu0 %v1698
    %2523 = vmatpush.bf16.msra.mxu0 %v1695
    %2524 = vmatpush.bf16.msra.mxu0 %v1692
    %2525 = vmatpush.bf16.msra.mxu0 %v1689
    %2526 = vmatpush.bf16.msra.mxu0 %v1686
    %2527 = vmatpush.bf16.msra.mxu0 %v1683
    %2528 = vmatpush.bf16.msra.mxu0 %v1680
    %2529 = vmatpush.bf16.msra.mxu0 %v1677
    %2530 = vmatmul.bf16.gmra.mxu0 %v2495
    %v2531 = vpop.f32.mrf.mxu0
    %v2532 = vadd.f32 %v1585, %v2531
    %v2533 = vpop.f32.mrf.mxu0
    %2534 = vdwg.mxu0
    %2535 = vmatpush.bf16.msra.mxu0 %v1863
    %2536 = vmatpush.bf16.msra.mxu0 %v1860
    %2537 = vmatpush.bf16.msra.mxu0 %v1857
    %2538 = vmatpush.bf16.msra.mxu0 %v1854
    %2539 = vmatpush.bf16.msra.mxu0 %v1851
    %2540 = vmatpush.bf16.msra.mxu0 %v1848
    %2541 = vmatpush.bf16.msra.mxu0 %v1845
    %2542 = vmatpush.bf16.msra.mxu0 %v1842
    %2543 = vmatmul.bf16.gmra.mxu0 %v2493
    %v2544 = vpop.f32.mrf.mxu0
    %v2545 = vadd.f32 0.0, %v2544
    %v2546 = vpop.f32.mrf.mxu0
    %2547 = vdwg.mxu0
    %2548 = vmatpush.bf16.msra.mxu0 %v1864
    %2549 = vmatpush.bf16.msra.mxu0 %v1861
    %2550 = vmatpush.bf16.msra.mxu0 %v1858
    %2551 = vmatpush.bf16.msra.mxu0 %v1855
    %2552 = vmatpush.bf16.msra.mxu0 %v1852
    %2553 = vmatpush.bf16.msra.mxu0 %v1849
    %2554 = vmatpush.bf16.msra.mxu0 %v1846
    %2555 = vmatpush.bf16.msra.mxu0 %v1843
    %2556 = vmatmul.bf16.gmra.mxu0 %v2493
    %v2557 = vpop.f32.mrf.mxu0
    %v2558 = vadd.f32 0.0, %v2557
    %v2559 = vpop.f32.mrf.mxu0
    %2560 = vdwg.mxu0
    %2561 = vmatpush.bf16.msra.mxu0 %v1865
    %2562 = vmatpush.bf16.msra.mxu0 %v1862
    %2563 = vmatpush.bf16.msra.mxu0 %v1859
    %2564 = vmatpush.bf16.msra.mxu0 %v1856
    %2565 = vmatpush.bf16.msra.mxu0 %v1853
    %2566 = vmatpush.bf16.msra.mxu0 %v1850
    %2567 = vmatpush.bf16.msra.mxu0 %v1847
    %2568 = vmatpush.bf16.msra.mxu0 %v1844
    %2569 = vmatmul.bf16.gmra.mxu0 %v2493
    %v2570 = vpop.f32.mrf.mxu0
    %v2571 = vadd.f32 0.0, %v2570
    %v2572 = vpop.f32.mrf.mxu0
    %2573 = vdwg.mxu0
    %v2574 = vadd.f32 %v2506, %v2545
    %v2575 = vxor.u32 %v2574, 2147483648
    %v2576 = vmul.f32 %v2575, 1.442695
    %v2577 = vpow.pop %v2576
    %v2578 = vadd.f32 %v2577, 1.0
    %v2579 = vrcp.pop %v2578
    %v2580 = vmul.f32 %v2578, %v2579
    %v2581 = vsub.f32 1.0, %v2580
    %v2582 = vmul.f32 %v2579, %v2581
    %v2583 = vadd.f32 %v2579, %v2582
    %vm2584 = vweird.f32 %v2578
    %vm2585 = vweird.f32 %v2579
    %vm2586 = vmor %vm2584, %vm2585
    %v2587 = vsel %vm2586, %v2579, %v2583
    %v2588 = vand.u32 2147483647, %v2578
    %vm2589 = vcmp.eq.f32.partialorder %v2588, 8.507059e+37
    %v2590 = vand.u32 %v2578, 2147483648
    %v2591 = vor.u32 1.1754944e-38, %v2590
    %v2592 = vsel %vm2589, %v2591, %v2587
    %v2593 = vmul.f32 1.0, %v2592
    %v2594 = vadd.f32 %v2519, %v2558
    %v2595 = vxor.u32 %v2594, 2147483648
    %v2596 = vmul.f32 %v2595, 1.442695
    %v2597 = vpow.pop %v2596
    %v2598 = vadd.f32 %v2597, 1.0
    %v2599 = vrcp.pop %v2598
    %v2600 = vmul.f32 %v2598, %v2599
    %v2601 = vsub.f32 1.0, %v2600
    %v2602 = vmul.f32 %v2599, %v2601
    %v2603 = vadd.f32 %v2599, %v2602
    %vm2604 = vweird.f32 %v2598
    %vm2605 = vweird.f32 %v2599
    %vm2606 = vmor %vm2604, %vm2605
    %v2607 = vsel %vm2606, %v2599, %v2603
    %v2608 = vand.u32 2147483647, %v2598
    %vm2609 = vcmp.eq.f32.partialorder %v2608, 8.507059e+37
    %v2610 = vand.u32 %v2598, 2147483648
    %v2611 = vor.u32 1.1754944e-38, %v2610
    %v2612 = vsel %vm2609, %v2611, %v2607
    %v2613 = vmul.f32 1.0, %v2612
    %v2614 = vadd.f32 %v2571, %v1592
    %v2615 = vmul.f32 %v2593, %v2614
    %v2616 = vadd.f32 %v2532, %v2615
    %v2617 = vtanh.pop %v2616
    %v2618 = vsub.f32 1.0, %v2613
    %v2619 = vmul.f32 %v2618, %v2617
    %v2620 = vmul.f32 %v2613, %v2492
    %v2621 = vadd.f32 %v2619, %v2620
    %v2622 = vpack.c.bf16 %v2621, %v2621
    %2623 = vst [vmem:[%s1239] sm:$0xf] %v2622
    %v2624 = vld [vmem:[%s1376] sm:$0xf]
    %2625 = vmatpush.bf16.msra.mxu0 %v1696
    %2626 = vmatpush.bf16.msra.mxu0 %v1693
    %2627 = vmatpush.bf16.msra.mxu0 %v1690
    %2628 = vmatpush.bf16.msra.mxu0 %v1687
    %2629 = vmatpush.bf16.msra.mxu0 %v1684
    %2630 = vmatpush.bf16.msra.mxu0 %v1681
    %2631 = vmatpush.bf16.msra.mxu0 %v1678
    %2632 = vmatpush.bf16.msra.mxu0 %v1675
    %2633 = vmatmul.bf16.gmra.mxu0 %v2624
    %v2634 = vpop.f32.mrf.mxu0
    %v2635 = vadd.f32 %v1583, %v2634
    %v2636 = vpop.f32.mrf.mxu0
    %2637 = vdwg.mxu0
    %2638 = vmatpush.bf16.msra.mxu0 %v1697
    %2639 = vmatpush.bf16.msra.mxu0 %v1694
    %2640 = vmatpush.bf16.msra.mxu0 %v1691
    %2641 = vmatpush.bf16.msra.mxu0 %v1688
    %2642 = vmatpush.bf16.msra.mxu0 %v1685
    %2643 = vmatpush.bf16.msra.mxu0 %v1682
    %2644 = vmatpush.bf16.msra.mxu0 %v1679
    %2645 = vmatpush.bf16.msra.mxu0 %v1676
    %2646 = vmatmul.bf16.gmra.mxu0 %v2624
    %v2647 = vpop.f32.mrf.mxu0
    %v2648 = vadd.f32 %v1584, %v2647
    %v2649 = vpop.f32.mrf.mxu0
    %2650 = vdwg.mxu0
    %2651 = vmatpush.bf16.msra.mxu0 %v1698
    %2652 = vmatpush.bf16.msra.mxu0 %v1695
    %2653 = vmatpush.bf16.msra.mxu0 %v1692
    %2654 = vmatpush.bf16.msra.mxu0 %v1689
    %2655 = vmatpush.bf16.msra.mxu0 %v1686
    %2656 = vmatpush.bf16.msra.mxu0 %v1683
    %2657 = vmatpush.bf16.msra.mxu0 %v1680
    %2658 = vmatpush.bf16.msra.mxu0 %v1677
    %2659 = vmatmul.bf16.gmra.mxu0 %v2624
    %v2660 = vpop.f32.mrf.mxu0
    %v2661 = vadd.f32 %v1585, %v2660
    %v2662 = vpop.f32.mrf.mxu0
    %2663 = vdwg.mxu0
    %2664 = vmatpush.bf16.msra.mxu0 %v1863
    %2665 = vmatpush.bf16.msra.mxu0 %v1860
    %2666 = vmatpush.bf16.msra.mxu0 %v1857
    %2667 = vmatpush.bf16.msra.mxu0 %v1854
    %2668 = vmatpush.bf16.msra.mxu0 %v1851
    %2669 = vmatpush.bf16.msra.mxu0 %v1848
    %2670 = vmatpush.bf16.msra.mxu0 %v1845
    %2671 = vmatpush.bf16.msra.mxu0 %v1842
    %2672 = vmatmul.bf16.gmra.mxu0 %v2622
    %v2673 = vpop.f32.mrf.mxu0
    %v2674 = vadd.f32 0.0, %v2673
    %v2675 = vpop.f32.mrf.mxu0
    %2676 = vdwg.mxu0
    %2677 = vmatpush.bf16.msra.mxu0 %v1864
    %2678 = vmatpush.bf16.msra.mxu0 %v1861
    %2679 = vmatpush.bf16.msra.mxu0 %v1858
    %2680 = vmatpush.bf16.msra.mxu0 %v1855
    %2681 = vmatpush.bf16.msra.mxu0 %v1852
    %2682 = vmatpush.bf16.msra.mxu0 %v1849
    %2683 = vmatpush.bf16.msra.mxu0 %v1846
    %2684 = vmatpush.bf16.msra.mxu0 %v1843
    %2685 = vmatmul.bf16.gmra.mxu0 %v2622
    %v2686 = vpop.f32.mrf.mxu0
    %v2687 = vadd.f32 0.0, %v2686
    %v2688 = vpop.f32.mrf.mxu0
    %2689 = vdwg.mxu0
    %2690 = vmatpush.bf16.msra.mxu0 %v1865
    %2691 = vmatpush.bf16.msra.mxu0 %v1862
    %2692 = vmatpush.bf16.msra.mxu0 %v1859
    %2693 = vmatpush.bf16.msra.mxu0 %v1856
    %2694 = vmatpush.bf16.msra.mxu0 %v1853
    %2695 = vmatpush.bf16.msra.mxu0 %v1850
    %2696 = vmatpush.bf16.msra.mxu0 %v1847
    %2697 = vmatpush.bf16.msra.mxu0 %v1844
    %2698 = vmatmul.bf16.gmra.mxu0 %v2622
    %v2699 = vpop.f32.mrf.mxu0
    %v2700 = vadd.f32 0.0, %v2699
    %v2701 = vpop.f32.mrf.mxu0
    %2702 = vdwg.mxu0
    %v2703 = vadd.f32 %v2635, %v2674
    %v2704 = vxor.u32 %v2703, 2147483648
    %v2705 = vmul.f32 %v2704, 1.442695
    %v2706 = vpow.pop %v2705
    %v2707 = vadd.f32 %v2706, 1.0
    %v2708 = vrcp.pop %v2707
    %v2709 = vmul.f32 %v2707, %v2708
    %v2710 = vsub.f32 1.0, %v2709
    %v2711 = vmul.f32 %v2708, %v2710
    %v2712 = vadd.f32 %v2708, %v2711
    %vm2713 = vweird.f32 %v2707
    %vm2714 = vweird.f32 %v2708
    %vm2715 = vmor %vm2713, %vm2714
    %v2716 = vsel %vm2715, %v2708, %v2712
    %v2717 = vand.u32 2147483647, %v2707
    %vm2718 = vcmp.eq.f32.partialorder %v2717, 8.507059e+37
    %v2719 = vand.u32 %v2707, 2147483648
    %v2720 = vor.u32 1.1754944e-38, %v2719
    %v2721 = vsel %vm2718, %v2720, %v2716
    %v2722 = vmul.f32 1.0, %v2721
    %v2723 = vadd.f32 %v2648, %v2687
    %v2724 = vxor.u32 %v2723, 2147483648
    %v2725 = vmul.f32 %v2724, 1.442695
    %v2726 = vpow.pop %v2725
    %v2727 = vadd.f32 %v2726, 1.0
    %v2728 = vrcp.pop %v2727
    %v2729 = vmul.f32 %v2727, %v2728
    %v2730 = vsub.f32 1.0, %v2729
    %v2731 = vmul.f32 %v2728, %v2730
    %v2732 = vadd.f32 %v2728, %v2731
    %vm2733 = vweird.f32 %v2727
    %vm2734 = vweird.f32 %v2728
    %vm2735 = vmor %vm2733, %vm2734
    %v2736 = vsel %vm2735, %v2728, %v2732
    %v2737 = vand.u32 2147483647, %v2727
    %vm2738 = vcmp.eq.f32.partialorder %v2737, 8.507059e+37
    %v2739 = vand.u32 %v2727, 2147483648
    %v2740 = vor.u32 1.1754944e-38, %v2739
    %v2741 = vsel %vm2738, %v2740, %v2736
    %v2742 = vmul.f32 1.0, %v2741
    %v2743 = vadd.f32 %v2700, %v1592
    %v2744 = vmul.f32 %v2722, %v2743
    %v2745 = vadd.f32 %v2661, %v2744
    %v2746 = vtanh.pop %v2745
    %v2747 = vsub.f32 1.0, %v2742
    %v2748 = vmul.f32 %v2747, %v2746
    %v2749 = vmul.f32 %v2742, %v2621
    %v2750 = vadd.f32 %v2748, %v2749
    %v2751 = vpack.c.bf16 %v2750, %v2750
    %2752 = vst [vmem:[%s1376] sm:$0xf] %v2751
    %v2753 = vld [vmem:[%s1513] sm:$0xf]
    %2754 = vmatpush.bf16.msra.mxu0 %v1696
    %2755 = vmatpush.bf16.msra.mxu0 %v1693
    %2756 = vmatpush.bf16.msra.mxu0 %v1690
    %2757 = vmatpush.bf16.msra.mxu0 %v1687
    %2758 = vmatpush.bf16.msra.mxu0 %v1684
    %2759 = vmatpush.bf16.msra.mxu0 %v1681
    %2760 = vmatpush.bf16.msra.mxu0 %v1678
    %2761 = vmatpush.bf16.msra.mxu0 %v1675
    %2762 = vmatmul.bf16.gmra.mxu0 %v2753
    %v2763 = vpop.f32.mrf.mxu0
    %v2764 = vadd.f32 %v1583, %v2763
    %v2765 = vpop.f32.mrf.mxu0
    %2766 = vdwg.mxu0
    %2767 = vmatpush.bf16.msra.mxu0 %v1697
    %2768 = vmatpush.bf16.msra.mxu0 %v1694
    %2769 = vmatpush.bf16.msra.mxu0 %v1691
    %2770 = vmatpush.bf16.msra.mxu0 %v1688
    %2771 = vmatpush.bf16.msra.mxu0 %v1685
    %2772 = vmatpush.bf16.msra.mxu0 %v1682
    %2773 = vmatpush.bf16.msra.mxu0 %v1679
    %2774 = vmatpush.bf16.msra.mxu0 %v1676
    %2775 = vmatmul.bf16.gmra.mxu0 %v2753
    %v2776 = vpop.f32.mrf.mxu0
    %v2777 = vadd.f32 %v1584, %v2776
    %v2778 = vpop.f32.mrf.mxu0
    %2779 = vdwg.mxu0
    %2780 = vmatpush.bf16.msra.mxu0 %v1698
    %2781 = vmatpush.bf16.msra.mxu0 %v1695
    %2782 = vmatpush.bf16.msra.mxu0 %v1692
    %2783 = vmatpush.bf16.msra.mxu0 %v1689
    %2784 = vmatpush.bf16.msra.mxu0 %v1686
    %2785 = vmatpush.bf16.msra.mxu0 %v1683
    %2786 = vmatpush.bf16.msra.mxu0 %v1680
    %2787 = vmatpush.bf16.msra.mxu0 %v1677
    %2788 = vmatmul.bf16.gmra.mxu0 %v2753
    %v2789 = vpop.f32.mrf.mxu0
    %v2790 = vadd.f32 %v1585, %v2789
    %v2791 = vpop.f32.mrf.mxu0
    %2792 = vdwg.mxu0
    %2793 = vmatpush.bf16.msra.mxu0 %v1863
    %2794 = vmatpush.bf16.msra.mxu0 %v1860
    %2795 = vmatpush.bf16.msra.mxu0 %v1857
    %2796 = vmatpush.bf16.msra.mxu0 %v1854
    %2797 = vmatpush.bf16.msra.mxu0 %v1851
    %2798 = vmatpush.bf16.msra.mxu0 %v1848
    %2799 = vmatpush.bf16.msra.mxu0 %v1845
    %2800 = vmatpush.bf16.msra.mxu0 %v1842
    %2801 = vmatmul.bf16.gmra.mxu0 %v2751
    %v2802 = vpop.f32.mrf.mxu0
    %v2803 = vadd.f32 0.0, %v2802
    %v2804 = vpop.f32.mrf.mxu0
    %2805 = vdwg.mxu0
    %2806 = vmatpush.bf16.msra.mxu0 %v1864
    %2807 = vmatpush.bf16.msra.mxu0 %v1861
    %2808 = vmatpush.bf16.msra.mxu0 %v1858
    %2809 = vmatpush.bf16.msra.mxu0 %v1855
    %2810 = vmatpush.bf16.msra.mxu0 %v1852
    %2811 = vmatpush.bf16.msra.mxu0 %v1849
    %2812 = vmatpush.bf16.msra.mxu0 %v1846
    %2813 = vmatpush.bf16.msra.mxu0 %v1843
    %2814 = vmatmul.bf16.gmra.mxu0 %v2751
    %v2815 = vpop.f32.mrf.mxu0
    %v2816 = vadd.f32 0.0, %v2815
    %v2817 = vpop.f32.mrf.mxu0
    %2818 = vdwg.mxu0
    %2819 = vmatpush.bf16.msra.mxu0 %v1865
    %2820 = vmatpush.bf16.msra.mxu0 %v1862
    %2821 = vmatpush.bf16.msra.mxu0 %v1859
    %2822 = vmatpush.bf16.msra.mxu0 %v1856
    %2823 = vmatpush.bf16.msra.mxu0 %v1853
    %2824 = vmatpush.bf16.msra.mxu0 %v1850
    %2825 = vmatpush.bf16.msra.mxu0 %v1847
    %2826 = vmatpush.bf16.msra.mxu0 %v1844
    %2827 = vmatmul.bf16.gmra.mxu0 %v2751
    %v2828 = vpop.f32.mrf.mxu0
    %v2829 = vadd.f32 0.0, %v2828
    %v2830 = vpop.f32.mrf.mxu0
    %2831 = vdwg.mxu0
    %v2832 = vadd.f32 %v2764, %v2803
    %v2833 = vxor.u32 %v2832, 2147483648
    %v2834 = vmul.f32 %v2833, 1.442695
    %v2835 = vpow.pop %v2834
    %v2836 = vadd.f32 %v2835, 1.0
    %v2837 = vrcp.pop %v2836
    %v2838 = vmul.f32 %v2836, %v2837
    %v2839 = vsub.f32 1.0, %v2838
    %v2840 = vmul.f32 %v2837, %v2839
    %v2841 = vadd.f32 %v2837, %v2840
    %vm2842 = vweird.f32 %v2836
    %vm2843 = vweird.f32 %v2837
    %vm2844 = vmor %vm2842, %vm2843
    %v2845 = vsel %vm2844, %v2837, %v2841
    %v2846 = vand.u32 2147483647, %v2836
    %vm2847 = vcmp.eq.f32.partialorder %v2846, 8.507059e+37
    %v2848 = vand.u32 %v2836, 2147483648
    %v2849 = vor.u32 1.1754944e-38, %v2848
    %v2850 = vsel %vm2847, %v2849, %v2845
    %v2851 = vmul.f32 1.0, %v2850
    %v2852 = vadd.f32 %v2777, %v2816
    %v2853 = vxor.u32 %v2852, 2147483648
    %v2854 = vmul.f32 %v2853, 1.442695
    %v2855 = vpow.pop %v2854
    %v2856 = vadd.f32 %v2855, 1.0
    %v2857 = vrcp.pop %v2856
    %v2858 = vmul.f32 %v2856, %v2857
    %v2859 = vsub.f32 1.0, %v2858
    %v2860 = vmul.f32 %v2857, %v2859
    %v2861 = vadd.f32 %v2857, %v2860
    %vm2862 = vweird.f32 %v2856
    %vm2863 = vweird.f32 %v2857
    %vm2864 = vmor %vm2862, %vm2863
    %v2865 = vsel %vm2864, %v2857, %v2861
    %v2866 = vand.u32 2147483647, %v2856
    %vm2867 = vcmp.eq.f32.partialorder %v2866, 8.507059e+37
    %v2868 = vand.u32 %v2856, 2147483648
    %v2869 = vor.u32 1.1754944e-38, %v2868
    %v2870 = vsel %vm2867, %v2869, %v2865
    %v2871 = vmul.f32 1.0, %v2870
    %v2872 = vadd.f32 %v2829, %v1592
    %v2873 = vmul.f32 %v2851, %v2872
    %v2874 = vadd.f32 %v2790, %v2873
    %v2875 = vtanh.pop %v2874
    %v2876 = vsub.f32 1.0, %v2871
    %v2877 = vmul.f32 %v2876, %v2875
    %v2878 = vmul.f32 %v2871, %v2750
    %v2879 = vadd.f32 %v2877, %v2878
    %v2880 = vpack.c.bf16 %v2879, %v2879
    %2881 = vst [vmem:[%s1513] sm:$0xf] %v2880
    %s2882 = scalar_lea.vmem [#allocation6], 192
    %v2883 = vld [vmem:[%s2882] sm:$0xff]
    %v2884 = vld [vmem:[%s2882 + $0x8] sm:$0xf]
    %v2885 = vld [vmem:[%s2882 + $0xc] sm:$0xff]
    %v2886 = vld [vmem:[%s2882 + $0x14] sm:$0xf]
    %v2887 = vld [vmem:[%s2882 + $0x18] sm:$0xff]
    %v2888 = vld [vmem:[%s2882 + $0x20] sm:$0xf]
    %v2889 = vld [vmem:[%s2882 + $0x24] sm:$0xff]
    %v2890 = vld [vmem:[%s2882 + $0x2c] sm:$0xf]
    %v2891 = vld [vmem:[%s2882 + $0x30] sm:$0xff]
    %v2892 = vld [vmem:[%s2882 + $0x38] sm:$0xf]
    %v2893 = vld [vmem:[%s2882 + $0x3c] sm:$0xff]
    %v2894 = vld [vmem:[%s2882 + $0x44] sm:$0xf]
    %v2895 = vld [vmem:[%s2882 + $0x48] sm:$0xff]
    %v2896 = vld [vmem:[%s2882 + $0x50] sm:$0xf]
    %v2897 = vld [vmem:[%s2882 + $0x54] sm:$0xff]
    %v2898 = vld [vmem:[%s2882 + $0x5c] sm:$0xf]
    %v2899 = vld [vmem:[%s2882 + $0x60] sm:$0xff]
    %v2900 = vld [vmem:[%s2882 + $0x68] sm:$0xf]
    %v2901 = vld [vmem:[%s2882 + $0x6c] sm:$0xff]
    %v2902 = vld [vmem:[%s2882 + $0x74] sm:$0xf]
    %v2903 = vld [vmem:[%s2882 + $0x78] sm:$0xff]
    %v2904 = vld [vmem:[%s2882 + $0x80] sm:$0xf]
    %v2905 = vld [vmem:[%s2882 + $0x84] sm:$0xff]
    %v2906 = vld [vmem:[%s2882 + $0x8c] sm:$0xf]
    %v2907 = vld [vmem:[%s2882 + $0x90] sm:$0xff]
    %v2908 = vld [vmem:[%s2882 + $0x98] sm:$0xf]
    %v2909 = vld [vmem:[%s2882 + $0x9c] sm:$0xff]
    %v2910 = vld [vmem:[%s2882 + $0xa4] sm:$0xf]
    %v2911 = vld [vmem:[%s2882 + $0xa8] sm:$0xff]
    %v2912 = vld [vmem:[%s2882 + $0xb0] sm:$0xf]
    %v2913 = vld [vmem:[%s2882 + $0xb4] sm:$0xff]
    %v2914 = vld [vmem:[%s2882 + $0xbc] sm:$0xf]
    %s2915 = scalar_lea.vmem [#allocation8], 384
    %v2916 = vld [vmem:[%s2915] sm:$0xff]
    %v2917 = vld [vmem:[%s2915 + $0x8] sm:$0xf]
    %v2918 = vld [vmem:[%s2915 + $0xc] sm:$0xff]
    %v2919 = vld [vmem:[%s2915 + $0x14] sm:$0xf]
    %v2920 = vld [vmem:[%s2915 + $0x18] sm:$0xff]
    %v2921 = vld [vmem:[%s2915 + $0x20] sm:$0xf]
    %v2922 = vld [vmem:[%s2915 + $0x24] sm:$0xff]
    %v2923 = vld [vmem:[%s2915 + $0x2c] sm:$0xf]
    %v2924 = vld [vmem:[%s2915 + $0x30] sm:$0xff]
    %v2925 = vld [vmem:[%s2915 + $0x38] sm:$0xf]
    %v2926 = vld [vmem:[%s2915 + $0x3c] sm:$0xff]
    %v2927 = vld [vmem:[%s2915 + $0x44] sm:$0xf]
    %v2928 = vld [vmem:[%s2915 + $0x48] sm:$0xff]
    %v2929 = vld [vmem:[%s2915 + $0x50] sm:$0xf]
    %v2930 = vld [vmem:[%s2915 + $0x54] sm:$0xff]
    %v2931 = vld [vmem:[%s2915 + $0x5c] sm:$0xf]
    %v2932 = vld [vmem:[%s2915 + $0x60] sm:$0xff]
    %v2933 = vld [vmem:[%s2915 + $0x68] sm:$0xf]
    %v2934 = vld [vmem:[%s2915 + $0x6c] sm:$0xff]
    %v2935 = vld [vmem:[%s2915 + $0x74] sm:$0xf]
    %v2936 = vld [vmem:[%s2915 + $0x78] sm:$0xff]
    %v2937 = vld [vmem:[%s2915 + $0x80] sm:$0xf]
    %v2938 = vld [vmem:[%s2915 + $0x84] sm:$0xff]
    %v2939 = vld [vmem:[%s2915 + $0x8c] sm:$0xf]
    %v2940 = vld [vmem:[%s2915 + $0x90] sm:$0xff]
    %v2941 = vld [vmem:[%s2915 + $0x98] sm:$0xf]
    %v2942 = vld [vmem:[%s2915 + $0x9c] sm:$0xff]
    %v2943 = vld [vmem:[%s2915 + $0xa4] sm:$0xf]
    %v2944 = vld [vmem:[%s2915 + $0xa8] sm:$0xff]
    %v2945 = vld [vmem:[%s2915 + $0xb0] sm:$0xf]
    %v2946 = vld [vmem:[%s2915 + $0xb4] sm:$0xff]
    %v2947 = vld [vmem:[%s2915 + $0xbc] sm:$0xf]
    %s2948 = scalar_lea.vmem %s4, 6
    %v2949 = vld [vmem:[%s2948] sm:$0x7]
    %v2951 = vperm.slane %v2949, 0
    %v2952 = vperm.slane %v2949, 1
    %v2953 = vperm.slane %v2949, 2
    %s2957 = scalar_lea.vmem %s5, 2
    %v2958 = vld [vmem:[%s2957] sm:$0x1]
    %v2960 = vperm.slane %v2958, 0
    %v2962 = vld [vmem:[#allocation2] sm:$0xf]
    %v2995 = vunpack.c.l.b16 %v2883
    %v2996 = vunpack.c.h.b16 %v2883
    %v2997 = vunpack.c.l.b16 %v2884
    %v2998 = vunpack.c.l.b16 %v2885
    %v2999 = vunpack.c.h.b16 %v2885
    %v3000 = vunpack.c.l.b16 %v2886
    %v3001 = vunpack.c.l.b16 %v2887
    %v3002 = vunpack.c.h.b16 %v2887
    %v3003 = vunpack.c.l.b16 %v2888
    %v3004 = vunpack.c.l.b16 %v2889
    %v3005 = vunpack.c.h.b16 %v2889
    %v3006 = vunpack.c.l.b16 %v2890
    %v3007 = vunpack.c.l.b16 %v2891
    %v3008 = vunpack.c.h.b16 %v2891
    %v3009 = vunpack.c.l.b16 %v2892
    %v3010 = vunpack.c.l.b16 %v2893
    %v3011 = vunpack.c.h.b16 %v2893
    %v3012 = vunpack.c.l.b16 %v2894
    %v3013 = vunpack.c.l.b16 %v2895
    %v3014 = vunpack.c.h.b16 %v2895
    %v3015 = vunpack.c.l.b16 %v2896
    %v3016 = vunpack.c.l.b16 %v2897
    %v3017 = vunpack.c.h.b16 %v2897
    %v3018 = vunpack.c.l.b16 %v2898
    %v3019 = vunpack.c.l.b16 %v2899
    %v3020 = vunpack.c.h.b16 %v2899
    %v3021 = vunpack.c.l.b16 %v2900
    %v3022 = vunpack.c.l.b16 %v2901
    %v3023 = vunpack.c.h.b16 %v2901
    %v3024 = vunpack.c.l.b16 %v2902
    %v3025 = vunpack.c.l.b16 %v2903
    %v3026 = vunpack.c.h.b16 %v2903
    %v3027 = vunpack.c.l.b16 %v2904
    %v3028 = vunpack.c.l.b16 %v2905
    %v3029 = vunpack.c.h.b16 %v2905
    %v3030 = vunpack.c.l.b16 %v2906
    %v3031 = vunpack.c.l.b16 %v2907
    %v3032 = vunpack.c.h.b16 %v2907
    %v3033 = vunpack.c.l.b16 %v2908
    %v3034 = vunpack.c.l.b16 %v2909
    %v3035 = vunpack.c.h.b16 %v2909
    %v3036 = vunpack.c.l.b16 %v2910
    %v3037 = vunpack.c.l.b16 %v2911
    %v3038 = vunpack.c.h.b16 %v2911
    %v3039 = vunpack.c.l.b16 %v2912
    %v3040 = vunpack.c.l.b16 %v2913
    %v3041 = vunpack.c.h.b16 %v2913
    %v3042 = vunpack.c.l.b16 %v2914
    %v3043 = vpack.c.b16 %v2998, %v2995
    %v3044 = vpack.c.b16 %v2999, %v2996
    %v3045 = vpack.c.b16 %v3000, %v2997
    %v3046 = vpack.c.b16 %v3004, %v3001
    %v3047 = vpack.c.b16 %v3005, %v3002
    %v3048 = vpack.c.b16 %v3006, %v3003
    %v3049 = vpack.c.b16 %v3010, %v3007
    %v3050 = vpack.c.b16 %v3011, %v3008
    %v3051 = vpack.c.b16 %v3012, %v3009
    %v3052 = vpack.c.b16 %v3016, %v3013
    %v3053 = vpack.c.b16 %v3017, %v3014
    %v3054 = vpack.c.b16 %v3018, %v3015
    %v3055 = vpack.c.b16 %v3022, %v3019
    %v3056 = vpack.c.b16 %v3023, %v3020
    %v3057 = vpack.c.b16 %v3024, %v3021
    %v3058 = vpack.c.b16 %v3028, %v3025
    %v3059 = vpack.c.b16 %v3029, %v3026
    %v3060 = vpack.c.b16 %v3030, %v3027
    %v3061 = vpack.c.b16 %v3034, %v3031
    %v3062 = vpack.c.b16 %v3035, %v3032
    %v3063 = vpack.c.b16 %v3036, %v3033
    %v3064 = vpack.c.b16 %v3040, %v3037
    %v3065 = vpack.c.b16 %v3041, %v3038
    %v3066 = vpack.c.b16 %v3042, %v3039
    %3091 = vmatpush.bf16.msra.mxu0 %v3064
    %3092 = vmatpush.bf16.msra.mxu0 %v3061
    %3093 = vmatpush.bf16.msra.mxu0 %v3058
    %3094 = vmatpush.bf16.msra.mxu0 %v3055
    %3095 = vmatpush.bf16.msra.mxu0 %v3052
    %3096 = vmatpush.bf16.msra.mxu0 %v3049
    %3097 = vmatpush.bf16.msra.mxu0 %v3046
    %3098 = vmatpush.bf16.msra.mxu0 %v3043
    %3099 = vmatmul.bf16.gmra.mxu0 %v2962
    %v3100 = vpop.f32.mrf.mxu0
    %v3101 = vadd.f32 %v2951, %v3100
    %v3102 = vpop.f32.mrf.mxu0
    %3103 = vdwg.mxu0
    %3104 = vmatpush.bf16.msra.mxu0 %v3065
    %3105 = vmatpush.bf16.msra.mxu0 %v3062
    %3106 = vmatpush.bf16.msra.mxu0 %v3059
    %3107 = vmatpush.bf16.msra.mxu0 %v3056
    %3108 = vmatpush.bf16.msra.mxu0 %v3053
    %3109 = vmatpush.bf16.msra.mxu0 %v3050
    %3110 = vmatpush.bf16.msra.mxu0 %v3047
    %3111 = vmatpush.bf16.msra.mxu0 %v3044
    %3112 = vmatmul.bf16.gmra.mxu0 %v2962
    %v3113 = vpop.f32.mrf.mxu0
    %v3114 = vadd.f32 %v2952, %v3113
    %v3115 = vpop.f32.mrf.mxu0
    %3116 = vdwg.mxu0
    %3117 = vmatpush.bf16.msra.mxu0 %v3066
    %3118 = vmatpush.bf16.msra.mxu0 %v3063
    %3119 = vmatpush.bf16.msra.mxu0 %v3060
    %3120 = vmatpush.bf16.msra.mxu0 %v3057
    %3121 = vmatpush.bf16.msra.mxu0 %v3054
    %3122 = vmatpush.bf16.msra.mxu0 %v3051
    %3123 = vmatpush.bf16.msra.mxu0 %v3048
    %3124 = vmatpush.bf16.msra.mxu0 %v3045
    %3125 = vmatmul.bf16.gmra.mxu0 %v2962
    %v3126 = vpop.f32.mrf.mxu0
    %v3127 = vadd.f32 %v2953, %v3126
    %v3128 = vpop.f32.mrf.mxu0
    %3129 = vdwg.mxu0
    %v3162 = vunpack.c.l.b16 %v2916
    %v3163 = vunpack.c.h.b16 %v2916
    %v3164 = vunpack.c.l.b16 %v2917
    %v3165 = vunpack.c.l.b16 %v2918
    %v3166 = vunpack.c.h.b16 %v2918
    %v3167 = vunpack.c.l.b16 %v2919
    %v3168 = vunpack.c.l.b16 %v2920
    %v3169 = vunpack.c.h.b16 %v2920
    %v3170 = vunpack.c.l.b16 %v2921
    %v3171 = vunpack.c.l.b16 %v2922
    %v3172 = vunpack.c.h.b16 %v2922
    %v3173 = vunpack.c.l.b16 %v2923
    %v3174 = vunpack.c.l.b16 %v2924
    %v3175 = vunpack.c.h.b16 %v2924
    %v3176 = vunpack.c.l.b16 %v2925
    %v3177 = vunpack.c.l.b16 %v2926
    %v3178 = vunpack.c.h.b16 %v2926
    %v3179 = vunpack.c.l.b16 %v2927
    %v3180 = vunpack.c.l.b16 %v2928
    %v3181 = vunpack.c.h.b16 %v2928
    %v3182 = vunpack.c.l.b16 %v2929
    %v3183 = vunpack.c.l.b16 %v2930
    %v3184 = vunpack.c.h.b16 %v2930
    %v3185 = vunpack.c.l.b16 %v2931
    %v3186 = vunpack.c.l.b16 %v2932
    %v3187 = vunpack.c.h.b16 %v2932
    %v3188 = vunpack.c.l.b16 %v2933
    %v3189 = vunpack.c.l.b16 %v2934
    %v3190 = vunpack.c.h.b16 %v2934
    %v3191 = vunpack.c.l.b16 %v2935
    %v3192 = vunpack.c.l.b16 %v2936
    %v3193 = vunpack.c.h.b16 %v2936
    %v3194 = vunpack.c.l.b16 %v2937
    %v3195 = vunpack.c.l.b16 %v2938
    %v3196 = vunpack.c.h.b16 %v2938
    %v3197 = vunpack.c.l.b16 %v2939
    %v3198 = vunpack.c.l.b16 %v2940
    %v3199 = vunpack.c.h.b16 %v2940
    %v3200 = vunpack.c.l.b16 %v2941
    %v3201 = vunpack.c.l.b16 %v2942
    %v3202 = vunpack.c.h.b16 %v2942
    %v3203 = vunpack.c.l.b16 %v2943
    %v3204 = vunpack.c.l.b16 %v2944
    %v3205 = vunpack.c.h.b16 %v2944
    %v3206 = vunpack.c.l.b16 %v2945
    %v3207 = vunpack.c.l.b16 %v2946
    %v3208 = vunpack.c.h.b16 %v2946
    %v3209 = vunpack.c.l.b16 %v2947
    %v3210 = vpack.c.b16 %v3165, %v3162
    %v3211 = vpack.c.b16 %v3166, %v3163
    %v3212 = vpack.c.b16 %v3167, %v3164
    %v3213 = vpack.c.b16 %v3171, %v3168
    %v3214 = vpack.c.b16 %v3172, %v3169
    %v3215 = vpack.c.b16 %v3173, %v3170
    %v3216 = vpack.c.b16 %v3177, %v3174
    %v3217 = vpack.c.b16 %v3178, %v3175
    %v3218 = vpack.c.b16 %v3179, %v3176
    %v3219 = vpack.c.b16 %v3183, %v3180
    %v3220 = vpack.c.b16 %v3184, %v3181
    %v3221 = vpack.c.b16 %v3185, %v3182
    %v3222 = vpack.c.b16 %v3189, %v3186
    %v3223 = vpack.c.b16 %v3190, %v3187
    %v3224 = vpack.c.b16 %v3191, %v3188
    %v3225 = vpack.c.b16 %v3195, %v3192
    %v3226 = vpack.c.b16 %v3196, %v3193
    %v3227 = vpack.c.b16 %v3197, %v3194
    %v3228 = vpack.c.b16 %v3201, %v3198
    %v3229 = vpack.c.b16 %v3202, %v3199
    %v3230 = vpack.c.b16 %v3203, %v3200
    %v3231 = vpack.c.b16 %v3207, %v3204
    %v3232 = vpack.c.b16 %v3208, %v3205
    %v3233 = vpack.c.b16 %v3209, %v3206
    %3258 = vmatpush.bf16.msra.mxu0 %v3231
    %3259 = vmatpush.bf16.msra.mxu0 %v3228
    %3260 = vmatpush.bf16.msra.mxu0 %v3225
    %3261 = vmatpush.bf16.msra.mxu0 %v3222
    %3262 = vmatpush.bf16.msra.mxu0 %v3219
    %3263 = vmatpush.bf16.msra.mxu0 %v3216
    %3264 = vmatpush.bf16.msra.mxu0 %v3213
    %3265 = vmatpush.bf16.msra.mxu0 %v3210
    %3266 = vmatmul.bf16.gmra.mxu0 0
    %v3267 = vpop.f32.mrf.mxu0
    %v3268 = vadd.f32 0.0, %v3267
    %v3269 = vpop.f32.mrf.mxu0
    %3270 = vdwg.mxu0
    %3271 = vmatpush.bf16.msra.mxu0 %v3232
    %3272 = vmatpush.bf16.msra.mxu0 %v3229
    %3273 = vmatpush.bf16.msra.mxu0 %v3226
    %3274 = vmatpush.bf16.msra.mxu0 %v3223
    %3275 = vmatpush.bf16.msra.mxu0 %v3220
    %3276 = vmatpush.bf16.msra.mxu0 %v3217
    %3277 = vmatpush.bf16.msra.mxu0 %v3214
    %3278 = vmatpush.bf16.msra.mxu0 %v3211
    %3279 = vmatmul.bf16.gmra.mxu0 0
    %v3280 = vpop.f32.mrf.mxu0
    %v3281 = vadd.f32 0.0, %v3280
    %v3282 = vpop.f32.mrf.mxu0
    %3283 = vdwg.mxu0
    %3284 = vmatpush.bf16.msra.mxu0 %v3233
    %3285 = vmatpush.bf16.msra.mxu0 %v3230
    %3286 = vmatpush.bf16.msra.mxu0 %v3227
    %3287 = vmatpush.bf16.msra.mxu0 %v3224
    %3288 = vmatpush.bf16.msra.mxu0 %v3221
    %3289 = vmatpush.bf16.msra.mxu0 %v3218
    %3290 = vmatpush.bf16.msra.mxu0 %v3215
    %3291 = vmatpush.bf16.msra.mxu0 %v3212
    %3292 = vmatmul.bf16.gmra.mxu0 0
    %v3293 = vpop.f32.mrf.mxu0
    %v3294 = vadd.f32 0.0, %v3293
    %v3295 = vpop.f32.mrf.mxu0
    %3296 = vdwg.mxu0
    %v3297 = vadd.f32 %v3101, %v3268
    %v3298 = vxor.u32 %v3297, 2147483648
    %v3299 = vmul.f32 %v3298, 1.442695
    %v3300 = vpow.pop %v3299
    %v3301 = vadd.f32 %v3300, 1.0
    %v3302 = vrcp.pop %v3301
    %v3303 = vmul.f32 %v3301, %v3302
    %v3304 = vsub.f32 1.0, %v3303
    %v3305 = vmul.f32 %v3302, %v3304
    %v3306 = vadd.f32 %v3302, %v3305
    %vm3307 = vweird.f32 %v3301
    %vm3308 = vweird.f32 %v3302
    %vm3309 = vmor %vm3307, %vm3308
    %v3310 = vsel %vm3309, %v3302, %v3306
    %v3311 = vand.u32 2147483647, %v3301
    %vm3312 = vcmp.eq.f32.partialorder %v3311, 8.507059e+37
    %v3313 = vand.u32 %v3301, 2147483648
    %v3314 = vor.u32 1.1754944e-38, %v3313
    %v3315 = vsel %vm3312, %v3314, %v3310
    %v3316 = vmul.f32 1.0, %v3315
    %v3317 = vadd.f32 %v3114, %v3281
    %v3318 = vxor.u32 %v3317, 2147483648
    %v3319 = vmul.f32 %v3318, 1.442695
    %v3320 = vpow.pop %v3319
    %v3321 = vadd.f32 %v3320, 1.0
    %v3322 = vrcp.pop %v3321
    %v3323 = vmul.f32 %v3321, %v3322
    %v3324 = vsub.f32 1.0, %v3323
    %v3325 = vmul.f32 %v3322, %v3324
    %v3326 = vadd.f32 %v3322, %v3325
    %vm3327 = vweird.f32 %v3321
    %vm3328 = vweird.f32 %v3322
    %vm3329 = vmor %vm3327, %vm3328
    %v3330 = vsel %vm3329, %v3322, %v3326
    %v3331 = vand.u32 2147483647, %v3321
    %vm3332 = vcmp.eq.f32.partialorder %v3331, 8.507059e+37
    %v3333 = vand.u32 %v3321, 2147483648
    %v3334 = vor.u32 1.1754944e-38, %v3333
    %v3335 = vsel %vm3332, %v3334, %v3330
    %v3336 = vmul.f32 1.0, %v3335
    %v3337 = vadd.f32 %v3294, %v2960
    %v3338 = vmul.f32 %v3316, %v3337
    %v3339 = vadd.f32 %v3127, %v3338
    %v3340 = vtanh.pop %v3339
    %v3341 = vsub.f32 1.0, %v3336
    %v3342 = vmul.f32 %v3341, %v3340
    %v3343 = vmul.f32 %v3336, 0.0
    %v3344 = vadd.f32 %v3342, %v3343
    %v3345 = vmul.f32 %v3344, %v84
    %3346 = vadd.xlane.f32.xlu0 %v3345
    %v3347 = vpop.xlane.xlu0 %3346
    %v3348 = vmul.f32 %v3344, %v3347
    %v3349 = vadd.f32 %v3348, 0.0
    %v3350 = vld [vmem:[%s691] sm:$0xf]
    %3351 = vmatpush.bf16.msra.mxu0 %v3064
    %3352 = vmatpush.bf16.msra.mxu0 %v3061
    %3353 = vmatpush.bf16.msra.mxu0 %v3058
    %3354 = vmatpush.bf16.msra.mxu0 %v3055
    %3355 = vmatpush.bf16.msra.mxu0 %v3052
    %3356 = vmatpush.bf16.msra.mxu0 %v3049
    %3357 = vmatpush.bf16.msra.mxu0 %v3046
    %3358 = vmatpush.bf16.msra.mxu0 %v3043
    %3359 = vmatmul.bf16.gmra.mxu0 %v3350
    %v3360 = vpop.f32.mrf.mxu0
    %v3361 = vadd.f32 %v2951, %v3360
    %v3362 = vpop.f32.mrf.mxu0
    %3363 = vdwg.mxu0
    %3364 = vmatpush.bf16.msra.mxu0 %v3065
    %3365 = vmatpush.bf16.msra.mxu0 %v3062
    %3366 = vmatpush.bf16.msra.mxu0 %v3059
    %3367 = vmatpush.bf16.msra.mxu0 %v3056
    %3368 = vmatpush.bf16.msra.mxu0 %v3053
    %3369 = vmatpush.bf16.msra.mxu0 %v3050
    %3370 = vmatpush.bf16.msra.mxu0 %v3047
    %3371 = vmatpush.bf16.msra.mxu0 %v3044
    %3372 = vmatmul.bf16.gmra.mxu0 %v3350
    %v3373 = vpop.f32.mrf.mxu0
    %v3374 = vadd.f32 %v2952, %v3373
    %v3375 = vpop.f32.mrf.mxu0
    %3376 = vdwg.mxu0
    %3377 = vmatpush.bf16.msra.mxu0 %v3066
    %3378 = vmatpush.bf16.msra.mxu0 %v3063
    %3379 = vmatpush.bf16.msra.mxu0 %v3060
    %3380 = vmatpush.bf16.msra.mxu0 %v3057
    %3381 = vmatpush.bf16.msra.mxu0 %v3054
    %3382 = vmatpush.bf16.msra.mxu0 %v3051
    %3383 = vmatpush.bf16.msra.mxu0 %v3048
    %3384 = vmatpush.bf16.msra.mxu0 %v3045
    %3385 = vmatmul.bf16.gmra.mxu0 %v3350
    %v3386 = vpop.f32.mrf.mxu0
    %v3387 = vadd.f32 %v2953, %v3386
    %v3388 = vpop.f32.mrf.mxu0
    %3389 = vdwg.mxu0
    %v3390 = vpack.c.bf16 %v3344, %v3344
    %3391 = vmatpush.bf16.msra.mxu0 %v3231
    %3392 = vmatpush.bf16.msra.mxu0 %v3228
    %3393 = vmatpush.bf16.msra.mxu0 %v3225
    %3394 = vmatpush.bf16.msra.mxu0 %v3222
    %3395 = vmatpush.bf16.msra.mxu0 %v3219
    %3396 = vmatpush.bf16.msra.mxu0 %v3216
    %3397 = vmatpush.bf16.msra.mxu0 %v3213
    %3398 = vmatpush.bf16.msra.mxu0 %v3210
    %3399 = vmatmul.bf16.gmra.mxu0 %v3390
    %v3400 = vpop.f32.mrf.mxu0
    %v3401 = vadd.f32 0.0, %v3400
    %v3402 = vpop.f32.mrf.mxu0
    %3403 = vdwg.mxu0
    %3404 = vmatpush.bf16.msra.mxu0 %v3232
    %3405 = vmatpush.bf16.msra.mxu0 %v3229
    %3406 = vmatpush.bf16.msra.mxu0 %v3226
    %3407 = vmatpush.bf16.msra.mxu0 %v3223
    %3408 = vmatpush.bf16.msra.mxu0 %v3220
    %3409 = vmatpush.bf16.msra.mxu0 %v3217
    %3410 = vmatpush.bf16.msra.mxu0 %v3214
    %3411 = vmatpush.bf16.msra.mxu0 %v3211
    %3412 = vmatmul.bf16.gmra.mxu0 %v3390
    %v3413 = vpop.f32.mrf.mxu0
    %v3414 = vadd.f32 0.0, %v3413
    %v3415 = vpop.f32.mrf.mxu0
    %3416 = vdwg.mxu0
    %3417 = vmatpush.bf16.msra.mxu0 %v3233
    %3418 = vmatpush.bf16.msra.mxu0 %v3230
    %3419 = vmatpush.bf16.msra.mxu0 %v3227
    %3420 = vmatpush.bf16.msra.mxu0 %v3224
    %3421 = vmatpush.bf16.msra.mxu0 %v3221
    %3422 = vmatpush.bf16.msra.mxu0 %v3218
    %3423 = vmatpush.bf16.msra.mxu0 %v3215
    %3424 = vmatpush.bf16.msra.mxu0 %v3212
    %3425 = vmatmul.bf16.gmra.mxu0 %v3390
    %v3426 = vpop.f32.mrf.mxu0
    %v3427 = vadd.f32 0.0, %v3426
    %v3428 = vpop.f32.mrf.mxu0
    %3429 = vdwg.mxu0
    %v3430 = vadd.f32 %v3361, %v3401
    %v3431 = vxor.u32 %v3430, 2147483648
    %v3432 = vmul.f32 %v3431, 1.442695
    %v3433 = vpow.pop %v3432
    %v3434 = vadd.f32 %v3433, 1.0
    %v3435 = vrcp.pop %v3434
    %v3436 = vmul.f32 %v3434, %v3435
    %v3437 = vsub.f32 1.0, %v3436
    %v3438 = vmul.f32 %v3435, %v3437
    %v3439 = vadd.f32 %v3435, %v3438
    %vm3440 = vweird.f32 %v3434
    %vm3441 = vweird.f32 %v3435
    %vm3442 = vmor %vm3440, %vm3441
    %v3443 = vsel %vm3442, %v3435, %v3439
    %v3444 = vand.u32 2147483647, %v3434
    %vm3445 = vcmp.eq.f32.partialorder %v3444, 8.507059e+37
    %v3446 = vand.u32 %v3434, 2147483648
    %v3447 = vor.u32 1.1754944e-38, %v3446
    %v3448 = vsel %vm3445, %v3447, %v3443
    %v3449 = vmul.f32 1.0, %v3448
    %v3450 = vadd.f32 %v3374, %v3414
    %v3451 = vxor.u32 %v3450, 2147483648
    %v3452 = vmul.f32 %v3451, 1.442695
    %v3453 = vpow.pop %v3452
    %v3454 = vadd.f32 %v3453, 1.0
    %v3455 = vrcp.pop %v3454
    %v3456 = vmul.f32 %v3454, %v3455
    %v3457 = vsub.f32 1.0, %v3456
    %v3458 = vmul.f32 %v3455, %v3457
    %v3459 = vadd.f32 %v3455, %v3458
    %vm3460 = vweird.f32 %v3454
    %vm3461 = vweird.f32 %v3455
    %vm3462 = vmor %vm3460, %vm3461
    %v3463 = vsel %vm3462, %v3455, %v3459
    %v3464 = vand.u32 2147483647, %v3454
    %vm3465 = vcmp.eq.f32.partialorder %v3464, 8.507059e+37
    %v3466 = vand.u32 %v3454, 2147483648
    %v3467 = vor.u32 1.1754944e-38, %v3466
    %v3468 = vsel %vm3465, %v3467, %v3463
    %v3469 = vmul.f32 1.0, %v3468
    %v3470 = vadd.f32 %v3427, %v2960
    %v3471 = vmul.f32 %v3449, %v3470
    %v3472 = vadd.f32 %v3387, %v3471
    %v3473 = vtanh.pop %v3472
    %v3474 = vsub.f32 1.0, %v3469
    %v3475 = vmul.f32 %v3474, %v3473
    %v3476 = vmul.f32 %v3469, %v3344
    %v3477 = vadd.f32 %v3475, %v3476
    %v3478 = vmul.f32 %v3477, %v84
    %3479 = vadd.xlane.f32.xlu0 %v3478
    %v3480 = vpop.xlane.xlu0 %3479
    %v3481 = vmul.f32 %v3477, %v3480
    %v3482 = vadd.f32 %v3349, %v3481
    %v3483 = vld [vmem:[%s828] sm:$0xf]
    %3484 = vmatpush.bf16.msra.mxu0 %v3064
    %3485 = vmatpush.bf16.msra.mxu0 %v3061
    %3486 = vmatpush.bf16.msra.mxu0 %v3058
    %3487 = vmatpush.bf16.msra.mxu0 %v3055
    %3488 = vmatpush.bf16.msra.mxu0 %v3052
    %3489 = vmatpush.bf16.msra.mxu0 %v3049
    %3490 = vmatpush.bf16.msra.mxu0 %v3046
    %3491 = vmatpush.bf16.msra.mxu0 %v3043
    %3492 = vmatmul.bf16.gmra.mxu0 %v3483
    %v3493 = vpop.f32.mrf.mxu0
    %v3494 = vadd.f32 %v2951, %v3493
    %v3495 = vpop.f32.mrf.mxu0
    %3496 = vdwg.mxu0
    %3497 = vmatpush.bf16.msra.mxu0 %v3065
    %3498 = vmatpush.bf16.msra.mxu0 %v3062
    %3499 = vmatpush.bf16.msra.mxu0 %v3059
    %3500 = vmatpush.bf16.msra.mxu0 %v3056
    %3501 = vmatpush.bf16.msra.mxu0 %v3053
    %3502 = vmatpush.bf16.msra.mxu0 %v3050
    %3503 = vmatpush.bf16.msra.mxu0 %v3047
    %3504 = vmatpush.bf16.msra.mxu0 %v3044
    %3505 = vmatmul.bf16.gmra.mxu0 %v3483
    %v3506 = vpop.f32.mrf.mxu0
    %v3507 = vadd.f32 %v2952, %v3506
    %v3508 = vpop.f32.mrf.mxu0
    %3509 = vdwg.mxu0
    %3510 = vmatpush.bf16.msra.mxu0 %v3066
    %3511 = vmatpush.bf16.msra.mxu0 %v3063
    %3512 = vmatpush.bf16.msra.mxu0 %v3060
    %3513 = vmatpush.bf16.msra.mxu0 %v3057
    %3514 = vmatpush.bf16.msra.mxu0 %v3054
    %3515 = vmatpush.bf16.msra.mxu0 %v3051
    %3516 = vmatpush.bf16.msra.mxu0 %v3048
    %3517 = vmatpush.bf16.msra.mxu0 %v3045
    %3518 = vmatmul.bf16.gmra.mxu0 %v3483
    %v3519 = vpop.f32.mrf.mxu0
    %v3520 = vadd.f32 %v2953, %v3519
    %v3521 = vpop.f32.mrf.mxu0
    %3522 = vdwg.mxu0
    %v3523 = vpack.c.bf16 %v3477, %v3477
    %3524 = vmatpush.bf16.msra.mxu0 %v3231
    %3525 = vmatpush.bf16.msra.mxu0 %v3228
    %3526 = vmatpush.bf16.msra.mxu0 %v3225
    %3527 = vmatpush.bf16.msra.mxu0 %v3222
    %3528 = vmatpush.bf16.msra.mxu0 %v3219
    %3529 = vmatpush.bf16.msra.mxu0 %v3216
    %3530 = vmatpush.bf16.msra.mxu0 %v3213
    %3531 = vmatpush.bf16.msra.mxu0 %v3210
    %3532 = vmatmul.bf16.gmra.mxu0 %v3523
    %v3533 = vpop.f32.mrf.mxu0
    %v3534 = vadd.f32 0.0, %v3533
    %v3535 = vpop.f32.mrf.mxu0
    %3536 = vdwg.mxu0
    %3537 = vmatpush.bf16.msra.mxu0 %v3232
    %3538 = vmatpush.bf16.msra.mxu0 %v3229
    %3539 = vmatpush.bf16.msra.mxu0 %v3226
    %3540 = vmatpush.bf16.msra.mxu0 %v3223
    %3541 = vmatpush.bf16.msra.mxu0 %v3220
    %3542 = vmatpush.bf16.msra.mxu0 %v3217
    %3543 = vmatpush.bf16.msra.mxu0 %v3214
    %3544 = vmatpush.bf16.msra.mxu0 %v3211
    %3545 = vmatmul.bf16.gmra.mxu0 %v3523
    %v3546 = vpop.f32.mrf.mxu0
    %v3547 = vadd.f32 0.0, %v3546
    %v3548 = vpop.f32.mrf.mxu0
    %3549 = vdwg.mxu0
    %3550 = vmatpush.bf16.msra.mxu0 %v3233
    %3551 = vmatpush.bf16.msra.mxu0 %v3230
    %3552 = vmatpush.bf16.msra.mxu0 %v3227
    %3553 = vmatpush.bf16.msra.mxu0 %v3224
    %3554 = vmatpush.bf16.msra.mxu0 %v3221
    %3555 = vmatpush.bf16.msra.mxu0 %v3218
    %3556 = vmatpush.bf16.msra.mxu0 %v3215
    %3557 = vmatpush.bf16.msra.mxu0 %v3212
    %3558 = vmatmul.bf16.gmra.mxu0 %v3523
    %v3559 = vpop.f32.mrf.mxu0
    %v3560 = vadd.f32 0.0, %v3559
    %v3561 = vpop.f32.mrf.mxu0
    %3562 = vdwg.mxu0
    %v3563 = vadd.f32 %v3494, %v3534
    %v3564 = vxor.u32 %v3563, 2147483648
    %v3565 = vmul.f32 %v3564, 1.442695
    %v3566 = vpow.pop %v3565
    %v3567 = vadd.f32 %v3566, 1.0
    %v3568 = vrcp.pop %v3567
    %v3569 = vmul.f32 %v3567, %v3568
    %v3570 = vsub.f32 1.0, %v3569
    %v3571 = vmul.f32 %v3568, %v3570
    %v3572 = vadd.f32 %v3568, %v3571
    %vm3573 = vweird.f32 %v3567
    %vm3574 = vweird.f32 %v3568
    %vm3575 = vmor %vm3573, %vm3574
    %v3576 = vsel %vm3575, %v3568, %v3572
    %v3577 = vand.u32 2147483647, %v3567
    %vm3578 = vcmp.eq.f32.partialorder %v3577, 8.507059e+37
    %v3579 = vand.u32 %v3567, 2147483648
    %v3580 = vor.u32 1.1754944e-38, %v3579
    %v3581 = vsel %vm3578, %v3580, %v3576
    %v3582 = vmul.f32 1.0, %v3581
    %v3583 = vadd.f32 %v3507, %v3547
    %v3584 = vxor.u32 %v3583, 2147483648
    %v3585 = vmul.f32 %v3584, 1.442695
    %v3586 = vpow.pop %v3585
    %v3587 = vadd.f32 %v3586, 1.0
    %v3588 = vrcp.pop %v3587
    %v3589 = vmul.f32 %v3587, %v3588
    %v3590 = vsub.f32 1.0, %v3589
    %v3591 = vmul.f32 %v3588, %v3590
    %v3592 = vadd.f32 %v3588, %v3591
    %vm3593 = vweird.f32 %v3587
    %vm3594 = vweird.f32 %v3588
    %vm3595 = vmor %vm3593, %vm3594
    %v3596 = vsel %vm3595, %v3588, %v3592
    %v3597 = vand.u32 2147483647, %v3587
    %vm3598 = vcmp.eq.f32.partialorder %v3597, 8.507059e+37
    %v3599 = vand.u32 %v3587, 2147483648
    %v3600 = vor.u32 1.1754944e-38, %v3599
    %v3601 = vsel %vm3598, %v3600, %v3596
    %v3602 = vmul.f32 1.0, %v3601
    %v3603 = vadd.f32 %v3560, %v2960
    %v3604 = vmul.f32 %v3582, %v3603
    %v3605 = vadd.f32 %v3520, %v3604
    %v3606 = vtanh.pop %v3605
    %v3607 = vsub.f32 1.0, %v3602
    %v3608 = vmul.f32 %v3607, %v3606
    %v3609 = vmul.f32 %v3602, %v3477
    %v3610 = vadd.f32 %v3608, %v3609
    %v3611 = vmul.f32 %v3610, %v84
    %3612 = vadd.xlane.f32.xlu0 %v3611
    %v3613 = vpop.xlane.xlu0 %3612
    %v3614 = vmul.f32 %v3610, %v3613
    %v3615 = vadd.f32 %v3482, %v3614
    %v3616 = vld [vmem:[%s965] sm:$0xf]
    %3617 = vmatpush.bf16.msra.mxu0 %v3064
    %3618 = vmatpush.bf16.msra.mxu0 %v3061
    %3619 = vmatpush.bf16.msra.mxu0 %v3058
    %3620 = vmatpush.bf16.msra.mxu0 %v3055
    %3621 = vmatpush.bf16.msra.mxu0 %v3052
    %3622 = vmatpush.bf16.msra.mxu0 %v3049
    %3623 = vmatpush.bf16.msra.mxu0 %v3046
    %3624 = vmatpush.bf16.msra.mxu0 %v3043
    %3625 = vmatmul.bf16.gmra.mxu0 %v3616
    %v3626 = vpop.f32.mrf.mxu0
    %v3627 = vadd.f32 %v2951, %v3626
    %v3628 = vpop.f32.mrf.mxu0
    %3629 = vdwg.mxu0
    %3630 = vmatpush.bf16.msra.mxu0 %v3065
    %3631 = vmatpush.bf16.msra.mxu0 %v3062
    %3632 = vmatpush.bf16.msra.mxu0 %v3059
    %3633 = vmatpush.bf16.msra.mxu0 %v3056
    %3634 = vmatpush.bf16.msra.mxu0 %v3053
    %3635 = vmatpush.bf16.msra.mxu0 %v3050
    %3636 = vmatpush.bf16.msra.mxu0 %v3047
    %3637 = vmatpush.bf16.msra.mxu0 %v3044
    %3638 = vmatmul.bf16.gmra.mxu0 %v3616
    %v3639 = vpop.f32.mrf.mxu0
    %v3640 = vadd.f32 %v2952, %v3639
    %v3641 = vpop.f32.mrf.mxu0
    %3642 = vdwg.mxu0
    %3643 = vmatpush.bf16.msra.mxu0 %v3066
    %3644 = vmatpush.bf16.msra.mxu0 %v3063
    %3645 = vmatpush.bf16.msra.mxu0 %v3060
    %3646 = vmatpush.bf16.msra.mxu0 %v3057
    %3647 = vmatpush.bf16.msra.mxu0 %v3054
    %3648 = vmatpush.bf16.msra.mxu0 %v3051
    %3649 = vmatpush.bf16.msra.mxu0 %v3048
    %3650 = vmatpush.bf16.msra.mxu0 %v3045
    %3651 = vmatmul.bf16.gmra.mxu0 %v3616
    %v3652 = vpop.f32.mrf.mxu0
    %v3653 = vadd.f32 %v2953, %v3652
    %v3654 = vpop.f32.mrf.mxu0
    %3655 = vdwg.mxu0
    %v3656 = vpack.c.bf16 %v3610, %v3610
    %3657 = vmatpush.bf16.msra.mxu0 %v3231
    %3658 = vmatpush.bf16.msra.mxu0 %v3228
    %3659 = vmatpush.bf16.msra.mxu0 %v3225
    %3660 = vmatpush.bf16.msra.mxu0 %v3222
    %3661 = vmatpush.bf16.msra.mxu0 %v3219
    %3662 = vmatpush.bf16.msra.mxu0 %v3216
    %3663 = vmatpush.bf16.msra.mxu0 %v3213
    %3664 = vmatpush.bf16.msra.mxu0 %v3210
    %3665 = vmatmul.bf16.gmra.mxu0 %v3656
    %v3666 = vpop.f32.mrf.mxu0
    %v3667 = vadd.f32 0.0, %v3666
    %v3668 = vpop.f32.mrf.mxu0
    %3669 = vdwg.mxu0
    %3670 = vmatpush.bf16.msra.mxu0 %v3232
    %3671 = vmatpush.bf16.msra.mxu0 %v3229
    %3672 = vmatpush.bf16.msra.mxu0 %v3226
    %3673 = vmatpush.bf16.msra.mxu0 %v3223
    %3674 = vmatpush.bf16.msra.mxu0 %v3220
    %3675 = vmatpush.bf16.msra.mxu0 %v3217
    %3676 = vmatpush.bf16.msra.mxu0 %v3214
    %3677 = vmatpush.bf16.msra.mxu0 %v3211
    %3678 = vmatmul.bf16.gmra.mxu0 %v3656
    %v3679 = vpop.f32.mrf.mxu0
    %v3680 = vadd.f32 0.0, %v3679
    %v3681 = vpop.f32.mrf.mxu0
    %3682 = vdwg.mxu0
    %3683 = vmatpush.bf16.msra.mxu0 %v3233
    %3684 = vmatpush.bf16.msra.mxu0 %v3230
    %3685 = vmatpush.bf16.msra.mxu0 %v3227
    %3686 = vmatpush.bf16.msra.mxu0 %v3224
    %3687 = vmatpush.bf16.msra.mxu0 %v3221
    %3688 = vmatpush.bf16.msra.mxu0 %v3218
    %3689 = vmatpush.bf16.msra.mxu0 %v3215
    %3690 = vmatpush.bf16.msra.mxu0 %v3212
    %3691 = vmatmul.bf16.gmra.mxu0 %v3656
    %v3692 = vpop.f32.mrf.mxu0
    %v3693 = vadd.f32 0.0, %v3692
    %v3694 = vpop.f32.mrf.mxu0
    %3695 = vdwg.mxu0
    %v3696 = vadd.f32 %v3627, %v3667
    %v3697 = vxor.u32 %v3696, 2147483648
    %v3698 = vmul.f32 %v3697, 1.442695
    %v3699 = vpow.pop %v3698
    %v3700 = vadd.f32 %v3699, 1.0
    %v3701 = vrcp.pop %v3700
    %v3702 = vmul.f32 %v3700, %v3701
    %v3703 = vsub.f32 1.0, %v3702
    %v3704 = vmul.f32 %v3701, %v3703
    %v3705 = vadd.f32 %v3701, %v3704
    %vm3706 = vweird.f32 %v3700
    %vm3707 = vweird.f32 %v3701
    %vm3708 = vmor %vm3706, %vm3707
    %v3709 = vsel %vm3708, %v3701, %v3705
    %v3710 = vand.u32 2147483647, %v3700
    %vm3711 = vcmp.eq.f32.partialorder %v3710, 8.507059e+37
    %v3712 = vand.u32 %v3700, 2147483648
    %v3713 = vor.u32 1.1754944e-38, %v3712
    %v3714 = vsel %vm3711, %v3713, %v3709
    %v3715 = vmul.f32 1.0, %v3714
    %v3716 = vadd.f32 %v3640, %v3680
    %v3717 = vxor.u32 %v3716, 2147483648
    %v3718 = vmul.f32 %v3717, 1.442695
    %v3719 = vpow.pop %v3718
    %v3720 = vadd.f32 %v3719, 1.0
    %v3721 = vrcp.pop %v3720
    %v3722 = vmul.f32 %v3720, %v3721
    %v3723 = vsub.f32 1.0, %v3722
    %v3724 = vmul.f32 %v3721, %v3723
    %v3725 = vadd.f32 %v3721, %v3724
    %vm3726 = vweird.f32 %v3720
    %vm3727 = vweird.f32 %v3721
    %vm3728 = vmor %vm3726, %vm3727
    %v3729 = vsel %vm3728, %v3721, %v3725
    %v3730 = vand.u32 2147483647, %v3720
    %vm3731 = vcmp.eq.f32.partialorder %v3730, 8.507059e+37
    %v3732 = vand.u32 %v3720, 2147483648
    %v3733 = vor.u32 1.1754944e-38, %v3732
    %v3734 = vsel %vm3731, %v3733, %v3729
    %v3735 = vmul.f32 1.0, %v3734
    %v3736 = vadd.f32 %v3693, %v2960
    %v3737 = vmul.f32 %v3715, %v3736
    %v3738 = vadd.f32 %v3653, %v3737
    %v3739 = vtanh.pop %v3738
    %v3740 = vsub.f32 1.0, %v3735
    %v3741 = vmul.f32 %v3740, %v3739
    %v3742 = vmul.f32 %v3735, %v3610
    %v3743 = vadd.f32 %v3741, %v3742
    %v3744 = vmul.f32 %v3743, %v84
    %3745 = vadd.xlane.f32.xlu0 %v3744
    %v3746 = vpop.xlane.xlu0 %3745
    %v3747 = vmul.f32 %v3743, %v3746
    %v3748 = vadd.f32 %v3615, %v3747
    %v3749 = vld [vmem:[%s1102] sm:$0xf]
    %3750 = vmatpush.bf16.msra.mxu0 %v3064
    %3751 = vmatpush.bf16.msra.mxu0 %v3061
    %3752 = vmatpush.bf16.msra.mxu0 %v3058
    %3753 = vmatpush.bf16.msra.mxu0 %v3055
    %3754 = vmatpush.bf16.msra.mxu0 %v3052
    %3755 = vmatpush.bf16.msra.mxu0 %v3049
    %3756 = vmatpush.bf16.msra.mxu0 %v3046
    %3757 = vmatpush.bf16.msra.mxu0 %v3043
    %3758 = vmatmul.bf16.gmra.mxu0 %v3749
    %v3759 = vpop.f32.mrf.mxu0
    %v3760 = vadd.f32 %v2951, %v3759
    %v3761 = vpop.f32.mrf.mxu0
    %3762 = vdwg.mxu0
    %3763 = vmatpush.bf16.msra.mxu0 %v3065
    %3764 = vmatpush.bf16.msra.mxu0 %v3062
    %3765 = vmatpush.bf16.msra.mxu0 %v3059
    %3766 = vmatpush.bf16.msra.mxu0 %v3056
    %3767 = vmatpush.bf16.msra.mxu0 %v3053
    %3768 = vmatpush.bf16.msra.mxu0 %v3050
    %3769 = vmatpush.bf16.msra.mxu0 %v3047
    %3770 = vmatpush.bf16.msra.mxu0 %v3044
    %3771 = vmatmul.bf16.gmra.mxu0 %v3749
    %v3772 = vpop.f32.mrf.mxu0
    %v3773 = vadd.f32 %v2952, %v3772
    %v3774 = vpop.f32.mrf.mxu0
    %3775 = vdwg.mxu0
    %3776 = vmatpush.bf16.msra.mxu0 %v3066
    %3777 = vmatpush.bf16.msra.mxu0 %v3063
    %3778 = vmatpush.bf16.msra.mxu0 %v3060
    %3779 = vmatpush.bf16.msra.mxu0 %v3057
    %3780 = vmatpush.bf16.msra.mxu0 %v3054
    %3781 = vmatpush.bf16.msra.mxu0 %v3051
    %3782 = vmatpush.bf16.msra.mxu0 %v3048
    %3783 = vmatpush.bf16.msra.mxu0 %v3045
    %3784 = vmatmul.bf16.gmra.mxu0 %v3749
    %v3785 = vpop.f32.mrf.mxu0
    %v3786 = vadd.f32 %v2953, %v3785
    %v3787 = vpop.f32.mrf.mxu0
    %3788 = vdwg.mxu0
    %v3789 = vpack.c.bf16 %v3743, %v3743
    %3790 = vmatpush.bf16.msra.mxu0 %v3231
    %3791 = vmatpush.bf16.msra.mxu0 %v3228
    %3792 = vmatpush.bf16.msra.mxu0 %v3225
    %3793 = vmatpush.bf16.msra.mxu0 %v3222
    %3794 = vmatpush.bf16.msra.mxu0 %v3219
    %3795 = vmatpush.bf16.msra.mxu0 %v3216
    %3796 = vmatpush.bf16.msra.mxu0 %v3213
    %3797 = vmatpush.bf16.msra.mxu0 %v3210
    %3798 = vmatmul.bf16.gmra.mxu0 %v3789
    %v3799 = vpop.f32.mrf.mxu0
    %v3800 = vadd.f32 0.0, %v3799
    %v3801 = vpop.f32.mrf.mxu0
    %3802 = vdwg.mxu0
    %3803 = vmatpush.bf16.msra.mxu0 %v3232
    %3804 = vmatpush.bf16.msra.mxu0 %v3229
    %3805 = vmatpush.bf16.msra.mxu0 %v3226
    %3806 = vmatpush.bf16.msra.mxu0 %v3223
    %3807 = vmatpush.bf16.msra.mxu0 %v3220
    %3808 = vmatpush.bf16.msra.mxu0 %v3217
    %3809 = vmatpush.bf16.msra.mxu0 %v3214
    %3810 = vmatpush.bf16.msra.mxu0 %v3211
    %3811 = vmatmul.bf16.gmra.mxu0 %v3789
    %v3812 = vpop.f32.mrf.mxu0
    %v3813 = vadd.f32 0.0, %v3812
    %v3814 = vpop.f32.mrf.mxu0
    %3815 = vdwg.mxu0
    %3816 = vmatpush.bf16.msra.mxu0 %v3233
    %3817 = vmatpush.bf16.msra.mxu0 %v3230
    %3818 = vmatpush.bf16.msra.mxu0 %v3227
    %3819 = vmatpush.bf16.msra.mxu0 %v3224
    %3820 = vmatpush.bf16.msra.mxu0 %v3221
    %3821 = vmatpush.bf16.msra.mxu0 %v3218
    %3822 = vmatpush.bf16.msra.mxu0 %v3215
    %3823 = vmatpush.bf16.msra.mxu0 %v3212
    %3824 = vmatmul.bf16.gmra.mxu0 %v3789
    %v3825 = vpop.f32.mrf.mxu0
    %v3826 = vadd.f32 0.0, %v3825
    %v3827 = vpop.f32.mrf.mxu0
    %3828 = vdwg.mxu0
    %v3829 = vadd.f32 %v3760, %v3800
    %v3830 = vxor.u32 %v3829, 2147483648
    %v3831 = vmul.f32 %v3830, 1.442695
    %v3832 = vpow.pop %v3831
    %v3833 = vadd.f32 %v3832, 1.0
    %v3834 = vrcp.pop %v3833
    %v3835 = vmul.f32 %v3833, %v3834
    %v3836 = vsub.f32 1.0, %v3835
    %v3837 = vmul.f32 %v3834, %v3836
    %v3838 = vadd.f32 %v3834, %v3837
    %vm3839 = vweird.f32 %v3833
    %vm3840 = vweird.f32 %v3834
    %vm3841 = vmor %vm3839, %vm3840
    %v3842 = vsel %vm3841, %v3834, %v3838
    %v3843 = vand.u32 2147483647, %v3833
    %vm3844 = vcmp.eq.f32.partialorder %v3843, 8.507059e+37
    %v3845 = vand.u32 %v3833, 2147483648
    %v3846 = vor.u32 1.1754944e-38, %v3845
    %v3847 = vsel %vm3844, %v3846, %v3842
    %v3848 = vmul.f32 1.0, %v3847
    %v3849 = vadd.f32 %v3773, %v3813
    %v3850 = vxor.u32 %v3849, 2147483648
    %v3851 = vmul.f32 %v3850, 1.442695
    %v3852 = vpow.pop %v3851
    %v3853 = vadd.f32 %v3852, 1.0
    %v3854 = vrcp.pop %v3853
    %v3855 = vmul.f32 %v3853, %v3854
    %v3856 = vsub.f32 1.0, %v3855
    %v3857 = vmul.f32 %v3854, %v3856
    %v3858 = vadd.f32 %v3854, %v3857
    %vm3859 = vweird.f32 %v3853
    %vm3860 = vweird.f32 %v3854
    %vm3861 = vmor %vm3859, %vm3860
    %v3862 = vsel %vm3861, %v3854, %v3858
    %v3863 = vand.u32 2147483647, %v3853
    %vm3864 = vcmp.eq.f32.partialorder %v3863, 8.507059e+37
    %v3865 = vand.u32 %v3853, 2147483648
    %v3866 = vor.u32 1.1754944e-38, %v3865
    %v3867 = vsel %vm3864, %v3866, %v3862
    %v3868 = vmul.f32 1.0, %v3867
    %v3869 = vadd.f32 %v3826, %v2960
    %v3870 = vmul.f32 %v3848, %v3869
    %v3871 = vadd.f32 %v3786, %v3870
    %v3872 = vtanh.pop %v3871
    %v3873 = vsub.f32 1.0, %v3868
    %v3874 = vmul.f32 %v3873, %v3872
    %v3875 = vmul.f32 %v3868, %v3743
    %v3876 = vadd.f32 %v3874, %v3875
    %v3877 = vmul.f32 %v3876, %v84
    %3878 = vadd.xlane.f32.xlu0 %v3877
    %v3879 = vpop.xlane.xlu0 %3878
    %v3880 = vmul.f32 %v3876, %v3879
    %v3881 = vadd.f32 %v3748, %v3880
    %v3882 = vld [vmem:[%s1239] sm:$0xf]
    %3883 = vmatpush.bf16.msra.mxu0 %v3064
    %3884 = vmatpush.bf16.msra.mxu0 %v3061
    %3885 = vmatpush.bf16.msra.mxu0 %v3058
    %3886 = vmatpush.bf16.msra.mxu0 %v3055
    %3887 = vmatpush.bf16.msra.mxu0 %v3052
    %3888 = vmatpush.bf16.msra.mxu0 %v3049
    %3889 = vmatpush.bf16.msra.mxu0 %v3046
    %3890 = vmatpush.bf16.msra.mxu0 %v3043
    %3891 = vmatmul.bf16.gmra.mxu0 %v3882
    %v3892 = vpop.f32.mrf.mxu0
    %v3893 = vadd.f32 %v2951, %v3892
    %v3894 = vpop.f32.mrf.mxu0
    %3895 = vdwg.mxu0
    %3896 = vmatpush.bf16.msra.mxu0 %v3065
    %3897 = vmatpush.bf16.msra.mxu0 %v3062
    %3898 = vmatpush.bf16.msra.mxu0 %v3059
    %3899 = vmatpush.bf16.msra.mxu0 %v3056
    %3900 = vmatpush.bf16.msra.mxu0 %v3053
    %3901 = vmatpush.bf16.msra.mxu0 %v3050
    %3902 = vmatpush.bf16.msra.mxu0 %v3047
    %3903 = vmatpush.bf16.msra.mxu0 %v3044
    %3904 = vmatmul.bf16.gmra.mxu0 %v3882
    %v3905 = vpop.f32.mrf.mxu0
    %v3906 = vadd.f32 %v2952, %v3905
    %v3907 = vpop.f32.mrf.mxu0
    %3908 = vdwg.mxu0
    %3909 = vmatpush.bf16.msra.mxu0 %v3066
    %3910 = vmatpush.bf16.msra.mxu0 %v3063
    %3911 = vmatpush.bf16.msra.mxu0 %v3060
    %3912 = vmatpush.bf16.msra.mxu0 %v3057
    %3913 = vmatpush.bf16.msra.mxu0 %v3054
    %3914 = vmatpush.bf16.msra.mxu0 %v3051
    %3915 = vmatpush.bf16.msra.mxu0 %v3048
    %3916 = vmatpush.bf16.msra.mxu0 %v3045
    %3917 = vmatmul.bf16.gmra.mxu0 %v3882
    %v3918 = vpop.f32.mrf.mxu0
    %v3919 = vadd.f32 %v2953, %v3918
    %v3920 = vpop.f32.mrf.mxu0
    %3921 = vdwg.mxu0
    %v3922 = vpack.c.bf16 %v3876, %v3876
    %3923 = vmatpush.bf16.msra.mxu0 %v3231
    %3924 = vmatpush.bf16.msra.mxu0 %v3228
    %3925 = vmatpush.bf16.msra.mxu0 %v3225
    %3926 = vmatpush.bf16.msra.mxu0 %v3222
    %3927 = vmatpush.bf16.msra.mxu0 %v3219
    %3928 = vmatpush.bf16.msra.mxu0 %v3216
    %3929 = vmatpush.bf16.msra.mxu0 %v3213
    %3930 = vmatpush.bf16.msra.mxu0 %v3210
    %3931 = vmatmul.bf16.gmra.mxu0 %v3922
    %v3932 = vpop.f32.mrf.mxu0
    %v3933 = vadd.f32 0.0, %v3932
    %v3934 = vpop.f32.mrf.mxu0
    %3935 = vdwg.mxu0
    %3936 = vmatpush.bf16.msra.mxu0 %v3232
    %3937 = vmatpush.bf16.msra.mxu0 %v3229
    %3938 = vmatpush.bf16.msra.mxu0 %v3226
    %3939 = vmatpush.bf16.msra.mxu0 %v3223
    %3940 = vmatpush.bf16.msra.mxu0 %v3220
    %3941 = vmatpush.bf16.msra.mxu0 %v3217
    %3942 = vmatpush.bf16.msra.mxu0 %v3214
    %3943 = vmatpush.bf16.msra.mxu0 %v3211
    %3944 = vmatmul.bf16.gmra.mxu0 %v3922
    %v3945 = vpop.f32.mrf.mxu0
    %v3946 = vadd.f32 0.0, %v3945
    %v3947 = vpop.f32.mrf.mxu0
    %3948 = vdwg.mxu0
    %3949 = vmatpush.bf16.msra.mxu0 %v3233
    %3950 = vmatpush.bf16.msra.mxu0 %v3230
    %3951 = vmatpush.bf16.msra.mxu0 %v3227
    %3952 = vmatpush.bf16.msra.mxu0 %v3224
    %3953 = vmatpush.bf16.msra.mxu0 %v3221
    %3954 = vmatpush.bf16.msra.mxu0 %v3218
    %3955 = vmatpush.bf16.msra.mxu0 %v3215
    %3956 = vmatpush.bf16.msra.mxu0 %v3212
    %3957 = vmatmul.bf16.gmra.mxu0 %v3922
    %v3958 = vpop.f32.mrf.mxu0
    %v3959 = vadd.f32 0.0, %v3958
    %v3960 = vpop.f32.mrf.mxu0
    %3961 = vdwg.mxu0
    %v3962 = vadd.f32 %v3893, %v3933
    %v3963 = vxor.u32 %v3962, 2147483648
    %v3964 = vmul.f32 %v3963, 1.442695
    %v3965 = vpow.pop %v3964
    %v3966 = vadd.f32 %v3965, 1.0
    %v3967 = vrcp.pop %v3966
    %v3968 = vmul.f32 %v3966, %v3967
    %v3969 = vsub.f32 1.0, %v3968
    %v3970 = vmul.f32 %v3967, %v3969
    %v3971 = vadd.f32 %v3967, %v3970
    %vm3972 = vweird.f32 %v3966
    %vm3973 = vweird.f32 %v3967
    %vm3974 = vmor %vm3972, %vm3973
    %v3975 = vsel %vm3974, %v3967, %v3971
    %v3976 = vand.u32 2147483647, %v3966
    %vm3977 = vcmp.eq.f32.partialorder %v3976, 8.507059e+37
    %v3978 = vand.u32 %v3966, 2147483648
    %v3979 = vor.u32 1.1754944e-38, %v3978
    %v3980 = vsel %vm3977, %v3979, %v3975
    %v3981 = vmul.f32 1.0, %v3980
    %v3982 = vadd.f32 %v3906, %v3946
    %v3983 = vxor.u32 %v3982, 2147483648
    %v3984 = vmul.f32 %v3983, 1.442695
    %v3985 = vpow.pop %v3984
    %v3986 = vadd.f32 %v3985, 1.0
    %v3987 = vrcp.pop %v3986
    %v3988 = vmul.f32 %v3986, %v3987
    %v3989 = vsub.f32 1.0, %v3988
    %v3990 = vmul.f32 %v3987, %v3989
    %v3991 = vadd.f32 %v3987, %v3990
    %vm3992 = vweird.f32 %v3986
    %vm3993 = vweird.f32 %v3987
    %vm3994 = vmor %vm3992, %vm3993
    %v3995 = vsel %vm3994, %v3987, %v3991
    %v3996 = vand.u32 2147483647, %v3986
    %vm3997 = vcmp.eq.f32.partialorder %v3996, 8.507059e+37
    %v3998 = vand.u32 %v3986, 2147483648
    %v3999 = vor.u32 1.1754944e-38, %v3998
    %v4000 = vsel %vm3997, %v3999, %v3995
    %v4001 = vmul.f32 1.0, %v4000
    %v4002 = vadd.f32 %v3959, %v2960
    %v4003 = vmul.f32 %v3981, %v4002
    %v4004 = vadd.f32 %v3919, %v4003
    %v4005 = vtanh.pop %v4004
    %v4006 = vsub.f32 1.0, %v4001
    %v4007 = vmul.f32 %v4006, %v4005
    %v4008 = vmul.f32 %v4001, %v3876
    %v4009 = vadd.f32 %v4007, %v4008
    %v4010 = vmul.f32 %v4009, %v84
    %4011 = vadd.xlane.f32.xlu0 %v4010
    %v4012 = vpop.xlane.xlu0 %4011
    %v4013 = vmul.f32 %v4009, %v4012
    %v4014 = vadd.f32 %v3881, %v4013
    %v4015 = vld [vmem:[%s1376] sm:$0xf]
    %4016 = vmatpush.bf16.msra.mxu0 %v3064
    %4017 = vmatpush.bf16.msra.mxu0 %v3061
    %4018 = vmatpush.bf16.msra.mxu0 %v3058
    %4019 = vmatpush.bf16.msra.mxu0 %v3055
    %4020 = vmatpush.bf16.msra.mxu0 %v3052
    %4021 = vmatpush.bf16.msra.mxu0 %v3049
    %4022 = vmatpush.bf16.msra.mxu0 %v3046
    %4023 = vmatpush.bf16.msra.mxu0 %v3043
    %4024 = vmatmul.bf16.gmra.mxu0 %v4015
    %v4025 = vpop.f32.mrf.mxu0
    %v4026 = vadd.f32 %v2951, %v4025
    %v4027 = vpop.f32.mrf.mxu0
    %4028 = vdwg.mxu0
    %4029 = vmatpush.bf16.msra.mxu0 %v3065
    %4030 = vmatpush.bf16.msra.mxu0 %v3062
    %4031 = vmatpush.bf16.msra.mxu0 %v3059
    %4032 = vmatpush.bf16.msra.mxu0 %v3056
    %4033 = vmatpush.bf16.msra.mxu0 %v3053
    %4034 = vmatpush.bf16.msra.mxu0 %v3050
    %4035 = vmatpush.bf16.msra.mxu0 %v3047
    %4036 = vmatpush.bf16.msra.mxu0 %v3044
    %4037 = vmatmul.bf16.gmra.mxu0 %v4015
    %v4038 = vpop.f32.mrf.mxu0
    %v4039 = vadd.f32 %v2952, %v4038
    %v4040 = vpop.f32.mrf.mxu0
    %4041 = vdwg.mxu0
    %4042 = vmatpush.bf16.msra.mxu0 %v3066
    %4043 = vmatpush.bf16.msra.mxu0 %v3063
    %4044 = vmatpush.bf16.msra.mxu0 %v3060
    %4045 = vmatpush.bf16.msra.mxu0 %v3057
    %4046 = vmatpush.bf16.msra.mxu0 %v3054
    %4047 = vmatpush.bf16.msra.mxu0 %v3051
    %4048 = vmatpush.bf16.msra.mxu0 %v3048
    %4049 = vmatpush.bf16.msra.mxu0 %v3045
    %4050 = vmatmul.bf16.gmra.mxu0 %v4015
    %v4051 = vpop.f32.mrf.mxu0
    %v4052 = vadd.f32 %v2953, %v4051
    %v4053 = vpop.f32.mrf.mxu0
    %4054 = vdwg.mxu0
    %v4055 = vpack.c.bf16 %v4009, %v4009
    %4056 = vmatpush.bf16.msra.mxu0 %v3231
    %4057 = vmatpush.bf16.msra.mxu0 %v3228
    %4058 = vmatpush.bf16.msra.mxu0 %v3225
    %4059 = vmatpush.bf16.msra.mxu0 %v3222
    %4060 = vmatpush.bf16.msra.mxu0 %v3219
    %4061 = vmatpush.bf16.msra.mxu0 %v3216
    %4062 = vmatpush.bf16.msra.mxu0 %v3213
    %4063 = vmatpush.bf16.msra.mxu0 %v3210
    %4064 = vmatmul.bf16.gmra.mxu0 %v4055
    %v4065 = vpop.f32.mrf.mxu0
    %v4066 = vadd.f32 0.0, %v4065
    %v4067 = vpop.f32.mrf.mxu0
    %4068 = vdwg.mxu0
    %4069 = vmatpush.bf16.msra.mxu0 %v3232
    %4070 = vmatpush.bf16.msra.mxu0 %v3229
    %4071 = vmatpush.bf16.msra.mxu0 %v3226
    %4072 = vmatpush.bf16.msra.mxu0 %v3223
    %4073 = vmatpush.bf16.msra.mxu0 %v3220
    %4074 = vmatpush.bf16.msra.mxu0 %v3217
    %4075 = vmatpush.bf16.msra.mxu0 %v3214
    %4076 = vmatpush.bf16.msra.mxu0 %v3211
    %4077 = vmatmul.bf16.gmra.mxu0 %v4055
    %v4078 = vpop.f32.mrf.mxu0
    %v4079 = vadd.f32 0.0, %v4078
    %v4080 = vpop.f32.mrf.mxu0
    %4081 = vdwg.mxu0
    %4082 = vmatpush.bf16.msra.mxu0 %v3233
    %4083 = vmatpush.bf16.msra.mxu0 %v3230
    %4084 = vmatpush.bf16.msra.mxu0 %v3227
    %4085 = vmatpush.bf16.msra.mxu0 %v3224
    %4086 = vmatpush.bf16.msra.mxu0 %v3221
    %4087 = vmatpush.bf16.msra.mxu0 %v3218
    %4088 = vmatpush.bf16.msra.mxu0 %v3215
    %4089 = vmatpush.bf16.msra.mxu0 %v3212
    %4090 = vmatmul.bf16.gmra.mxu0 %v4055
    %v4091 = vpop.f32.mrf.mxu0
    %v4092 = vadd.f32 0.0, %v4091
    %v4093 = vpop.f32.mrf.mxu0
    %4094 = vdwg.mxu0
    %v4095 = vadd.f32 %v4026, %v4066
    %v4096 = vxor.u32 %v4095, 2147483648
    %v4097 = vmul.f32 %v4096, 1.442695
    %v4098 = vpow.pop %v4097
    %v4099 = vadd.f32 %v4098, 1.0
    %v4100 = vrcp.pop %v4099
    %v4101 = vmul.f32 %v4099, %v4100
    %v4102 = vsub.f32 1.0, %v4101
    %v4103 = vmul.f32 %v4100, %v4102
    %v4104 = vadd.f32 %v4100, %v4103
    %vm4105 = vweird.f32 %v4099
    %vm4106 = vweird.f32 %v4100
    %vm4107 = vmor %vm4105, %vm4106
    %v4108 = vsel %vm4107, %v4100, %v4104
    %v4109 = vand.u32 2147483647, %v4099
    %vm4110 = vcmp.eq.f32.partialorder %v4109, 8.507059e+37
    %v4111 = vand.u32 %v4099, 2147483648
    %v4112 = vor.u32 1.1754944e-38, %v4111
    %v4113 = vsel %vm4110, %v4112, %v4108
    %v4114 = vmul.f32 1.0, %v4113
    %v4115 = vadd.f32 %v4039, %v4079
    %v4116 = vxor.u32 %v4115, 2147483648
    %v4117 = vmul.f32 %v4116, 1.442695
    %v4118 = vpow.pop %v4117
    %v4119 = vadd.f32 %v4118, 1.0
    %v4120 = vrcp.pop %v4119
    %v4121 = vmul.f32 %v4119, %v4120
    %v4122 = vsub.f32 1.0, %v4121
    %v4123 = vmul.f32 %v4120, %v4122
    %v4124 = vadd.f32 %v4120, %v4123
    %vm4125 = vweird.f32 %v4119
    %vm4126 = vweird.f32 %v4120
    %vm4127 = vmor %vm4125, %vm4126
    %v4128 = vsel %vm4127, %v4120, %v4124
    %v4129 = vand.u32 2147483647, %v4119
    %vm4130 = vcmp.eq.f32.partialorder %v4129, 8.507059e+37
    %v4131 = vand.u32 %v4119, 2147483648
    %v4132 = vor.u32 1.1754944e-38, %v4131
    %v4133 = vsel %vm4130, %v4132, %v4128
    %v4134 = vmul.f32 1.0, %v4133
    %v4135 = vadd.f32 %v4092, %v2960
    %v4136 = vmul.f32 %v4114, %v4135
    %v4137 = vadd.f32 %v4052, %v4136
    %v4138 = vtanh.pop %v4137
    %v4139 = vsub.f32 1.0, %v4134
    %v4140 = vmul.f32 %v4139, %v4138
    %v4141 = vmul.f32 %v4134, %v4009
    %v4142 = vadd.f32 %v4140, %v4141
    %v4143 = vmul.f32 %v4142, %v84
    %4144 = vadd.xlane.f32.xlu0 %v4143
    %v4145 = vpop.xlane.xlu0 %4144
    %v4146 = vmul.f32 %v4142, %v4145
    %v4147 = vadd.f32 %v4014, %v4146
    %v4148 = vld [vmem:[%s1513] sm:$0xf]
    %4149 = vmatpush.bf16.msra.mxu0 %v3064
    %4150 = vmatpush.bf16.msra.mxu0 %v3061
    %4151 = vmatpush.bf16.msra.mxu0 %v3058
    %4152 = vmatpush.bf16.msra.mxu0 %v3055
    %4153 = vmatpush.bf16.msra.mxu0 %v3052
    %4154 = vmatpush.bf16.msra.mxu0 %v3049
    %4155 = vmatpush.bf16.msra.mxu0 %v3046
    %4156 = vmatpush.bf16.msra.mxu0 %v3043
    %4157 = vmatmul.bf16.gmra.mxu0 %v4148
    %v4158 = vpop.f32.mrf.mxu0
    %v4159 = vadd.f32 %v2951, %v4158
    %v4160 = vpop.f32.mrf.mxu0
    %4161 = vdwg.mxu0
    %4162 = vmatpush.bf16.msra.mxu0 %v3065
    %4163 = vmatpush.bf16.msra.mxu0 %v3062
    %4164 = vmatpush.bf16.msra.mxu0 %v3059
    %4165 = vmatpush.bf16.msra.mxu0 %v3056
    %4166 = vmatpush.bf16.msra.mxu0 %v3053
    %4167 = vmatpush.bf16.msra.mxu0 %v3050
    %4168 = vmatpush.bf16.msra.mxu0 %v3047
    %4169 = vmatpush.bf16.msra.mxu0 %v3044
    %4170 = vmatmul.bf16.gmra.mxu0 %v4148
    %v4171 = vpop.f32.mrf.mxu0
    %v4172 = vadd.f32 %v2952, %v4171
    %v4173 = vpop.f32.mrf.mxu0
    %4174 = vdwg.mxu0
    %4175 = vmatpush.bf16.msra.mxu0 %v3066
    %4176 = vmatpush.bf16.msra.mxu0 %v3063
    %4177 = vmatpush.bf16.msra.mxu0 %v3060
    %4178 = vmatpush.bf16.msra.mxu0 %v3057
    %4179 = vmatpush.bf16.msra.mxu0 %v3054
    %4180 = vmatpush.bf16.msra.mxu0 %v3051
    %4181 = vmatpush.bf16.msra.mxu0 %v3048
    %4182 = vmatpush.bf16.msra.mxu0 %v3045
    %4183 = vmatmul.bf16.gmra.mxu0 %v4148
    %v4184 = vpop.f32.mrf.mxu0
    %v4185 = vadd.f32 %v2953, %v4184
    %v4186 = vpop.f32.mrf.mxu0
    %4187 = vdwg.mxu0
    %v4188 = vpack.c.bf16 %v4142, %v4142
    %4189 = vmatpush.bf16.msra.mxu0 %v3231
    %4190 = vmatpush.bf16.msra.mxu0 %v3228
    %4191 = vmatpush.bf16.msra.mxu0 %v3225
    %4192 = vmatpush.bf16.msra.mxu0 %v3222
    %4193 = vmatpush.bf16.msra.mxu0 %v3219
    %4194 = vmatpush.bf16.msra.mxu0 %v3216
    %4195 = vmatpush.bf16.msra.mxu0 %v3213
    %4196 = vmatpush.bf16.msra.mxu0 %v3210
    %4197 = vmatmul.bf16.gmra.mxu0 %v4188
    %v4198 = vpop.f32.mrf.mxu0
    %v4199 = vadd.f32 0.0, %v4198
    %v4200 = vpop.f32.mrf.mxu0
    %4201 = vdwg.mxu0
    %4202 = vmatpush.bf16.msra.mxu0 %v3232
    %4203 = vmatpush.bf16.msra.mxu0 %v3229
    %4204 = vmatpush.bf16.msra.mxu0 %v3226
    %4205 = vmatpush.bf16.msra.mxu0 %v3223
    %4206 = vmatpush.bf16.msra.mxu0 %v3220
    %4207 = vmatpush.bf16.msra.mxu0 %v3217
    %4208 = vmatpush.bf16.msra.mxu0 %v3214
    %4209 = vmatpush.bf16.msra.mxu0 %v3211
    %4210 = vmatmul.bf16.gmra.mxu0 %v4188
    %v4211 = vpop.f32.mrf.mxu0
    %v4212 = vadd.f32 0.0, %v4211
    %v4213 = vpop.f32.mrf.mxu0
    %4214 = vdwg.mxu0
    %4215 = vmatpush.bf16.msra.mxu0 %v3233
    %4216 = vmatpush.bf16.msra.mxu0 %v3230
    %4217 = vmatpush.bf16.msra.mxu0 %v3227
    %4218 = vmatpush.bf16.msra.mxu0 %v3224
    %4219 = vmatpush.bf16.msra.mxu0 %v3221
    %4220 = vmatpush.bf16.msra.mxu0 %v3218
    %4221 = vmatpush.bf16.msra.mxu0 %v3215
    %4222 = vmatpush.bf16.msra.mxu0 %v3212
    %4223 = vmatmul.bf16.gmra.mxu0 %v4188
    %v4224 = vpop.f32.mrf.mxu0
    %v4225 = vadd.f32 0.0, %v4224
    %v4226 = vpop.f32.mrf.mxu0
    %4227 = vdwg.mxu0
    %v4228 = vadd.f32 %v4159, %v4199
    %v4229 = vxor.u32 %v4228, 2147483648
    %v4230 = vmul.f32 %v4229, 1.442695
    %v4231 = vpow.pop %v4230
    %v4232 = vadd.f32 %v4231, 1.0
    %v4233 = vrcp.pop %v4232
    %v4234 = vmul.f32 %v4232, %v4233
    %v4235 = vsub.f32 1.0, %v4234
    %v4236 = vmul.f32 %v4233, %v4235
    %v4237 = vadd.f32 %v4233, %v4236
    %vm4238 = vweird.f32 %v4232
    %vm4239 = vweird.f32 %v4233
    %vm4240 = vmor %vm4238, %vm4239
    %v4241 = vsel %vm4240, %v4233, %v4237
    %v4242 = vand.u32 2147483647, %v4232
    %vm4243 = vcmp.eq.f32.partialorder %v4242, 8.507059e+37
    %v4244 = vand.u32 %v4232, 2147483648
    %v4245 = vor.u32 1.1754944e-38, %v4244
    %v4246 = vsel %vm4243, %v4245, %v4241
    %v4247 = vmul.f32 1.0, %v4246
    %v4248 = vadd.f32 %v4172, %v4212
    %v4249 = vxor.u32 %v4248, 2147483648
    %v4250 = vmul.f32 %v4249, 1.442695
    %v4251 = vpow.pop %v4250
    %v4252 = vadd.f32 %v4251, 1.0
    %v4253 = vrcp.pop %v4252
    %v4254 = vmul.f32 %v4252, %v4253
    %v4255 = vsub.f32 1.0, %v4254
    %v4256 = vmul.f32 %v4253, %v4255
    %v4257 = vadd.f32 %v4253, %v4256
    %vm4258 = vweird.f32 %v4252
    %vm4259 = vweird.f32 %v4253
    %vm4260 = vmor %vm4258, %vm4259
    %v4261 = vsel %vm4260, %v4253, %v4257
    %v4262 = vand.u32 2147483647, %v4252
    %vm4263 = vcmp.eq.f32.partialorder %v4262, 8.507059e+37
    %v4264 = vand.u32 %v4252, 2147483648
    %v4265 = vor.u32 1.1754944e-38, %v4264
    %v4266 = vsel %vm4263, %v4265, %v4261
    %v4267 = vmul.f32 1.0, %v4266
    %v4268 = vadd.f32 %v4225, %v2960
    %v4269 = vmul.f32 %v4247, %v4268
    %v4270 = vadd.f32 %v4185, %v4269
    %v4271 = vtanh.pop %v4270
    %v4272 = vsub.f32 1.0, %v4267
    %v4273 = vmul.f32 %v4272, %v4271
    %v4274 = vmul.f32 %v4267, %v4142
    %v4275 = vadd.f32 %v4273, %v4274
    %v4276 = vmul.f32 %v4275, %v84
    %4277 = vadd.xlane.f32.xlu0 %v4276
    %v4278 = vpop.xlane.xlu0 %4277
    %v4279 = vmul.f32 %v4275, %v4278
    %v4280 = vadd.f32 %v4147, %v4279
    %v4281 = vmul.f32 %v4280, 0.125
    %v4282 = vld [vmem:[%s7] sm:$0x1]
    %v4284 = vperm.slane %v4282, 0
    %v4286 = vmul.f32 %v4281, %v4284
    %4287 = vadd.xlane.f32.xlu0 %v4286
    %v4288 = vpop.xlane.xlu0 %4287
    %v4289 = vld [vmem:[#allocation3] sm:$0x1]
    %v4291 = vperm.slane %v4289, 0
    %v4293 = vadd.f32 %v4288, %v4291
    %v4294 = vxor.u32 %v4293, 2147483648
    %v4295 = vmul.f32 %v4294, 1.442695
    %v4296 = vpow.pop %v4295
    %v4297 = vadd.f32 %v4296, 1.0
    %v4298 = vrcp.pop %v4297
    %v4299 = vmul.f32 %v4297, %v4298
    %v4300 = vsub.f32 1.0, %v4299
    %v4301 = vmul.f32 %v4298, %v4300
    %v4302 = vadd.f32 %v4298, %v4301
    %vm4303 = vweird.f32 %v4297
    %vm4304 = vweird.f32 %v4298
    %vm4305 = vmor %vm4303, %vm4304
    %v4306 = vsel %vm4305, %v4298, %v4302
    %v4307 = vand.u32 2147483647, %v4297
    %vm4308 = vcmp.eq.f32.partialorder %v4307, 8.507059e+37
    %v4309 = vand.u32 %v4297, 2147483648
    %v4310 = vor.u32 1.1754944e-38, %v4309
    %v4311 = vsel %vm4308, %v4310, %v4306
    %v4312 = vmul.f32 1.0, %v4311
    %4314 = vset.pattern.permute.xlu0 0
    %4315 = vperm.xlu0 %4314, %v4312
    %v4316 = vpop.permute.xlu0 %4315
    %4318 = vst [vmem:[%s9] sm:$0xff] %v4316
    // Predicated region
    $region50: #{event_sequence_encoder.1} parent=1 // pred_check
      _
    $region51: #{event_sequence_encoder.1} parent=1 // pred_check_branch
      %4320 = sbr.rel (0) target = $region53
    $region52: #{event_sequence_encoder.1} parent=1 // pred_region
      _
    $region53: #{event_sequence_encoder.1} parent=1 // pred_fallthru
      _
    // Predicated region
    $region54: #{event_sequence_encoder.1} parent=1 // pred_check
      _
    $region55: #{event_sequence_encoder.1} parent=1 // pred_check_branch
      %4322 = sbr.rel (0) target = $region57
    $region56: #{event_sequence_encoder.1} parent=1 // pred_region
      _
    $region57: #{event_sequence_encoder.1} parent=1 // pred_fallthru
      _
    %4323 = vsyncpa [#allocation5], 1
    %4324 = vsyncpa [#allocation7], 1

</llo_original>
